<compile_context>
chip_gen: v7x
topology: tpu7x:2x2x1
jax: 0.10.0
libtpu: 0.0.40
codegen_flags: <defaults>
</compile_context>

<pallas_src>
import jax
import jax.numpy as jnp
from jax.experimental import pallas as pl
from jax.experimental.pallas import tpu as pltpu


def _round_up(n, m):
    return ((n + m - 1) // m) * m


def _softplus(x):
    # torch.nn.Softplus(): log(1 + exp(x)), numerically stable form.
    return jnp.maximum(x, 0.0) + jnp.log1p(jnp.exp(-jnp.abs(x)))


def nlib_kernel(x_ref, w1_ref, w2_ref, w3_ref, wd1_ref, wd2_ref,
                bias_ref, noise_ref, out_ref):
    B = x_ref.shape[0]
    H = w1_ref.shape[1]
    K = wd1_ref.shape[0]
    SB = noise_ref.shape[0]
    n_y_pad = out_ref.shape[1]
    Hp = _round_up(H, 128)
    K2p = _round_up(2 * K, 128)

    # Static, 128-aligned lane slices of the packed bias buffer (single DMA).
    b1 = bias_ref[:, 0:H]
    b2 = bias_ref[:, Hp:Hp + H]
    b3 = bias_ref[:, 2 * Hp:2 * Hp + 2 * K]
    bd1 = bias_ref[:, 2 * Hp + K2p:2 * Hp + K2p + H]
    bd2 = bias_ref[:, 3 * Hp + K2p:3 * Hp + K2p + n_y_pad]

    bf16 = jnp.bfloat16

    # ---- Encoder: bf16 weight stream, f32 accumulate / f32 activations ----
    h1 = jnp.maximum(
        jnp.dot(x_ref[...].astype(bf16), w1_ref[...],
                preferred_element_type=jnp.float32) + b1, 0.0)
    h2 = jnp.maximum(
        jnp.dot(h1.astype(bf16), w2_ref[...],
                preferred_element_type=jnp.float32) + b2, 0.0)
    # Fused mean/sigma projection: single MXU push with N = 2K lanes.
    tmp = jnp.dot(h2.astype(bf16), w3_ref[...],
                  preferred_element_type=jnp.float32) + b3          # [B, 2K]
    mean_t = tmp[:, :K]                                             # static lane
    sigma_t = _softplus(tmp[:, K:])                                 # slices

    # ---- Reparameterization, fully in registers (no scratch round-trip) ----
    # Flat row i of noise/out corresponds to sample s = i // B, batch b = i % B.
    # Replicate per-row stats to all S samples via a tiny selection matmul
    # (sel[i, b] = 1 iff i % B == b): uses an otherwise-idle MXU slot and
    # avoids masked sub-(8,128) stores / VMEM readback.
    row = jax.lax.broadcasted_iota(jnp.int32, (SB, B), 0)
    col = jax.lax.broadcasted_iota(jnp.int32, (SB, B), 1)
    sel = (row % B == col).astype(jnp.float32)                      # [SB, B]
    mean_rep = jnp.dot(sel, mean_t, preferred_element_type=jnp.float32)
    sigma_rep = jnp.dot(sel, sigma_t, preferred_element_type=jnp.float32)
    t = mean_rep + sigma_rep * noise_ref[...]                       # [SB, K]

    # ---- Decoder, batched over all S*B rows; lane-dense padded output ----
    hd = jnp.maximum(
        jnp.dot(t.astype(bf16), wd1_ref[...],
                preferred_element_type=jnp.float32) + bd1, 0.0)
    out_ref[...] = (jnp.dot(hd.astype(bf16), wd2_ref[...],
                            preferred_element_type=jnp.float32) + bd2)


def prepare_params(params, n_y):
    """One-time parameter prep (NOT per forward call): bf16 weight cast,
    lane-dense padding of the final layer, and bias packing into a single
    lane-contiguous buffer with 128-aligned offsets."""
    (w1, b1, w2, b2, w3, b3, wd1, bd1, wd2, bd2) = params
    n_y_pad = _round_up(n_y, 128)

    wd2_p = jnp.pad(wd2, ((0, 0), (0, n_y_pad - n_y)))
    bd2_p = jnp.pad(bd2, ((0, 0), (0, n_y_pad - n_y)))

    def pad_lanes(b):
        w = b.shape[1]
        return jnp.pad(b, ((0, 0), (0, _round_up(w, 128) - w)))

    biases = jnp.concatenate(
        [pad_lanes(b1), pad_lanes(b2), pad_lanes(b3), pad_lanes(bd1), bd2_p],
        axis=1).astype(jnp.float32)

    bf16 = jnp.bfloat16
    # TODO(synk): on v7x one could additionally quantize w2 to fp8 + per-column
    # scale for another ~2x on the dominant HBM stream; kept bf16 for accuracy.
    return dict(
        w1=w1.astype(bf16), w2=w2.astype(bf16), w3=w3.astype(bf16),
        wd1=wd1.astype(bf16), wd2=wd2_p.astype(bf16),
        biases=biases, n_y=n_y, n_y_pad=n_y_pad)


def nlib_forward(x, prep, noise):
    """x: [B, n_x] f32; noise: [S, B, K] f32; returns logits [S, B, n_y] f32."""
    B, n_x = x.shape
    S, _, K = noise.shape
    n_y, n_y_pad = prep["n_y"], prep["n_y_pad"]
    H = prep["w1"].shape[1]

    noise_flat = noise.reshape(S * B, K)   # wrapper-side layout plumbing (free)

    flops = 2 * (B * n_x * H + B * H * H + B * H * 2 * K
                 + S * B * K * H + S * B * H * n_y_pad + S * B * B * 2 * K)
    bytes_accessed = (
        2 * (n_x * H + H * H + H * 2 * K + K * H + H * n_y_pad)  # bf16 weights
        + 4 * prep["biases"].size + 4 * x.size + 4 * noise_flat.size
        + 4 * S * B * n_y_pad)

    out_flat = pl.pallas_call(
        nlib_kernel,
        out_shape=jax.ShapeDtypeStruct((S * B, n_y_pad), jnp.float32),
        in_specs=[pl.BlockSpec(memory_space=pltpu.MemorySpace.VMEM)
                  for _ in range(8)],
        out_specs=pl.BlockSpec(memory_space=pltpu.MemorySpace.VMEM),
        cost_estimate=pl.CostEstimate(
            flops=flops, transcendentals=2 * B * K,
            bytes_accessed=bytes_accessed),
    )(x, prep["w1"], prep["w2"], prep["w3"], prep["wd1"], prep["wd2"],
      prep["biases"], noise_flat)

    return out_flat.reshape(S, B, n_y_pad)[:, :, :n_y]


def init_linear(key, fan_in, fan_out):
    # PyTorch nn.Linear default: U(-1/sqrt(fan_in), 1/sqrt(fan_in))
    kw, kb = jax.random.split(key)
    bound = 1.0 / jnp.sqrt(fan_in)
    w = jax.random.uniform(kw, (fan_in, fan_out), jnp.float32, -bound, bound)
    b = jax.random.uniform(kb, (1, fan_out), jnp.float32, -bound, bound)
    return w, b


def reference_forward(x, params, noise):
    (w1, b1, w2, b2, w3, b3, wd1, bd1, wd2, bd2) = params
    K = noise.shape[-1]
    h1 = jax.nn.relu(x @ w1 + b1)
    h2 = jax.nn.relu(h1 @ w2 + b2)
    tmp = h2 @ w3 + b3
    mean_t = tmp[:, :K]
    sigma_t = jax.nn.softplus(tmp[:, K:])
    t = mean_t[None] + sigma_t[None] * noise               # [S, B, K]
    hd = jax.nn.relu(jnp.einsum('sbk,kh->sbh', t, wd1) + bd1)
    return jnp.einsum('sbh,hy->sby', hd, wd2) + bd2        # [S, B, n_y]


if __name__ == "__main__":
    # Small shapes consistent with the module (mlp_mnist path; H=800 is fixed
    # by the PyTorch spec, so it is not re-tuned to a 128 multiple here).
    B, n_x, K, n_y, H, S = 2, 32, 8, 10, 800, 10

    key = jax.random.PRNGKey(0)
    keys = jax.random.split(key, 7)

    w1, b1 = init_linear(keys[0], n_x, H)         # encoder Linear(n_x, 800)
    w2, b2 = init_linear(keys[1], H, H)           # encoder Linear(800, 800)
    w3, b3 = init_linear(keys[2], H, 2 * K)       # encoder Linear(800, 2K)
    wd1, bd1 = init_linear(keys[3], K, H)         # decoder Linear(K, 800)
    wd2, bd2 = init_linear(keys[4], H, n_y)       # decoder Linear(800, n_y)

    params = (w1, b1, w2, b2, w3, b3, wd1, bd1, wd2, bd2)
    prep = prepare_params(params, n_y)            # one-time: bf16 cast, pad, pack

    x = jax.random.normal(keys[5], (B, n_x), jnp.float32)
    # torch.randn_like(...) replaced by deterministic JAX normal noise.
    noise = jax.random.normal(keys[6], (S, B, K), jnp.float32)

    logits = nlib_forward(x, prep, noise)
    logits = jax.block_until_ready(logits)

    ref = reference_forward(x, params, noise)
    assert logits.shape == (S, B, n_y)
    err = jnp.max(jnp.abs(logits - ref))
    # bf16 weight streaming -> relaxed tolerance vs the pure-f32 reference.
    assert jnp.allclose(logits, ref, atol=5e-2, rtol=5e-2), f"max abs err {err}"

    print("KERNEL_OK")
</pallas_src>

<mosaic_0001>
module attributes {stable_mosaic.version = 11 : i64} {
  func.func @nlib_kernel(%arg0: memref<2x32xf32, #tpu.memory_space<vmem>>, %arg1: memref<32x800xbf16, #tpu.memory_space<vmem>>, %arg2: memref<800x800xbf16, #tpu.memory_space<vmem>>, %arg3: memref<800x16xbf16, #tpu.memory_space<vmem>>, %arg4: memref<8x800xbf16, #tpu.memory_space<vmem>>, %arg5: memref<800x128xbf16, #tpu.memory_space<vmem>>, %arg6: memref<1x2944xf32, #tpu.memory_space<vmem>>, %arg7: memref<20x8xf32, #tpu.memory_space<vmem>>, %arg8: memref<20x128xf32, #tpu.memory_space<vmem>>) attributes {dimension_semantics = [], scalar_prefetch = 0 : i64, scratch_operands = 0 : i64, tpu.core_type = #tpu.core_type<tc>} {
    %c0 = arith.constant 0 : index
    %c0_0 = arith.constant 0 : index
    %0 = vector.load %arg6[%c0, %c0_0] : memref<1x2944xf32, #tpu.memory_space<vmem>>, vector<1x800xf32>
    %c0_1 = arith.constant 0 : index
    %c896 = arith.constant 896 : index
    %1 = vector.load %arg6[%c0_1, %c896] : memref<1x2944xf32, #tpu.memory_space<vmem>>, vector<1x800xf32>
    %c0_2 = arith.constant 0 : index
    %c1792 = arith.constant 1792 : index
    %2 = vector.load %arg6[%c0_2, %c1792] : memref<1x2944xf32, #tpu.memory_space<vmem>>, vector<1x16xf32>
    %c0_3 = arith.constant 0 : index
    %c1920 = arith.constant 1920 : index
    %3 = vector.load %arg6[%c0_3, %c1920] : memref<1x2944xf32, #tpu.memory_space<vmem>>, vector<1x800xf32>
    %c0_4 = arith.constant 0 : index
    %c2816 = arith.constant 2816 : index
    %4 = vector.load %arg6[%c0_4, %c2816] : memref<1x2944xf32, #tpu.memory_space<vmem>>, vector<1x128xf32>
    %c0_5 = arith.constant 0 : index
    %c0_6 = arith.constant 0 : index
    %5 = vector.load %arg0[%c0_5, %c0_6] : memref<2x32xf32, #tpu.memory_space<vmem>>, vector<2x32xf32>
    %6 = arith.truncf %5 : vector<2x32xf32> to vector<2x32xbf16>
    %c0_7 = arith.constant 0 : index
    %c0_8 = arith.constant 0 : index
    %7 = vector.load %arg1[%c0_7, %c0_8] : memref<32x800xbf16, #tpu.memory_space<vmem>>, vector<32x800xbf16>
    %cst = arith.constant dense<0.000000e+00> : vector<2x800xf32>
    %8 = tpu.matmul %6, %7, %cst {dimension_numbers = #tpu.dot_dimension_numbers<[1], [0], [0], [1], [0, 0, 1, 1], [], []>} : vector<2x32xbf16>, vector<32x800xbf16>, vector<2x800xf32> -> vector<2x800xf32>
    %9 = vector.broadcast %0 : vector<1x800xf32> to vector<2x800xf32>
    %10 = arith.addf %8, %9 : vector<2x800xf32>
    %cst_9 = arith.constant 0.000000e+00 : f32
    %11 = vector.broadcast %cst_9 : f32 to vector<2x800xf32>
    %12 = arith.maximumf %10, %11 : vector<2x800xf32>
    %13 = arith.truncf %12 : vector<2x800xf32> to vector<2x800xbf16>
    %c0_10 = arith.constant 0 : index
    %c0_11 = arith.constant 0 : index
    %14 = vector.load %arg2[%c0_10, %c0_11] : memref<800x800xbf16, #tpu.memory_space<vmem>>, vector<800x800xbf16>
    %cst_12 = arith.constant dense<0.000000e+00> : vector<2x800xf32>
    %15 = tpu.matmul %13, %14, %cst_12 {dimension_numbers = #tpu.dot_dimension_numbers<[1], [0], [0], [1], [0, 0, 1, 1], [], []>} : vector<2x800xbf16>, vector<800x800xbf16>, vector<2x800xf32> -> vector<2x800xf32>
    %16 = vector.broadcast %1 : vector<1x800xf32> to vector<2x800xf32>
    %17 = arith.addf %15, %16 : vector<2x800xf32>
    %cst_13 = arith.constant 0.000000e+00 : f32
    %18 = vector.broadcast %cst_13 : f32 to vector<2x800xf32>
    %19 = arith.maximumf %17, %18 : vector<2x800xf32>
    %20 = arith.truncf %19 : vector<2x800xf32> to vector<2x800xbf16>
    %c0_14 = arith.constant 0 : index
    %c0_15 = arith.constant 0 : index
    %21 = vector.load %arg3[%c0_14, %c0_15] : memref<800x16xbf16, #tpu.memory_space<vmem>>, vector<800x16xbf16>
    %cst_16 = arith.constant dense<0.000000e+00> : vector<2x16xf32>
    %22 = tpu.matmul %20, %21, %cst_16 {dimension_numbers = #tpu.dot_dimension_numbers<[1], [0], [0], [1], [0, 0, 1, 1], [], []>} : vector<2x800xbf16>, vector<800x16xbf16>, vector<2x16xf32> -> vector<2x16xf32>
    %23 = vector.broadcast %2 : vector<1x16xf32> to vector<2x16xf32>
    %24 = arith.addf %22, %23 : vector<2x16xf32>
    %25 = vector.extract_strided_slice %24 {offsets = [0, 0], sizes = [2, 8], strides = [1, 1]} : vector<2x16xf32> to vector<2x8xf32>
    %26 = vector.extract_strided_slice %24 {offsets = [0, 8], sizes = [2, 8], strides = [1, 1]} : vector<2x16xf32> to vector<2x8xf32>
    %cst_17 = arith.constant 0.000000e+00 : f32
    %27 = vector.broadcast %cst_17 : f32 to vector<2x8xf32>
    %28 = arith.maximumf %26, %27 : vector<2x8xf32>
    %29 = math.absf %26 : vector<2x8xf32>
    %cst_18 = arith.constant 0.000000e+00 : f32
    %30 = vector.broadcast %cst_18 : f32 to vector<2x8xf32>
    %31 = arith.subf %30, %29 : vector<2x8xf32>
    %32 = math.exp %31 : vector<2x8xf32>
    %33 = math.log1p %32 : vector<2x8xf32>
    %34 = arith.addf %28, %33 : vector<2x8xf32>
    %35 = tpu.iota {dimensions = array<i32: 0>} : vector<20x2xi32>
    %36 = tpu.iota {dimensions = array<i32: 1>} : vector<20x2xi32>
    %c2_i32 = arith.constant 2 : i32
    %c0_i32 = arith.constant 0 : i32
    %37 = arith.cmpi eq, %c2_i32, %c0_i32 : i32
    %c1_i32 = arith.constant 1 : i32
    %38 = arith.select %37, %c1_i32, %c2_i32 : i32
    %39 = vector.broadcast %38 : i32 to vector<20x2xi32>
    %40 = arith.remsi %35, %39 : vector<20x2xi32>
    %c0_i32_19 = arith.constant 0 : i32
    %41 = vector.broadcast %c0_i32_19 : i32 to vector<20x2xi32>
    %42 = arith.cmpi ne, %40, %41 : vector<20x2xi32>
    %c0_i32_20 = arith.constant 0 : i32
    %43 = vector.broadcast %c0_i32_20 : i32 to vector<20x2xi32>
    %44 = arith.cmpi slt, %40, %43 : vector<20x2xi32>
    %c0_i32_21 = arith.constant 0 : i32
    %45 = arith.cmpi slt, %38, %c0_i32_21 : i32
    %46 = vector.broadcast %45 : i1 to vector<20x2xi1>
    %47 = vector.broadcast %46 : vector<20x2xi1> to vector<20x2xi1>
    %48 = arith.xori %44, %47 : vector<20x2xi1>
    %49 = arith.andi %48, %42 : vector<20x2xi1>
    %50 = vector.broadcast %38 : i32 to vector<20x2xi32>
    %51 = arith.addi %40, %50 : vector<20x2xi32>
    %52 = arith.select %49, %51, %40 : vector<20x2xi1>, vector<20x2xi32>
    %53 = arith.cmpi eq, %52, %36 : vector<20x2xi32>
    %54 = arith.extui %53 : vector<20x2xi1> to vector<20x2xi32>
    %55 = arith.sitofp %54 : vector<20x2xi32> to vector<20x2xf32>
    %cst_22 = arith.constant dense<0.000000e+00> : vector<20x8xf32>
    %56 = tpu.matmul %55, %25, %cst_22 {dimension_numbers = #tpu.dot_dimension_numbers<[1], [0], [0], [1], [0, 0, 1, 1], [], []>} : vector<20x2xf32>, vector<2x8xf32>, vector<20x8xf32> -> vector<20x8xf32>
    %cst_23 = arith.constant dense<0.000000e+00> : vector<20x8xf32>
    %57 = tpu.matmul %55, %34, %cst_23 {dimension_numbers = #tpu.dot_dimension_numbers<[1], [0], [0], [1], [0, 0, 1, 1], [], []>} : vector<20x2xf32>, vector<2x8xf32>, vector<20x8xf32> -> vector<20x8xf32>
    %c0_24 = arith.constant 0 : index
    %c0_25 = arith.constant 0 : index
    %58 = vector.load %arg7[%c0_24, %c0_25] : memref<20x8xf32, #tpu.memory_space<vmem>>, vector<20x8xf32>
    %59 = arith.mulf %57, %58 : vector<20x8xf32>
    %60 = arith.addf %56, %59 : vector<20x8xf32>
    %61 = arith.truncf %60 : vector<20x8xf32> to vector<20x8xbf16>
    %c0_26 = arith.constant 0 : index
    %c0_27 = arith.constant 0 : index
    %62 = vector.load %arg4[%c0_26, %c0_27] : memref<8x800xbf16, #tpu.memory_space<vmem>>, vector<8x800xbf16>
    %cst_28 = arith.constant dense<0.000000e+00> : vector<20x800xf32>
    %63 = tpu.matmul %61, %62, %cst_28 {dimension_numbers = #tpu.dot_dimension_numbers<[1], [0], [0], [1], [0, 0, 1, 1], [], []>} : vector<20x8xbf16>, vector<8x800xbf16>, vector<20x800xf32> -> vector<20x800xf32>
    %64 = vector.broadcast %3 : vector<1x800xf32> to vector<20x800xf32>
    %65 = arith.addf %63, %64 : vector<20x800xf32>
    %cst_29 = arith.constant 0.000000e+00 : f32
    %66 = vector.broadcast %cst_29 : f32 to vector<20x800xf32>
    %67 = arith.maximumf %65, %66 : vector<20x800xf32>
    %68 = arith.truncf %67 : vector<20x800xf32> to vector<20x800xbf16>
    %c0_30 = arith.constant 0 : index
    %c0_31 = arith.constant 0 : index
    %69 = vector.load %arg5[%c0_30, %c0_31] : memref<800x128xbf16, #tpu.memory_space<vmem>>, vector<800x128xbf16>
    %cst_32 = arith.constant dense<0.000000e+00> : vector<20x128xf32>
    %70 = tpu.matmul %68, %69, %cst_32 {dimension_numbers = #tpu.dot_dimension_numbers<[1], [0], [0], [1], [0, 0, 1, 1], [], []>} : vector<20x800xbf16>, vector<800x128xbf16>, vector<20x128xf32> -> vector<20x128xf32>
    %71 = vector.broadcast %4 : vector<1x128xf32> to vector<20x128xf32>
    %72 = arith.addf %70, %71 : vector<20x128xf32>
    %c0_33 = arith.constant 0 : index
    %c0_34 = arith.constant 0 : index
    %73 = vector.load %arg8[%c0_33, %c0_34] : memref<20x128xf32, #tpu.memory_space<vmem>>, vector<20x128xf32>
    tpu.vector_store %arg8[%c0_33, %c0_34], %72 {strides = array<i32>} : memref<20x128xf32, #tpu.memory_space<vmem>>, vector<20x128xf32>,
    return
  }
}

</mosaic_0001>

<llo_original>
// kernel: tpu_custom_call.1
$region0: #{tpu_custom_call.1}
  #allocation0 [shape = 'u32[]', space=smem, size = 0x4, offset = 0x4, fixed_abs, tag = 'smem constant byte address 0x4 - core index']
  #allocation1 [shape = 'u32[144,128]{1,0:T(1,128)}', space=vmem, size = 0x12000, scoped, tag = 'internal scratch']
  %s0 = inlined_call_operand.hbm [shape: f32[2,32], index: 0, kind: input, shape index: {}]
  %s1 = inlined_call_operand.hbm [shape: bf16[32,800], index: 1, kind: input, shape index: {}]
  %s2 = inlined_call_operand.hbm [shape: bf16[800,800], index: 2, kind: input, shape index: {}]
  %s3 = inlined_call_operand.vmem [shape: bf16[800,16], index: 3, kind: input, shape index: {}]
  %s4 = inlined_call_operand.hbm [shape: bf16[8,800], index: 4, kind: input, shape index: {}]
  %s5 = inlined_call_operand.hbm [shape: bf16[800,128], index: 5, kind: input, shape index: {}]
  %s6 = inlined_call_operand.hbm [shape: f32[1,2944], index: 6, kind: input, shape index: {}]
  %s7 = inlined_call_operand.vmem [shape: f32[20,8], index: 7, kind: input, shape index: {}]
  %s8 = inlined_call_operand.hbm [shape: f32[20,128], index: 8, kind: output, shape index: {}]
  %s9 = sld [smem:[#allocation0]]
  $region66: #{tpu_custom_call.1} parent=0
    _
  %s11 = ssub.s32 1, %s9
  %s12 = scalar_select 0, %s11, %s9
  $region1: #{tpu_custom_call.1} parent=0
    #allocation2 [shape = 'u8[1024]{0}', space=vmem, size = 0x400, scoped, tag = 'input window, operand 0, single buffered']
    #allocation3 [shape = 's32[1]{0}', space=sflag, size = 0x4, scoped, tag = 'scoped memory for tpu_custom_call.1']
    #allocation4 [shape = 's32[1]{0}', space=sflag, size = 0x4, scoped, tag = 'scoped memory for tpu_custom_call.1']
    #allocation5 [shape = 'u8[57344]{0}', space=vmem, size = 0xe000, scoped, tag = 'input window, operand 1, single buffered']
    #allocation6 [shape = 's32[1]{0}', space=sflag, size = 0x4, scoped, tag = 'scoped memory for tpu_custom_call.1']
    #allocation7 [shape = 'u8[1433600]{0}', space=vmem, size = 0x15e000, scoped, tag = 'input window, operand 2, single buffered']
    #allocation8 [shape = 'u8[14336]{0}', space=vmem, size = 0x3800, scoped, tag = 'input window, operand 4, single buffered']
    #allocation9 [shape = 's32[1]{0}', space=sflag, size = 0x4, scoped, tag = 'scoped memory for tpu_custom_call.1']
    #allocation10 [shape = 'u8[204800]{0}', space=vmem, size = 0x32000, scoped, tag = 'input window, operand 5, single buffered']
    #allocation11 [shape = 'u8[11776]{0}', space=vmem, size = 0x3000, scoped, tag = 'input window, operand 6, single buffered']
    #allocation12 [shape = 's32[1]{0}', space=sflag, size = 0x4, scoped, tag = 'scoped memory for tpu_custom_call.1']
    #allocation13 [shape = 'u8[12288]{0}', space=vmem, size = 0x3000, scoped, tag = 'output window, operand 0, single buffered']
    %13 = vsyncpa [#allocation3], 0
    %14 = vsyncpa [#allocation6], 0
    %15 = vsyncpa [#allocation9], 0
    %16 = vsyncpa [#allocation12], 0
    %17 = vsyncpa [#allocation4], 0
    // Predicated region
    $region2: #{tpu_custom_call.1} parent=1 // pred_check
      _
    $region3: #{tpu_custom_call.1} parent=1 // pred_check_branch
      %19 = sbr.rel (0) target = $region5
    $region4: #{tpu_custom_call.1} parent=1 // pred_region
      %s21 = ssub.s32 32, 32
      %22 = vsyncadd [#allocation3], %s21
      %s24 = sshll.u32 [#allocation2], 4
      %s25 = int_to_ptr.vmem [resolvable:$true] %s24
      %27 = dma.hbm_to_vmem [thread:$0]  %s0, 32, %s25, [#allocation3]
    $region5: #{tpu_custom_call.1} parent=1 // pred_fallthru
      _
    // Predicated region
    $region6: #{tpu_custom_call.1} parent=1 // pred_check
      _
    $region7: #{tpu_custom_call.1} parent=1 // pred_check_branch
      %29 = sbr.rel (0) target = $region9
    $region8: #{tpu_custom_call.1} parent=1 // pred_region
      %s31 = ssub.s32 1792, 1792
      %32 = vsyncadd [#allocation6], %s31
      %s33 = sshll.u32 [#allocation5], 4
      %s34 = int_to_ptr.vmem [resolvable:$true] %s33
      %39 = dma.hbm_to_vmem [thread:$0]  %s1, 1792, %s34, [#allocation6], 448, 448, 28
    $region9: #{tpu_custom_call.1} parent=1 // pred_fallthru
      _
    // Predicated region
    $region10: #{tpu_custom_call.1} parent=1 // pred_check
      _
    $region11: #{tpu_custom_call.1} parent=1 // pred_check_branch
      %41 = sbr.rel (0) target = $region13
    $region12: #{tpu_custom_call.1} parent=1 // pred_region
      %s43 = ssub.s32 44800, 44800
      %44 = vsyncadd [#allocation6], %s43
      %s45 = sshll.u32 [#allocation7], 4
      %s46 = int_to_ptr.vmem [resolvable:$true] %s45
      %51 = dma.hbm_to_vmem [thread:$0]  %s2, 44800, %s46, [#allocation6], 448, 448, 28
    $region13: #{tpu_custom_call.1} parent=1 // pred_fallthru
      _
    // Predicated region
    $region14: #{tpu_custom_call.1} parent=1 // pred_check
      _
    $region15: #{tpu_custom_call.1} parent=1 // pred_check_branch
      %53 = sbr.rel (0) target = $region17
    $region16: #{tpu_custom_call.1} parent=1 // pred_region
      _
    $region17: #{tpu_custom_call.1} parent=1 // pred_fallthru
      _
    // Predicated region
    $region18: #{tpu_custom_call.1} parent=1 // pred_check
      _
    $region19: #{tpu_custom_call.1} parent=1 // pred_check_branch
      %55 = sbr.rel (0) target = $region21
    $region20: #{tpu_custom_call.1} parent=1 // pred_region
      %s57 = ssub.s32 448, 448
      %58 = vsyncadd [#allocation9], %s57
      %s60 = sshll.u32 [#allocation8], 4
      %s61 = int_to_ptr.vmem [resolvable:$true] %s60
      %63 = dma.hbm_to_vmem [thread:$0]  %s4, 448, %s61, [#allocation9]
    $region21: #{tpu_custom_call.1} parent=1 // pred_fallthru
      _
    // Predicated region
    $region22: #{tpu_custom_call.1} parent=1 // pred_check
      _
    $region23: #{tpu_custom_call.1} parent=1 // pred_check_branch
      %65 = sbr.rel (0) target = $region25
    $region24: #{tpu_custom_call.1} parent=1 // pred_region
      %s67 = ssub.s32 6400, 6400
      %68 = vsyncadd [#allocation9], %s67
      %s69 = sshll.u32 [#allocation10], 4
      %s70 = int_to_ptr.vmem [resolvable:$true] %s69
      %75 = dma.hbm_to_vmem [thread:$0]  %s5, 6400, %s70, [#allocation9], 64, 64, 4
    $region25: #{tpu_custom_call.1} parent=1 // pred_fallthru
      _
    // Predicated region
    $region26: #{tpu_custom_call.1} parent=1 // pred_check
      _
    $region27: #{tpu_custom_call.1} parent=1 // pred_check_branch
      %77 = sbr.rel (0) target = $region29
    $region28: #{tpu_custom_call.1} parent=1 // pred_region
      %s79 = ssub.s32 368, 368
      %80 = vsyncadd [#allocation12], %s79
      %s82 = sshll.u32 [#allocation11], 4
      %s83 = int_to_ptr.vmem [resolvable:$true] %s82
      %85 = dma.hbm_to_vmem [thread:$0]  %s6, 368, %s83, [#allocation12]
    $region29: #{tpu_custom_call.1} parent=1 // pred_fallthru
      _
    // Predicated region
    $region30: #{tpu_custom_call.1} parent=1 // pred_check
      _
    $region31: #{tpu_custom_call.1} parent=1 // pred_check_branch
      %87 = sbr.rel (0) target = $region33
    $region32: #{tpu_custom_call.1} parent=1 // pred_region
      _
    $region33: #{tpu_custom_call.1} parent=1 // pred_fallthru
      _
    // Predicated region
    $region34: #{tpu_custom_call.1} parent=1 // pred_check
      _
    $region35: #{tpu_custom_call.1} parent=1 // pred_check_branch
      %89 = sbr.rel (0) target = $region37
    $region36: #{tpu_custom_call.1} parent=1 // pred_region
      %90 = dma.done [#allocation3], 32
    $region37: #{tpu_custom_call.1} parent=1 // pred_fallthru
      _
    // Predicated region
    $region38: #{tpu_custom_call.1} parent=1 // pred_check
      _
    $region39: #{tpu_custom_call.1} parent=1 // pred_check_branch
      %92 = sbr.rel (0) target = $region41
    $region40: #{tpu_custom_call.1} parent=1 // pred_region
      %93 = dma.done [#allocation6], 1792
    $region41: #{tpu_custom_call.1} parent=1 // pred_fallthru
      _
    // Predicated region
    $region42: #{tpu_custom_call.1} parent=1 // pred_check
      _
    $region43: #{tpu_custom_call.1} parent=1 // pred_check_branch
      %95 = sbr.rel (0) target = $region45
    $region44: #{tpu_custom_call.1} parent=1 // pred_region
      %96 = dma.done [#allocation6], 44800
    $region45: #{tpu_custom_call.1} parent=1 // pred_fallthru
      _
    // Predicated region
    $region46: #{tpu_custom_call.1} parent=1 // pred_check
      _
    $region47: #{tpu_custom_call.1} parent=1 // pred_check_branch
      %98 = sbr.rel (0) target = $region49
    $region48: #{tpu_custom_call.1} parent=1 // pred_region
      %99 = dma.done [#allocation9], 448
    $region49: #{tpu_custom_call.1} parent=1 // pred_fallthru
      _
    // Predicated region
    $region50: #{tpu_custom_call.1} parent=1 // pred_check
      _
    $region51: #{tpu_custom_call.1} parent=1 // pred_check_branch
      %101 = sbr.rel (0) target = $region53
    $region52: #{tpu_custom_call.1} parent=1 // pred_region
      %102 = dma.done [#allocation9], 6400
    $region53: #{tpu_custom_call.1} parent=1 // pred_fallthru
      _
    // Predicated region
    $region54: #{tpu_custom_call.1} parent=1 // pred_check
      _
    $region55: #{tpu_custom_call.1} parent=1 // pred_check_branch
      %104 = sbr.rel (0) target = $region57
    $region56: #{tpu_custom_call.1} parent=1 // pred_region
      %105 = dma.done [#allocation12], 368
    $region57: #{tpu_custom_call.1} parent=1 // pred_fallthru
      _
    %v107 = vld [vmem:[#allocation11] sm:$0x7f]
    %v108 = vld [vmem:[#allocation11 + $0x7] sm:$0x7f]
    %v109 = vld [vmem:[#allocation11 + $0xe] sm:$0x1]
    %v110 = vld [vmem:[#allocation11 + $0xf] sm:$0x7f]
    %v111 = vld [vmem:[#allocation11 + $0x16] sm:$0x1]
    %v112 = vld [vmem:[#allocation2] sm:$0x3]
    %v113 = vpack.c.bf16 %v112, %v112
    %v114 = vld [vmem:[#allocation5] sm:$0xff]
    %v115 = vld [vmem:[#allocation5 + $0x8] sm:$0xff]
    %v116 = vld [vmem:[#allocation5 + $0x10] sm:$0xff]
    %v117 = vld [vmem:[#allocation5 + $0x18] sm:$0xf]
    %v118 = vld [vmem:[#allocation5 + $0x1c] sm:$0xff]
    %v119 = vld [vmem:[#allocation5 + $0x24] sm:$0xff]
    %v120 = vld [vmem:[#allocation5 + $0x2c] sm:$0xff]
    %v121 = vld [vmem:[#allocation5 + $0x34] sm:$0xf]
    %v122 = vld [vmem:[#allocation5 + $0x38] sm:$0xff]
    %v123 = vld [vmem:[#allocation5 + $0x40] sm:$0xff]
    %v124 = vld [vmem:[#allocation5 + $0x48] sm:$0xff]
    %v125 = vld [vmem:[#allocation5 + $0x50] sm:$0xf]
    %v126 = vld [vmem:[#allocation5 + $0x54] sm:$0xff]
    %v127 = vld [vmem:[#allocation5 + $0x5c] sm:$0xff]
    %v128 = vld [vmem:[#allocation5 + $0x64] sm:$0xff]
    %v129 = vld [vmem:[#allocation5 + $0x6c] sm:$0xf]
    %v131 = vlaneseq
    %v132 = vshrl.u32 %v131, 7
    %v133 = vsub.s32 0, %v132
    %v134 = vrot.slane %v107, %v133
    %v135 = vlaneseq
    %v136 = vshrl.u32 %v135, 7
    %v137 = vsub.s32 1, %v136
    %v138 = vrot.slane %v107, %v137
    %v139 = vlaneseq
    %v140 = vshrl.u32 %v139, 7
    %v141 = vsub.s32 2, %v140
    %v142 = vrot.slane %v107, %v141
    %v143 = vlaneseq
    %v144 = vshrl.u32 %v143, 7
    %v145 = vsub.s32 3, %v144
    %v146 = vrot.slane %v107, %v145
    %v147 = vlaneseq
    %v148 = vshrl.u32 %v147, 7
    %v149 = vsub.s32 4, %v148
    %v150 = vrot.slane %v107, %v149
    %v151 = vlaneseq
    %v152 = vshrl.u32 %v151, 7
    %v153 = vsub.s32 5, %v152
    %v154 = vrot.slane %v107, %v153
    %v155 = vlaneseq
    %v156 = vshrl.u32 %v155, 7
    %v157 = vsub.s32 6, %v156
    %v158 = vrot.slane %v107, %v157
    %v182 = vunpack.c.l.b16 %v114
    %v183 = vunpack.c.h.b16 %v114
    %v184 = vunpack.c.l.b16 %v115
    %v185 = vunpack.c.h.b16 %v115
    %v186 = vunpack.c.l.b16 %v116
    %v187 = vunpack.c.h.b16 %v116
    %v188 = vunpack.c.l.b16 %v117
    %v189 = vunpack.c.l.b16 %v118
    %v190 = vunpack.c.h.b16 %v118
    %v191 = vunpack.c.l.b16 %v119
    %v192 = vunpack.c.h.b16 %v119
    %v193 = vunpack.c.l.b16 %v120
    %v194 = vunpack.c.h.b16 %v120
    %v195 = vunpack.c.l.b16 %v121
    %v196 = vunpack.c.l.b16 %v122
    %v197 = vunpack.c.h.b16 %v122
    %v198 = vunpack.c.l.b16 %v123
    %v199 = vunpack.c.h.b16 %v123
    %v200 = vunpack.c.l.b16 %v124
    %v201 = vunpack.c.h.b16 %v124
    %v202 = vunpack.c.l.b16 %v125
    %v203 = vunpack.c.l.b16 %v126
    %v204 = vunpack.c.h.b16 %v126
    %v205 = vunpack.c.l.b16 %v127
    %v206 = vunpack.c.h.b16 %v127
    %v207 = vunpack.c.l.b16 %v128
    %v208 = vunpack.c.h.b16 %v128
    %v209 = vunpack.c.l.b16 %v129
    %v210 = vpack.c.b16 %v189, %v182
    %v211 = vpack.c.b16 %v190, %v183
    %v212 = vpack.c.b16 %v191, %v184
    %v213 = vpack.c.b16 %v192, %v185
    %v214 = vpack.c.b16 %v193, %v186
    %v215 = vpack.c.b16 %v194, %v187
    %v216 = vpack.c.b16 %v195, %v188
    %v217 = vpack.c.b16 %v203, %v196
    %v218 = vpack.c.b16 %v204, %v197
    %v219 = vpack.c.b16 %v205, %v198
    %v220 = vpack.c.b16 %v206, %v199
    %v221 = vpack.c.b16 %v207, %v200
    %v222 = vpack.c.b16 %v208, %v201
    %v223 = vpack.c.b16 %v209, %v202
    %vm238 = vcmask 261120
    %v240 = vsel %vm238, %v113, 0
    %242 = vmatprep.subr.bf16.mxu0 %v211
    %243 = vmatpush1.bf16.msra.mxu0 %v210
    %244 = vmatprep.subr.bf16.mxu0 %v218
    %245 = vmatpush1.bf16.msra.mxu0 %v217
    %246 = vmatprep.subr.bf16.mxu0 0
    %247 = vmatpush1.bf16.msra.mxu0 0
    %248 = vmatprep.subr.bf16.mxu0 0
    %249 = vmatpush1.bf16.msra.mxu0 0
    %250 = vmatprep.subr.bf16.mxu0 0
    %251 = vmatpush1.bf16.msra.mxu0 0
    %252 = vmatprep.subr.bf16.mxu0 0
    %253 = vmatpush1.bf16.msra.mxu0 0
    %254 = vmatprep.subr.bf16.mxu0 0
    %255 = vmatpush1.bf16.msra.mxu0 0
    %256 = vmatprep.subr.bf16.mxu0 0
    %257 = vmatpush1.bf16.msra.mxu0 0
    %258 = vmatprep.subr.bf16.mxu0 0
    %259 = vmatpush1.bf16.msra.mxu0 0
    %260 = vmatprep.subr.bf16.mxu0 0
    %261 = vmatpush1.bf16.msra.mxu0 0
    %262 = vmatprep.subr.bf16.mxu0 0
    %263 = vmatpush1.bf16.msra.mxu0 0
    %264 = vmatprep.subr.bf16.mxu0 0
    %265 = vmatpush1.bf16.msra.mxu0 0
    %266 = vmatprep.subr.bf16.mxu0 0
    %267 = vmatpush1.bf16.msra.mxu0 0
    %268 = vmatprep.subr.bf16.mxu0 0
    %269 = vmatpush1.bf16.msra.mxu0 0
    %270 = vmatprep.subr.bf16.mxu0 0
    %271 = vmatpush1.bf16.msra.mxu0 0
    %272 = vmatprep.subr.bf16.mxu0 0
    %273 = vmatpush1.bf16.msra.mxu0 0
    %274 = vmatprep.mubr.bf16.mxu0 0
    %275 = vmatmul.mubr.bf16.gmra.mrb[0].mxu0 %v240
    %v276 = vpop.f32.mrb[0].mxu0
    %v277 = vadd.f32 %v134, %v276
    %v278 = vpop.f32.mrb[0].mxu0
    %v279 = vadd.f32 %v138, %v278
    %v280 = vpop.f32.mrb[0].mxu0
    %v281 = vpop.f32.mrb[0].mxu0
    %282 = vdwg.mxu0
    %283 = vmatprep.subr.bf16.mxu0 %v213
    %284 = vmatpush1.bf16.msra.mxu0 %v212
    %285 = vmatprep.subr.bf16.mxu0 %v220
    %286 = vmatpush1.bf16.msra.mxu0 %v219
    %287 = vmatprep.subr.bf16.mxu0 0
    %288 = vmatpush1.bf16.msra.mxu0 0
    %289 = vmatprep.subr.bf16.mxu0 0
    %290 = vmatpush1.bf16.msra.mxu0 0
    %291 = vmatprep.subr.bf16.mxu0 0
    %292 = vmatpush1.bf16.msra.mxu0 0
    %293 = vmatprep.subr.bf16.mxu0 0
    %294 = vmatpush1.bf16.msra.mxu0 0
    %295 = vmatprep.subr.bf16.mxu0 0
    %296 = vmatpush1.bf16.msra.mxu0 0
    %297 = vmatprep.subr.bf16.mxu0 0
    %298 = vmatpush1.bf16.msra.mxu0 0
    %299 = vmatprep.subr.bf16.mxu0 0
    %300 = vmatpush1.bf16.msra.mxu0 0
    %301 = vmatprep.subr.bf16.mxu0 0
    %302 = vmatpush1.bf16.msra.mxu0 0
    %303 = vmatprep.subr.bf16.mxu0 0
    %304 = vmatpush1.bf16.msra.mxu0 0
    %305 = vmatprep.subr.bf16.mxu0 0
    %306 = vmatpush1.bf16.msra.mxu0 0
    %307 = vmatprep.subr.bf16.mxu0 0
    %308 = vmatpush1.bf16.msra.mxu0 0
    %309 = vmatprep.subr.bf16.mxu0 0
    %310 = vmatpush1.bf16.msra.mxu0 0
    %311 = vmatprep.subr.bf16.mxu0 0
    %312 = vmatpush1.bf16.msra.mxu0 0
    %313 = vmatprep.subr.bf16.mxu0 0
    %314 = vmatpush1.bf16.msra.mxu0 0
    %315 = vmatprep.mubr.bf16.mxu0 0
    %316 = vmatmul.mubr.bf16.gmra.mrb[0].mxu0 %v240
    %v317 = vpop.f32.mrb[0].mxu0
    %v318 = vadd.f32 %v142, %v317
    %v319 = vpop.f32.mrb[0].mxu0
    %v320 = vadd.f32 %v146, %v319
    %v321 = vpop.f32.mrb[0].mxu0
    %v322 = vpop.f32.mrb[0].mxu0
    %323 = vdwg.mxu0
    %324 = vmatprep.subr.bf16.mxu0 %v215
    %325 = vmatpush1.bf16.msra.mxu0 %v214
    %326 = vmatprep.subr.bf16.mxu0 %v222
    %327 = vmatpush1.bf16.msra.mxu0 %v221
    %328 = vmatprep.subr.bf16.mxu0 0
    %329 = vmatpush1.bf16.msra.mxu0 0
    %330 = vmatprep.subr.bf16.mxu0 0
    %331 = vmatpush1.bf16.msra.mxu0 0
    %332 = vmatprep.subr.bf16.mxu0 0
    %333 = vmatpush1.bf16.msra.mxu0 0
    %334 = vmatprep.subr.bf16.mxu0 0
    %335 = vmatpush1.bf16.msra.mxu0 0
    %336 = vmatprep.subr.bf16.mxu0 0
    %337 = vmatpush1.bf16.msra.mxu0 0
    %338 = vmatprep.subr.bf16.mxu0 0
    %339 = vmatpush1.bf16.msra.mxu0 0
    %340 = vmatprep.subr.bf16.mxu0 0
    %341 = vmatpush1.bf16.msra.mxu0 0
    %342 = vmatprep.subr.bf16.mxu0 0
    %343 = vmatpush1.bf16.msra.mxu0 0
    %344 = vmatprep.subr.bf16.mxu0 0
    %345 = vmatpush1.bf16.msra.mxu0 0
    %346 = vmatprep.subr.bf16.mxu0 0
    %347 = vmatpush1.bf16.msra.mxu0 0
    %348 = vmatprep.subr.bf16.mxu0 0
    %349 = vmatpush1.bf16.msra.mxu0 0
    %350 = vmatprep.subr.bf16.mxu0 0
    %351 = vmatpush1.bf16.msra.mxu0 0
    %352 = vmatprep.subr.bf16.mxu0 0
    %353 = vmatpush1.bf16.msra.mxu0 0
    %354 = vmatprep.subr.bf16.mxu0 0
    %355 = vmatpush1.bf16.msra.mxu0 0
    %356 = vmatprep.mubr.bf16.mxu0 0
    %357 = vmatmul.mubr.bf16.gmra.mrb[0].mxu0 %v240
    %v358 = vpop.f32.mrb[0].mxu0
    %v359 = vadd.f32 %v150, %v358
    %v360 = vpop.f32.mrb[0].mxu0
    %v361 = vadd.f32 %v154, %v360
    %v362 = vpop.f32.mrb[0].mxu0
    %v363 = vpop.f32.mrb[0].mxu0
    %364 = vdwg.mxu0
    %365 = vmatprep.subr.bf16.mxu0 0
    %366 = vmatpush1.bf16.msra.mxu0 %v216
    %367 = vmatprep.subr.bf16.mxu0 0
    %368 = vmatpush1.bf16.msra.mxu0 %v223
    %369 = vmatprep.subr.bf16.mxu0 0
    %370 = vmatpush1.bf16.msra.mxu0 0
    %371 = vmatprep.subr.bf16.mxu0 0
    %372 = vmatpush1.bf16.msra.mxu0 0
    %373 = vmatprep.subr.bf16.mxu0 0
    %374 = vmatpush1.bf16.msra.mxu0 0
    %375 = vmatprep.subr.bf16.mxu0 0
    %376 = vmatpush1.bf16.msra.mxu0 0
    %377 = vmatprep.subr.bf16.mxu0 0
    %378 = vmatpush1.bf16.msra.mxu0 0
    %379 = vmatprep.subr.bf16.mxu0 0
    %380 = vmatpush1.bf16.msra.mxu0 0
    %381 = vmatprep.subr.bf16.mxu0 0
    %382 = vmatpush1.bf16.msra.mxu0 0
    %383 = vmatprep.subr.bf16.mxu0 0
    %384 = vmatpush1.bf16.msra.mxu0 0
    %385 = vmatprep.subr.bf16.mxu0 0
    %386 = vmatpush1.bf16.msra.mxu0 0
    %387 = vmatprep.subr.bf16.mxu0 0
    %388 = vmatpush1.bf16.msra.mxu0 0
    %389 = vmatprep.subr.bf16.mxu0 0
    %390 = vmatpush1.bf16.msra.mxu0 0
    %391 = vmatprep.subr.bf16.mxu0 0
    %392 = vmatpush1.bf16.msra.mxu0 0
    %393 = vmatprep.subr.bf16.mxu0 0
    %394 = vmatpush1.bf16.msra.mxu0 0
    %395 = vmatprep.subr.bf16.mxu0 0
    %396 = vmatpush1.bf16.msra.mxu0 0
    %397 = vmatprep.mubr.bf16.mxu0 0
    %398 = vmatmul.mubr.bf16.gmra.mrb[0].mxu0 %v240
    %v399 = vpop.f32.mrb[0].mxu0
    %v400 = vadd.f32 %v158, %v399
    %v401 = vpop.f32.mrb[0].mxu0
    %v402 = vpop.f32.mrb[0].mxu0
    %v403 = vpop.f32.mrb[0].mxu0
    %404 = vdwg.mxu0
    %v405 = vmax.f32 %v277, 0.0
    %v406 = vmax.f32 %v279, 0.0
    %v407 = vmax.f32 %v318, 0.0
    %v408 = vmax.f32 %v320, 0.0
    %v409 = vmax.f32 %v359, 0.0
    %v410 = vmax.f32 %v361, 0.0
    %v411 = vmax.f32 %v400, 0.0
    %v412 = vpack.c.bf16 %v405, %v405
    %v413 = vpack.c.bf16 %v406, %v406
    %v414 = vpack.c.bf16 %v407, %v407
    %v415 = vpack.c.bf16 %v408, %v408
    %v416 = vpack.c.bf16 %v409, %v409
    %v417 = vpack.c.bf16 %v410, %v410
    %v418 = vpack.c.bf16 %v411, %v411
    %v419 = vld [vmem:[#allocation7] sm:$0xff]
    %v420 = vld [vmem:[#allocation7 + $0x8] sm:$0xff]
    %v421 = vld [vmem:[#allocation7 + $0x10] sm:$0xff]
    %v422 = vld [vmem:[#allocation7 + $0x18] sm:$0xf]
    %v423 = vld [vmem:[#allocation7 + $0x1c] sm:$0xff]
    %v424 = vld [vmem:[#allocation7 + $0x24] sm:$0xff]
    %v425 = vld [vmem:[#allocation7 + $0x2c] sm:$0xff]
    %v426 = vld [vmem:[#allocation7 + $0x34] sm:$0xf]
    %v427 = vld [vmem:[#allocation7 + $0x38] sm:$0xff]
    %v428 = vld [vmem:[#allocation7 + $0x40] sm:$0xff]
    %v429 = vld [vmem:[#allocation7 + $0x48] sm:$0xff]
    %v430 = vld [vmem:[#allocation7 + $0x50] sm:$0xf]
    %v431 = vld [vmem:[#allocation7 + $0x54] sm:$0xff]
    %v432 = vld [vmem:[#allocation7 + $0x5c] sm:$0xff]
    %v433 = vld [vmem:[#allocation7 + $0x64] sm:$0xff]
    %v434 = vld [vmem:[#allocation7 + $0x6c] sm:$0xf]
    %v435 = vld [vmem:[#allocation7 + $0x70] sm:$0xff]
    %v436 = vld [vmem:[#allocation7 + $0x78] sm:$0xff]
    %v437 = vld [vmem:[#allocation7 + $0x80] sm:$0xff]
    %v438 = vld [vmem:[#allocation7 + $0x88] sm:$0xf]
    %v439 = vld [vmem:[#allocation7 + $0x8c] sm:$0xff]
    %v440 = vld [vmem:[#allocation7 + $0x94] sm:$0xff]
    %v441 = vld [vmem:[#allocation7 + $0x9c] sm:$0xff]
    %v442 = vld [vmem:[#allocation7 + $0xa4] sm:$0xf]
    %v443 = vld [vmem:[#allocation7 + $0xa8] sm:$0xff]
    %v444 = vld [vmem:[#allocation7 + $0xb0] sm:$0xff]
    %v445 = vld [vmem:[#allocation7 + $0xb8] sm:$0xff]
    %v446 = vld [vmem:[#allocation7 + $0xc0] sm:$0xf]
    %v447 = vld [vmem:[#allocation7 + $0xc4] sm:$0xff]
    %v448 = vld [vmem:[#allocation7 + $0xcc] sm:$0xff]
    %v449 = vld [vmem:[#allocation7 + $0xd4] sm:$0xff]
    %v450 = vld [vmem:[#allocation7 + $0xdc] sm:$0xf]
    %v451 = vld [vmem:[#allocation7 + $0xe0] sm:$0xff]
    %v452 = vld [vmem:[#allocation7 + $0xe8] sm:$0xff]
    %v453 = vld [vmem:[#allocation7 + $0xf0] sm:$0xff]
    %v454 = vld [vmem:[#allocation7 + $0xf8] sm:$0xf]
    %v455 = vld [vmem:[#allocation7 + $0xfc] sm:$0xff]
    %v456 = vld [vmem:[#allocation7 + $0x104] sm:$0xff]
    %v457 = vld [vmem:[#allocation7 + $0x10c] sm:$0xff]
    %v458 = vld [vmem:[#allocation7 + $0x114] sm:$0xf]
    %v459 = vld [vmem:[#allocation7 + $0x118] sm:$0xff]
    %v460 = vld [vmem:[#allocation7 + $0x120] sm:$0xff]
    %v461 = vld [vmem:[#allocation7 + $0x128] sm:$0xff]
    %v462 = vld [vmem:[#allocation7 + $0x130] sm:$0xf]
    %v463 = vld [vmem:[#allocation7 + $0x134] sm:$0xff]
    %v464 = vld [vmem:[#allocation7 + $0x13c] sm:$0xff]
    %v465 = vld [vmem:[#allocation7 + $0x144] sm:$0xff]
    %v466 = vld [vmem:[#allocation7 + $0x14c] sm:$0xf]
    %v467 = vld [vmem:[#allocation7 + $0x150] sm:$0xff]
    %v468 = vld [vmem:[#allocation7 + $0x158] sm:$0xff]
    %v469 = vld [vmem:[#allocation7 + $0x160] sm:$0xff]
    %v470 = vld [vmem:[#allocation7 + $0x168] sm:$0xf]
    %v471 = vld [vmem:[#allocation7 + $0x16c] sm:$0xff]
    %v472 = vld [vmem:[#allocation7 + $0x174] sm:$0xff]
    %v473 = vld [vmem:[#allocation7 + $0x17c] sm:$0xff]
    %v474 = vld [vmem:[#allocation7 + $0x184] sm:$0xf]
    %v475 = vld [vmem:[#allocation7 + $0x188] sm:$0xff]
    %v476 = vld [vmem:[#allocation7 + $0x190] sm:$0xff]
    %v477 = vld [vmem:[#allocation7 + $0x198] sm:$0xff]
    %v478 = vld [vmem:[#allocation7 + $0x1a0] sm:$0xf]
    %v479 = vld [vmem:[#allocation7 + $0x1a4] sm:$0xff]
    %v480 = vld [vmem:[#allocation7 + $0x1ac] sm:$0xff]
    %v481 = vld [vmem:[#allocation7 + $0x1b4] sm:$0xff]
    %v482 = vld [vmem:[#allocation7 + $0x1bc] sm:$0xf]
    %v483 = vld [vmem:[#allocation7 + $0x1c0] sm:$0xff]
    %v484 = vld [vmem:[#allocation7 + $0x1c8] sm:$0xff]
    %v485 = vld [vmem:[#allocation7 + $0x1d0] sm:$0xff]
    %v486 = vld [vmem:[#allocation7 + $0x1d8] sm:$0xf]
    %v487 = vld [vmem:[#allocation7 + $0x1dc] sm:$0xff]
    %v488 = vld [vmem:[#allocation7 + $0x1e4] sm:$0xff]
    %v489 = vld [vmem:[#allocation7 + $0x1ec] sm:$0xff]
    %v490 = vld [vmem:[#allocation7 + $0x1f4] sm:$0xf]
    %v491 = vld [vmem:[#allocation7 + $0x1f8] sm:$0xff]
    %v492 = vld [vmem:[#allocation7 + $0x200] sm:$0xff]
    %v493 = vld [vmem:[#allocation7 + $0x208] sm:$0xff]
    %v494 = vld [vmem:[#allocation7 + $0x210] sm:$0xf]
    %v495 = vld [vmem:[#allocation7 + $0x214] sm:$0xff]
    %v496 = vld [vmem:[#allocation7 + $0x21c] sm:$0xff]
    %v497 = vld [vmem:[#allocation7 + $0x224] sm:$0xff]
    %v498 = vld [vmem:[#allocation7 + $0x22c] sm:$0xf]
    %v499 = vld [vmem:[#allocation7 + $0x230] sm:$0xff]
    %v500 = vld [vmem:[#allocation7 + $0x238] sm:$0xff]
    %v501 = vld [vmem:[#allocation7 + $0x240] sm:$0xff]
    %v502 = vld [vmem:[#allocation7 + $0x248] sm:$0xf]
    %v503 = vld [vmem:[#allocation7 + $0x24c] sm:$0xff]
    %v504 = vld [vmem:[#allocation7 + $0x254] sm:$0xff]
    %v505 = vld [vmem:[#allocation7 + $0x25c] sm:$0xff]
    %v506 = vld [vmem:[#allocation7 + $0x264] sm:$0xf]
    %v507 = vld [vmem:[#allocation7 + $0x268] sm:$0xff]
    %v508 = vld [vmem:[#allocation7 + $0x270] sm:$0xff]
    %v509 = vld [vmem:[#allocation7 + $0x278] sm:$0xff]
    %v510 = vld [vmem:[#allocation7 + $0x280] sm:$0xf]
    %v511 = vld [vmem:[#allocation7 + $0x284] sm:$0xff]
    %v512 = vld [vmem:[#allocation7 + $0x28c] sm:$0xff]
    %v513 = vld [vmem:[#allocation7 + $0x294] sm:$0xff]
    %v514 = vld [vmem:[#allocation7 + $0x29c] sm:$0xf]
    %v515 = vld [vmem:[#allocation7 + $0x2a0] sm:$0xff]
    %v516 = vld [vmem:[#allocation7 + $0x2a8] sm:$0xff]
    %v517 = vld [vmem:[#allocation7 + $0x2b0] sm:$0xff]
    %v518 = vld [vmem:[#allocation7 + $0x2b8] sm:$0xf]
    %v519 = vld [vmem:[#allocation7 + $0x2bc] sm:$0xff]
    %v520 = vld [vmem:[#allocation7 + $0x2c4] sm:$0xff]
    %v521 = vld [vmem:[#allocation7 + $0x2cc] sm:$0xff]
    %v522 = vld [vmem:[#allocation7 + $0x2d4] sm:$0xf]
    %v523 = vld [vmem:[#allocation7 + $0x2d8] sm:$0xff]
    %v524 = vld [vmem:[#allocation7 + $0x2e0] sm:$0xff]
    %v525 = vld [vmem:[#allocation7 + $0x2e8] sm:$0xff]
    %v526 = vld [vmem:[#allocation7 + $0x2f0] sm:$0xf]
    %v527 = vld [vmem:[#allocation7 + $0x2f4] sm:$0xff]
    %v528 = vld [vmem:[#allocation7 + $0x2fc] sm:$0xff]
    %v529 = vld [vmem:[#allocation7 + $0x304] sm:$0xff]
    %v530 = vld [vmem:[#allocation7 + $0x30c] sm:$0xf]
    %v531 = vld [vmem:[#allocation7 + $0x310] sm:$0xff]
    %v532 = vld [vmem:[#allocation7 + $0x318] sm:$0xff]
    %v533 = vld [vmem:[#allocation7 + $0x320] sm:$0xff]
    %v534 = vld [vmem:[#allocation7 + $0x328] sm:$0xf]
    %v535 = vld [vmem:[#allocation7 + $0x32c] sm:$0xff]
    %v536 = vld [vmem:[#allocation7 + $0x334] sm:$0xff]
    %v537 = vld [vmem:[#allocation7 + $0x33c] sm:$0xff]
    %v538 = vld [vmem:[#allocation7 + $0x344] sm:$0xf]
    %v539 = vld [vmem:[#allocation7 + $0x348] sm:$0xff]
    %v540 = vld [vmem:[#allocation7 + $0x350] sm:$0xff]
    %v541 = vld [vmem:[#allocation7 + $0x358] sm:$0xff]
    %v542 = vld [vmem:[#allocation7 + $0x360] sm:$0xf]
    %v543 = vld [vmem:[#allocation7 + $0x364] sm:$0xff]
    %v544 = vld [vmem:[#allocation7 + $0x36c] sm:$0xff]
    %v545 = vld [vmem:[#allocation7 + $0x374] sm:$0xff]
    %v546 = vld [vmem:[#allocation7 + $0x37c] sm:$0xf]
    %v547 = vld [vmem:[#allocation7 + $0x380] sm:$0xff]
    %v548 = vld [vmem:[#allocation7 + $0x388] sm:$0xff]
    %v549 = vld [vmem:[#allocation7 + $0x390] sm:$0xff]
    %v550 = vld [vmem:[#allocation7 + $0x398] sm:$0xf]
    %v551 = vld [vmem:[#allocation7 + $0x39c] sm:$0xff]
    %v552 = vld [vmem:[#allocation7 + $0x3a4] sm:$0xff]
    %v553 = vld [vmem:[#allocation7 + $0x3ac] sm:$0xff]
    %v554 = vld [vmem:[#allocation7 + $0x3b4] sm:$0xf]
    %v555 = vld [vmem:[#allocation7 + $0x3b8] sm:$0xff]
    %v556 = vld [vmem:[#allocation7 + $0x3c0] sm:$0xff]
    %v557 = vld [vmem:[#allocation7 + $0x3c8] sm:$0xff]
    %v558 = vld [vmem:[#allocation7 + $0x3d0] sm:$0xf]
    %v559 = vld [vmem:[#allocation7 + $0x3d4] sm:$0xff]
    %v560 = vld [vmem:[#allocation7 + $0x3dc] sm:$0xff]
    %v561 = vld [vmem:[#allocation7 + $0x3e4] sm:$0xff]
    %v562 = vld [vmem:[#allocation7 + $0x3ec] sm:$0xf]
    %v563 = vld [vmem:[#allocation7 + $0x3f0] sm:$0xff]
    %v564 = vld [vmem:[#allocation7 + $0x3f8] sm:$0xff]
    %v565 = vld [vmem:[#allocation7 + $0x400] sm:$0xff]
    %v566 = vld [vmem:[#allocation7 + $0x408] sm:$0xf]
    %v567 = vld [vmem:[#allocation7 + $0x40c] sm:$0xff]
    %v568 = vld [vmem:[#allocation7 + $0x414] sm:$0xff]
    %v569 = vld [vmem:[#allocation7 + $0x41c] sm:$0xff]
    %v570 = vld [vmem:[#allocation7 + $0x424] sm:$0xf]
    %v571 = vld [vmem:[#allocation7 + $0x428] sm:$0xff]
    %v572 = vld [vmem:[#allocation7 + $0x430] sm:$0xff]
    %v573 = vld [vmem:[#allocation7 + $0x438] sm:$0xff]
    %v574 = vld [vmem:[#allocation7 + $0x440] sm:$0xf]
    %v575 = vld [vmem:[#allocation7 + $0x444] sm:$0xff]
    %v576 = vld [vmem:[#allocation7 + $0x44c] sm:$0xff]
    %v577 = vld [vmem:[#allocation7 + $0x454] sm:$0xff]
    %v578 = vld [vmem:[#allocation7 + $0x45c] sm:$0xf]
    %v579 = vld [vmem:[#allocation7 + $0x460] sm:$0xff]
    %v580 = vld [vmem:[#allocation7 + $0x468] sm:$0xff]
    %v581 = vld [vmem:[#allocation7 + $0x470] sm:$0xff]
    %v582 = vld [vmem:[#allocation7 + $0x478] sm:$0xf]
    %v583 = vld [vmem:[#allocation7 + $0x47c] sm:$0xff]
    %v584 = vld [vmem:[#allocation7 + $0x484] sm:$0xff]
    %v585 = vld [vmem:[#allocation7 + $0x48c] sm:$0xff]
    %v586 = vld [vmem:[#allocation7 + $0x494] sm:$0xf]
    %v587 = vld [vmem:[#allocation7 + $0x498] sm:$0xff]
    %v588 = vld [vmem:[#allocation7 + $0x4a0] sm:$0xff]
    %v589 = vld [vmem:[#allocation7 + $0x4a8] sm:$0xff]
    %v590 = vld [vmem:[#allocation7 + $0x4b0] sm:$0xf]
    %v591 = vld [vmem:[#allocation7 + $0x4b4] sm:$0xff]
    %v592 = vld [vmem:[#allocation7 + $0x4bc] sm:$0xff]
    %v593 = vld [vmem:[#allocation7 + $0x4c4] sm:$0xff]
    %v594 = vld [vmem:[#allocation7 + $0x4cc] sm:$0xf]
    %v595 = vld [vmem:[#allocation7 + $0x4d0] sm:$0xff]
    %v596 = vld [vmem:[#allocation7 + $0x4d8] sm:$0xff]
    %v597 = vld [vmem:[#allocation7 + $0x4e0] sm:$0xff]
    %v598 = vld [vmem:[#allocation7 + $0x4e8] sm:$0xf]
    %v599 = vld [vmem:[#allocation7 + $0x4ec] sm:$0xff]
    %v600 = vld [vmem:[#allocation7 + $0x4f4] sm:$0xff]
    %v601 = vld [vmem:[#allocation7 + $0x4fc] sm:$0xff]
    %v602 = vld [vmem:[#allocation7 + $0x504] sm:$0xf]
    %v603 = vld [vmem:[#allocation7 + $0x508] sm:$0xff]
    %v604 = vld [vmem:[#allocation7 + $0x510] sm:$0xff]
    %v605 = vld [vmem:[#allocation7 + $0x518] sm:$0xff]
    %v606 = vld [vmem:[#allocation7 + $0x520] sm:$0xf]
    %v607 = vld [vmem:[#allocation7 + $0x524] sm:$0xff]
    %v608 = vld [vmem:[#allocation7 + $0x52c] sm:$0xff]
    %v609 = vld [vmem:[#allocation7 + $0x534] sm:$0xff]
    %v610 = vld [vmem:[#allocation7 + $0x53c] sm:$0xf]
    %v611 = vld [vmem:[#allocation7 + $0x540] sm:$0xff]
    %v612 = vld [vmem:[#allocation7 + $0x548] sm:$0xff]
    %v613 = vld [vmem:[#allocation7 + $0x550] sm:$0xff]
    %v614 = vld [vmem:[#allocation7 + $0x558] sm:$0xf]
    %v615 = vld [vmem:[#allocation7 + $0x55c] sm:$0xff]
    %v616 = vld [vmem:[#allocation7 + $0x564] sm:$0xff]
    %v617 = vld [vmem:[#allocation7 + $0x56c] sm:$0xff]
    %v618 = vld [vmem:[#allocation7 + $0x574] sm:$0xf]
    %v619 = vld [vmem:[#allocation7 + $0x578] sm:$0xff]
    %v620 = vld [vmem:[#allocation7 + $0x580] sm:$0xff]
    %v621 = vld [vmem:[#allocation7 + $0x588] sm:$0xff]
    %v622 = vld [vmem:[#allocation7 + $0x590] sm:$0xf]
    %v623 = vld [vmem:[#allocation7 + $0x594] sm:$0xff]
    %v624 = vld [vmem:[#allocation7 + $0x59c] sm:$0xff]
    %v625 = vld [vmem:[#allocation7 + $0x5a4] sm:$0xff]
    %v626 = vld [vmem:[#allocation7 + $0x5ac] sm:$0xf]
    %v627 = vld [vmem:[#allocation7 + $0x5b0] sm:$0xff]
    %v628 = vld [vmem:[#allocation7 + $0x5b8] sm:$0xff]
    %v629 = vld [vmem:[#allocation7 + $0x5c0] sm:$0xff]
    %v630 = vld [vmem:[#allocation7 + $0x5c8] sm:$0xf]
    %v631 = vld [vmem:[#allocation7 + $0x5cc] sm:$0xff]
    %v632 = vld [vmem:[#allocation7 + $0x5d4] sm:$0xff]
    %v633 = vld [vmem:[#allocation7 + $0x5dc] sm:$0xff]
    %v634 = vld [vmem:[#allocation7 + $0x5e4] sm:$0xf]
    %v635 = vld [vmem:[#allocation7 + $0x5e8] sm:$0xff]
    %v636 = vld [vmem:[#allocation7 + $0x5f0] sm:$0xff]
    %v637 = vld [vmem:[#allocation7 + $0x5f8] sm:$0xff]
    %v638 = vld [vmem:[#allocation7 + $0x600] sm:$0xf]
    %v639 = vld [vmem:[#allocation7 + $0x604] sm:$0xff]
    %v640 = vld [vmem:[#allocation7 + $0x60c] sm:$0xff]
    %v641 = vld [vmem:[#allocation7 + $0x614] sm:$0xff]
    %v642 = vld [vmem:[#allocation7 + $0x61c] sm:$0xf]
    %v643 = vld [vmem:[#allocation7 + $0x620] sm:$0xff]
    %v644 = vld [vmem:[#allocation7 + $0x628] sm:$0xff]
    %v645 = vld [vmem:[#allocation7 + $0x630] sm:$0xff]
    %v646 = vld [vmem:[#allocation7 + $0x638] sm:$0xf]
    %v647 = vld [vmem:[#allocation7 + $0x63c] sm:$0xff]
    %v648 = vld [vmem:[#allocation7 + $0x644] sm:$0xff]
    %v649 = vld [vmem:[#allocation7 + $0x64c] sm:$0xff]
    %v650 = vld [vmem:[#allocation7 + $0x654] sm:$0xf]
    %v651 = vld [vmem:[#allocation7 + $0x658] sm:$0xff]
    %v652 = vld [vmem:[#allocation7 + $0x660] sm:$0xff]
    %v653 = vld [vmem:[#allocation7 + $0x668] sm:$0xff]
    %v654 = vld [vmem:[#allocation7 + $0x670] sm:$0xf]
    %v655 = vld [vmem:[#allocation7 + $0x674] sm:$0xff]
    %v656 = vld [vmem:[#allocation7 + $0x67c] sm:$0xff]
    %v657 = vld [vmem:[#allocation7 + $0x684] sm:$0xff]
    %v658 = vld [vmem:[#allocation7 + $0x68c] sm:$0xf]
    %v659 = vld [vmem:[#allocation7 + $0x690] sm:$0xff]
    %v660 = vld [vmem:[#allocation7 + $0x698] sm:$0xff]
    %v661 = vld [vmem:[#allocation7 + $0x6a0] sm:$0xff]
    %v662 = vld [vmem:[#allocation7 + $0x6a8] sm:$0xf]
    %v663 = vld [vmem:[#allocation7 + $0x6ac] sm:$0xff]
    %v664 = vld [vmem:[#allocation7 + $0x6b4] sm:$0xff]
    %v665 = vld [vmem:[#allocation7 + $0x6bc] sm:$0xff]
    %v666 = vld [vmem:[#allocation7 + $0x6c4] sm:$0xf]
    %v667 = vld [vmem:[#allocation7 + $0x6c8] sm:$0xff]
    %v668 = vld [vmem:[#allocation7 + $0x6d0] sm:$0xff]
    %v669 = vld [vmem:[#allocation7 + $0x6d8] sm:$0xff]
    %v670 = vld [vmem:[#allocation7 + $0x6e0] sm:$0xf]
    %v671 = vld [vmem:[#allocation7 + $0x6e4] sm:$0xff]
    %v672 = vld [vmem:[#allocation7 + $0x6ec] sm:$0xff]
    %v673 = vld [vmem:[#allocation7 + $0x6f4] sm:$0xff]
    %v674 = vld [vmem:[#allocation7 + $0x6fc] sm:$0xf]
    %v675 = vld [vmem:[#allocation7 + $0x700] sm:$0xff]
    %v676 = vld [vmem:[#allocation7 + $0x708] sm:$0xff]
    %v677 = vld [vmem:[#allocation7 + $0x710] sm:$0xff]
    %v678 = vld [vmem:[#allocation7 + $0x718] sm:$0xf]
    %v679 = vld [vmem:[#allocation7 + $0x71c] sm:$0xff]
    %v680 = vld [vmem:[#allocation7 + $0x724] sm:$0xff]
    %v681 = vld [vmem:[#allocation7 + $0x72c] sm:$0xff]
    %v682 = vld [vmem:[#allocation7 + $0x734] sm:$0xf]
    %v683 = vld [vmem:[#allocation7 + $0x738] sm:$0xff]
    %v684 = vld [vmem:[#allocation7 + $0x740] sm:$0xff]
    %v685 = vld [vmem:[#allocation7 + $0x748] sm:$0xff]
    %v686 = vld [vmem:[#allocation7 + $0x750] sm:$0xf]
    %v687 = vld [vmem:[#allocation7 + $0x754] sm:$0xff]
    %v688 = vld [vmem:[#allocation7 + $0x75c] sm:$0xff]
    %v689 = vld [vmem:[#allocation7 + $0x764] sm:$0xff]
    %v690 = vld [vmem:[#allocation7 + $0x76c] sm:$0xf]
    %v691 = vld [vmem:[#allocation7 + $0x770] sm:$0xff]
    %v692 = vld [vmem:[#allocation7 + $0x778] sm:$0xff]
    %v693 = vld [vmem:[#allocation7 + $0x780] sm:$0xff]
    %v694 = vld [vmem:[#allocation7 + $0x788] sm:$0xf]
    %v695 = vld [vmem:[#allocation7 + $0x78c] sm:$0xff]
    %v696 = vld [vmem:[#allocation7 + $0x794] sm:$0xff]
    %v697 = vld [vmem:[#allocation7 + $0x79c] sm:$0xff]
    %v698 = vld [vmem:[#allocation7 + $0x7a4] sm:$0xf]
    %v699 = vld [vmem:[#allocation7 + $0x7a8] sm:$0xff]
    %v700 = vld [vmem:[#allocation7 + $0x7b0] sm:$0xff]
    %v701 = vld [vmem:[#allocation7 + $0x7b8] sm:$0xff]
    %v702 = vld [vmem:[#allocation7 + $0x7c0] sm:$0xf]
    %v703 = vld [vmem:[#allocation7 + $0x7c4] sm:$0xff]
    %v704 = vld [vmem:[#allocation7 + $0x7cc] sm:$0xff]
    %v705 = vld [vmem:[#allocation7 + $0x7d4] sm:$0xff]
    %v706 = vld [vmem:[#allocation7 + $0x7dc] sm:$0xf]
    %v707 = vld [vmem:[#allocation7 + $0x7e0] sm:$0xff]
    %v708 = vld [vmem:[#allocation7 + $0x7e8] sm:$0xff]
    %v709 = vld [vmem:[#allocation7 + $0x7f0] sm:$0xff]
    %v710 = vld [vmem:[#allocation7 + $0x7f8] sm:$0xf]
    %v711 = vld [vmem:[#allocation7 + $0x7fc] sm:$0xff]
    %v712 = vld [vmem:[#allocation7 + $0x804] sm:$0xff]
    %v713 = vld [vmem:[#allocation7 + $0x80c] sm:$0xff]
    %v714 = vld [vmem:[#allocation7 + $0x814] sm:$0xf]
    %v715 = vld [vmem:[#allocation7 + $0x818] sm:$0xff]
    %v716 = vld [vmem:[#allocation7 + $0x820] sm:$0xff]
    %v717 = vld [vmem:[#allocation7 + $0x828] sm:$0xff]
    %v718 = vld [vmem:[#allocation7 + $0x830] sm:$0xf]
    %v719 = vld [vmem:[#allocation7 + $0x834] sm:$0xff]
    %v720 = vld [vmem:[#allocation7 + $0x83c] sm:$0xff]
    %v721 = vld [vmem:[#allocation7 + $0x844] sm:$0xff]
    %v722 = vld [vmem:[#allocation7 + $0x84c] sm:$0xf]
    %v723 = vld [vmem:[#allocation7 + $0x850] sm:$0xff]
    %v724 = vld [vmem:[#allocation7 + $0x858] sm:$0xff]
    %v725 = vld [vmem:[#allocation7 + $0x860] sm:$0xff]
    %v726 = vld [vmem:[#allocation7 + $0x868] sm:$0xf]
    %v727 = vld [vmem:[#allocation7 + $0x86c] sm:$0xff]
    %v728 = vld [vmem:[#allocation7 + $0x874] sm:$0xff]
    %v729 = vld [vmem:[#allocation7 + $0x87c] sm:$0xff]
    %v730 = vld [vmem:[#allocation7 + $0x884] sm:$0xf]
    %v731 = vld [vmem:[#allocation7 + $0x888] sm:$0xff]
    %v732 = vld [vmem:[#allocation7 + $0x890] sm:$0xff]
    %v733 = vld [vmem:[#allocation7 + $0x898] sm:$0xff]
    %v734 = vld [vmem:[#allocation7 + $0x8a0] sm:$0xf]
    %v735 = vld [vmem:[#allocation7 + $0x8a4] sm:$0xff]
    %v736 = vld [vmem:[#allocation7 + $0x8ac] sm:$0xff]
    %v737 = vld [vmem:[#allocation7 + $0x8b4] sm:$0xff]
    %v738 = vld [vmem:[#allocation7 + $0x8bc] sm:$0xf]
    %v739 = vld [vmem:[#allocation7 + $0x8c0] sm:$0xff]
    %v740 = vld [vmem:[#allocation7 + $0x8c8] sm:$0xff]
    %v741 = vld [vmem:[#allocation7 + $0x8d0] sm:$0xff]
    %v742 = vld [vmem:[#allocation7 + $0x8d8] sm:$0xf]
    %v743 = vld [vmem:[#allocation7 + $0x8dc] sm:$0xff]
    %v744 = vld [vmem:[#allocation7 + $0x8e4] sm:$0xff]
    %v745 = vld [vmem:[#allocation7 + $0x8ec] sm:$0xff]
    %v746 = vld [vmem:[#allocation7 + $0x8f4] sm:$0xf]
    %v747 = vld [vmem:[#allocation7 + $0x8f8] sm:$0xff]
    %v748 = vld [vmem:[#allocation7 + $0x900] sm:$0xff]
    %v749 = vld [vmem:[#allocation7 + $0x908] sm:$0xff]
    %v750 = vld [vmem:[#allocation7 + $0x910] sm:$0xf]
    %v751 = vld [vmem:[#allocation7 + $0x914] sm:$0xff]
    %v752 = vld [vmem:[#allocation7 + $0x91c] sm:$0xff]
    %v753 = vld [vmem:[#allocation7 + $0x924] sm:$0xff]
    %v754 = vld [vmem:[#allocation7 + $0x92c] sm:$0xf]
    %v755 = vld [vmem:[#allocation7 + $0x930] sm:$0xff]
    %v756 = vld [vmem:[#allocation7 + $0x938] sm:$0xff]
    %v757 = vld [vmem:[#allocation7 + $0x940] sm:$0xff]
    %v758 = vld [vmem:[#allocation7 + $0x948] sm:$0xf]
    %v759 = vld [vmem:[#allocation7 + $0x94c] sm:$0xff]
    %v760 = vld [vmem:[#allocation7 + $0x954] sm:$0xff]
    %v761 = vld [vmem:[#allocation7 + $0x95c] sm:$0xff]
    %v762 = vld [vmem:[#allocation7 + $0x964] sm:$0xf]
    %v763 = vld [vmem:[#allocation7 + $0x968] sm:$0xff]
    %v764 = vld [vmem:[#allocation7 + $0x970] sm:$0xff]
    %v765 = vld [vmem:[#allocation7 + $0x978] sm:$0xff]
    %v766 = vld [vmem:[#allocation7 + $0x980] sm:$0xf]
    %v767 = vld [vmem:[#allocation7 + $0x984] sm:$0xff]
    %v768 = vld [vmem:[#allocation7 + $0x98c] sm:$0xff]
    %v769 = vld [vmem:[#allocation7 + $0x994] sm:$0xff]
    %v770 = vld [vmem:[#allocation7 + $0x99c] sm:$0xf]
    %v771 = vld [vmem:[#allocation7 + $0x9a0] sm:$0xff]
    %v772 = vld [vmem:[#allocation7 + $0x9a8] sm:$0xff]
    %v773 = vld [vmem:[#allocation7 + $0x9b0] sm:$0xff]
    %v774 = vld [vmem:[#allocation7 + $0x9b8] sm:$0xf]
    %v775 = vld [vmem:[#allocation7 + $0x9bc] sm:$0xff]
    %v776 = vld [vmem:[#allocation7 + $0x9c4] sm:$0xff]
    %v777 = vld [vmem:[#allocation7 + $0x9cc] sm:$0xff]
    %v778 = vld [vmem:[#allocation7 + $0x9d4] sm:$0xf]
    %v779 = vld [vmem:[#allocation7 + $0x9d8] sm:$0xff]
    %v780 = vld [vmem:[#allocation7 + $0x9e0] sm:$0xff]
    %v781 = vld [vmem:[#allocation7 + $0x9e8] sm:$0xff]
    %v782 = vld [vmem:[#allocation7 + $0x9f0] sm:$0xf]
    %v783 = vld [vmem:[#allocation7 + $0x9f4] sm:$0xff]
    %v784 = vld [vmem:[#allocation7 + $0x9fc] sm:$0xff]
    %v785 = vld [vmem:[#allocation7 + $0xa04] sm:$0xff]
    %v786 = vld [vmem:[#allocation7 + $0xa0c] sm:$0xf]
    %v787 = vld [vmem:[#allocation7 + $0xa10] sm:$0xff]
    %v788 = vld [vmem:[#allocation7 + $0xa18] sm:$0xff]
    %v789 = vld [vmem:[#allocation7 + $0xa20] sm:$0xff]
    %v790 = vld [vmem:[#allocation7 + $0xa28] sm:$0xf]
    %v791 = vld [vmem:[#allocation7 + $0xa2c] sm:$0xff]
    %v792 = vld [vmem:[#allocation7 + $0xa34] sm:$0xff]
    %v793 = vld [vmem:[#allocation7 + $0xa3c] sm:$0xff]
    %v794 = vld [vmem:[#allocation7 + $0xa44] sm:$0xf]
    %v795 = vld [vmem:[#allocation7 + $0xa48] sm:$0xff]
    %v796 = vld [vmem:[#allocation7 + $0xa50] sm:$0xff]
    %v797 = vld [vmem:[#allocation7 + $0xa58] sm:$0xff]
    %v798 = vld [vmem:[#allocation7 + $0xa60] sm:$0xf]
    %v799 = vld [vmem:[#allocation7 + $0xa64] sm:$0xff]
    %v800 = vld [vmem:[#allocation7 + $0xa6c] sm:$0xff]
    %v801 = vld [vmem:[#allocation7 + $0xa74] sm:$0xff]
    %v802 = vld [vmem:[#allocation7 + $0xa7c] sm:$0xf]
    %v803 = vld [vmem:[#allocation7 + $0xa80] sm:$0xff]
    %v804 = vld [vmem:[#allocation7 + $0xa88] sm:$0xff]
    %v805 = vld [vmem:[#allocation7 + $0xa90] sm:$0xff]
    %v806 = vld [vmem:[#allocation7 + $0xa98] sm:$0xf]
    %v807 = vld [vmem:[#allocation7 + $0xa9c] sm:$0xff]
    %v808 = vld [vmem:[#allocation7 + $0xaa4] sm:$0xff]
    %v809 = vld [vmem:[#allocation7 + $0xaac] sm:$0xff]
    %v810 = vld [vmem:[#allocation7 + $0xab4] sm:$0xf]
    %v811 = vld [vmem:[#allocation7 + $0xab8] sm:$0xff]
    %v812 = vld [vmem:[#allocation7 + $0xac0] sm:$0xff]
    %v813 = vld [vmem:[#allocation7 + $0xac8] sm:$0xff]
    %v814 = vld [vmem:[#allocation7 + $0xad0] sm:$0xf]
    %v815 = vld [vmem:[#allocation7 + $0xad4] sm:$0xff]
    %v816 = vld [vmem:[#allocation7 + $0xadc] sm:$0xff]
    %v817 = vld [vmem:[#allocation7 + $0xae4] sm:$0xff]
    %v818 = vld [vmem:[#allocation7 + $0xaec] sm:$0xf]
    %v820 = vlaneseq
    %v821 = vshrl.u32 %v820, 7
    %v822 = vsub.s32 0, %v821
    %v823 = vrot.slane %v108, %v822
    %v824 = vlaneseq
    %v825 = vshrl.u32 %v824, 7
    %v826 = vsub.s32 1, %v825
    %v827 = vrot.slane %v108, %v826
    %v828 = vlaneseq
    %v829 = vshrl.u32 %v828, 7
    %v830 = vsub.s32 2, %v829
    %v831 = vrot.slane %v108, %v830
    %v832 = vlaneseq
    %v833 = vshrl.u32 %v832, 7
    %v834 = vsub.s32 3, %v833
    %v835 = vrot.slane %v108, %v834
    %v836 = vlaneseq
    %v837 = vshrl.u32 %v836, 7
    %v838 = vsub.s32 4, %v837
    %v839 = vrot.slane %v108, %v838
    %v840 = vlaneseq
    %v841 = vshrl.u32 %v840, 7
    %v842 = vsub.s32 5, %v841
    %v843 = vrot.slane %v108, %v842
    %v844 = vlaneseq
    %v845 = vshrl.u32 %v844, 7
    %v846 = vsub.s32 6, %v845
    %v847 = vrot.slane %v108, %v846
    %v1255 = vunpack.c.l.b16 %v419
    %v1256 = vunpack.c.h.b16 %v419
    %v1257 = vunpack.c.l.b16 %v420
    %v1258 = vunpack.c.h.b16 %v420
    %v1259 = vunpack.c.l.b16 %v421
    %v1260 = vunpack.c.h.b16 %v421
    %v1261 = vunpack.c.l.b16 %v422
    %v1262 = vunpack.c.l.b16 %v423
    %v1263 = vunpack.c.h.b16 %v423
    %v1264 = vunpack.c.l.b16 %v424
    %v1265 = vunpack.c.h.b16 %v424
    %v1266 = vunpack.c.l.b16 %v425
    %v1267 = vunpack.c.h.b16 %v425
    %v1268 = vunpack.c.l.b16 %v426
    %v1269 = vunpack.c.l.b16 %v427
    %v1270 = vunpack.c.h.b16 %v427
    %v1271 = vunpack.c.l.b16 %v428
    %v1272 = vunpack.c.h.b16 %v428
    %v1273 = vunpack.c.l.b16 %v429
    %v1274 = vunpack.c.h.b16 %v429
    %v1275 = vunpack.c.l.b16 %v430
    %v1276 = vunpack.c.l.b16 %v431
    %v1277 = vunpack.c.h.b16 %v431
    %v1278 = vunpack.c.l.b16 %v432
    %v1279 = vunpack.c.h.b16 %v432
    %v1280 = vunpack.c.l.b16 %v433
    %v1281 = vunpack.c.h.b16 %v433
    %v1282 = vunpack.c.l.b16 %v434
    %v1283 = vunpack.c.l.b16 %v435
    %v1284 = vunpack.c.h.b16 %v435
    %v1285 = vunpack.c.l.b16 %v436
    %v1286 = vunpack.c.h.b16 %v436
    %v1287 = vunpack.c.l.b16 %v437
    %v1288 = vunpack.c.h.b16 %v437
    %v1289 = vunpack.c.l.b16 %v438
    %v1290 = vunpack.c.l.b16 %v439
    %v1291 = vunpack.c.h.b16 %v439
    %v1292 = vunpack.c.l.b16 %v440
    %v1293 = vunpack.c.h.b16 %v440
    %v1294 = vunpack.c.l.b16 %v441
    %v1295 = vunpack.c.h.b16 %v441
    %v1296 = vunpack.c.l.b16 %v442
    %v1297 = vunpack.c.l.b16 %v443
    %v1298 = vunpack.c.h.b16 %v443
    %v1299 = vunpack.c.l.b16 %v444
    %v1300 = vunpack.c.h.b16 %v444
    %v1301 = vunpack.c.l.b16 %v445
    %v1302 = vunpack.c.h.b16 %v445
    %v1303 = vunpack.c.l.b16 %v446
    %v1304 = vunpack.c.l.b16 %v447
    %v1305 = vunpack.c.h.b16 %v447
    %v1306 = vunpack.c.l.b16 %v448
    %v1307 = vunpack.c.h.b16 %v448
    %v1308 = vunpack.c.l.b16 %v449
    %v1309 = vunpack.c.h.b16 %v449
    %v1310 = vunpack.c.l.b16 %v450
    %v1311 = vunpack.c.l.b16 %v451
    %v1312 = vunpack.c.h.b16 %v451
    %v1313 = vunpack.c.l.b16 %v452
    %v1314 = vunpack.c.h.b16 %v452
    %v1315 = vunpack.c.l.b16 %v453
    %v1316 = vunpack.c.h.b16 %v453
    %v1317 = vunpack.c.l.b16 %v454
    %v1318 = vunpack.c.l.b16 %v455
    %v1319 = vunpack.c.h.b16 %v455
    %v1320 = vunpack.c.l.b16 %v456
    %v1321 = vunpack.c.h.b16 %v456
    %v1322 = vunpack.c.l.b16 %v457
    %v1323 = vunpack.c.h.b16 %v457
    %v1324 = vunpack.c.l.b16 %v458
    %v1325 = vunpack.c.l.b16 %v459
    %v1326 = vunpack.c.h.b16 %v459
    %v1327 = vunpack.c.l.b16 %v460
    %v1328 = vunpack.c.h.b16 %v460
    %v1329 = vunpack.c.l.b16 %v461
    %v1330 = vunpack.c.h.b16 %v461
    %v1331 = vunpack.c.l.b16 %v462
    %v1332 = vunpack.c.l.b16 %v463
    %v1333 = vunpack.c.h.b16 %v463
    %v1334 = vunpack.c.l.b16 %v464
    %v1335 = vunpack.c.h.b16 %v464
    %v1336 = vunpack.c.l.b16 %v465
    %v1337 = vunpack.c.h.b16 %v465
    %v1338 = vunpack.c.l.b16 %v466
    %v1339 = vunpack.c.l.b16 %v467
    %v1340 = vunpack.c.h.b16 %v467
    %v1341 = vunpack.c.l.b16 %v468
    %v1342 = vunpack.c.h.b16 %v468
    %v1343 = vunpack.c.l.b16 %v469
    %v1344 = vunpack.c.h.b16 %v469
    %v1345 = vunpack.c.l.b16 %v470
    %v1346 = vunpack.c.l.b16 %v471
    %v1347 = vunpack.c.h.b16 %v471
    %v1348 = vunpack.c.l.b16 %v472
    %v1349 = vunpack.c.h.b16 %v472
    %v1350 = vunpack.c.l.b16 %v473
    %v1351 = vunpack.c.h.b16 %v473
    %v1352 = vunpack.c.l.b16 %v474
    %v1353 = vunpack.c.l.b16 %v475
    %v1354 = vunpack.c.h.b16 %v475
    %v1355 = vunpack.c.l.b16 %v476
    %v1356 = vunpack.c.h.b16 %v476
    %v1357 = vunpack.c.l.b16 %v477
    %v1358 = vunpack.c.h.b16 %v477
    %v1359 = vunpack.c.l.b16 %v478
    %v1360 = vunpack.c.l.b16 %v479
    %v1361 = vunpack.c.h.b16 %v479
    %v1362 = vunpack.c.l.b16 %v480
    %v1363 = vunpack.c.h.b16 %v480
    %v1364 = vunpack.c.l.b16 %v481
    %v1365 = vunpack.c.h.b16 %v481
    %v1366 = vunpack.c.l.b16 %v482
    %v1367 = vunpack.c.l.b16 %v483
    %v1368 = vunpack.c.h.b16 %v483
    %v1369 = vunpack.c.l.b16 %v484
    %v1370 = vunpack.c.h.b16 %v484
    %v1371 = vunpack.c.l.b16 %v485
    %v1372 = vunpack.c.h.b16 %v485
    %v1373 = vunpack.c.l.b16 %v486
    %v1374 = vunpack.c.l.b16 %v487
    %v1375 = vunpack.c.h.b16 %v487
    %v1376 = vunpack.c.l.b16 %v488
    %v1377 = vunpack.c.h.b16 %v488
    %v1378 = vunpack.c.l.b16 %v489
    %v1379 = vunpack.c.h.b16 %v489
    %v1380 = vunpack.c.l.b16 %v490
    %v1381 = vunpack.c.l.b16 %v491
    %v1382 = vunpack.c.h.b16 %v491
    %v1383 = vunpack.c.l.b16 %v492
    %v1384 = vunpack.c.h.b16 %v492
    %v1385 = vunpack.c.l.b16 %v493
    %v1386 = vunpack.c.h.b16 %v493
    %v1387 = vunpack.c.l.b16 %v494
    %v1388 = vunpack.c.l.b16 %v495
    %v1389 = vunpack.c.h.b16 %v495
    %v1390 = vunpack.c.l.b16 %v496
    %v1391 = vunpack.c.h.b16 %v496
    %v1392 = vunpack.c.l.b16 %v497
    %v1393 = vunpack.c.h.b16 %v497
    %v1394 = vunpack.c.l.b16 %v498
    %v1395 = vunpack.c.l.b16 %v499
    %v1396 = vunpack.c.h.b16 %v499
    %v1397 = vunpack.c.l.b16 %v500
    %v1398 = vunpack.c.h.b16 %v500
    %v1399 = vunpack.c.l.b16 %v501
    %v1400 = vunpack.c.h.b16 %v501
    %v1401 = vunpack.c.l.b16 %v502
    %v1402 = vunpack.c.l.b16 %v503
    %v1403 = vunpack.c.h.b16 %v503
    %v1404 = vunpack.c.l.b16 %v504
    %v1405 = vunpack.c.h.b16 %v504
    %v1406 = vunpack.c.l.b16 %v505
    %v1407 = vunpack.c.h.b16 %v505
    %v1408 = vunpack.c.l.b16 %v506
    %v1409 = vunpack.c.l.b16 %v507
    %v1410 = vunpack.c.h.b16 %v507
    %v1411 = vunpack.c.l.b16 %v508
    %v1412 = vunpack.c.h.b16 %v508
    %v1413 = vunpack.c.l.b16 %v509
    %v1414 = vunpack.c.h.b16 %v509
    %v1415 = vunpack.c.l.b16 %v510
    %v1416 = vunpack.c.l.b16 %v511
    %v1417 = vunpack.c.h.b16 %v511
    %v1418 = vunpack.c.l.b16 %v512
    %v1419 = vunpack.c.h.b16 %v512
    %v1420 = vunpack.c.l.b16 %v513
    %v1421 = vunpack.c.h.b16 %v513
    %v1422 = vunpack.c.l.b16 %v514
    %v1423 = vunpack.c.l.b16 %v515
    %v1424 = vunpack.c.h.b16 %v515
    %v1425 = vunpack.c.l.b16 %v516
    %v1426 = vunpack.c.h.b16 %v516
    %v1427 = vunpack.c.l.b16 %v517
    %v1428 = vunpack.c.h.b16 %v517
    %v1429 = vunpack.c.l.b16 %v518
    %v1430 = vunpack.c.l.b16 %v519
    %v1431 = vunpack.c.h.b16 %v519
    %v1432 = vunpack.c.l.b16 %v520
    %v1433 = vunpack.c.h.b16 %v520
    %v1434 = vunpack.c.l.b16 %v521
    %v1435 = vunpack.c.h.b16 %v521
    %v1436 = vunpack.c.l.b16 %v522
    %v1437 = vunpack.c.l.b16 %v523
    %v1438 = vunpack.c.h.b16 %v523
    %v1439 = vunpack.c.l.b16 %v524
    %v1440 = vunpack.c.h.b16 %v524
    %v1441 = vunpack.c.l.b16 %v525
    %v1442 = vunpack.c.h.b16 %v525
    %v1443 = vunpack.c.l.b16 %v526
    %v1444 = vunpack.c.l.b16 %v527
    %v1445 = vunpack.c.h.b16 %v527
    %v1446 = vunpack.c.l.b16 %v528
    %v1447 = vunpack.c.h.b16 %v528
    %v1448 = vunpack.c.l.b16 %v529
    %v1449 = vunpack.c.h.b16 %v529
    %v1450 = vunpack.c.l.b16 %v530
    %v1451 = vunpack.c.l.b16 %v531
    %v1452 = vunpack.c.h.b16 %v531
    %v1453 = vunpack.c.l.b16 %v532
    %v1454 = vunpack.c.h.b16 %v532
    %v1455 = vunpack.c.l.b16 %v533
    %v1456 = vunpack.c.h.b16 %v533
    %v1457 = vunpack.c.l.b16 %v534
    %v1458 = vunpack.c.l.b16 %v535
    %v1459 = vunpack.c.h.b16 %v535
    %v1460 = vunpack.c.l.b16 %v536
    %v1461 = vunpack.c.h.b16 %v536
    %v1462 = vunpack.c.l.b16 %v537
    %v1463 = vunpack.c.h.b16 %v537
    %v1464 = vunpack.c.l.b16 %v538
    %v1465 = vunpack.c.l.b16 %v539
    %v1466 = vunpack.c.h.b16 %v539
    %v1467 = vunpack.c.l.b16 %v540
    %v1468 = vunpack.c.h.b16 %v540
    %v1469 = vunpack.c.l.b16 %v541
    %v1470 = vunpack.c.h.b16 %v541
    %v1471 = vunpack.c.l.b16 %v542
    %v1472 = vunpack.c.l.b16 %v543
    %v1473 = vunpack.c.h.b16 %v543
    %v1474 = vunpack.c.l.b16 %v544
    %v1475 = vunpack.c.h.b16 %v544
    %v1476 = vunpack.c.l.b16 %v545
    %v1477 = vunpack.c.h.b16 %v545
    %v1478 = vunpack.c.l.b16 %v546
    %v1479 = vunpack.c.l.b16 %v547
    %v1480 = vunpack.c.h.b16 %v547
    %v1481 = vunpack.c.l.b16 %v548
    %v1482 = vunpack.c.h.b16 %v548
    %v1483 = vunpack.c.l.b16 %v549
    %v1484 = vunpack.c.h.b16 %v549
    %v1485 = vunpack.c.l.b16 %v550
    %v1486 = vunpack.c.l.b16 %v551
    %v1487 = vunpack.c.h.b16 %v551
    %v1488 = vunpack.c.l.b16 %v552
    %v1489 = vunpack.c.h.b16 %v552
    %v1490 = vunpack.c.l.b16 %v553
    %v1491 = vunpack.c.h.b16 %v553
    %v1492 = vunpack.c.l.b16 %v554
    %v1493 = vunpack.c.l.b16 %v555
    %v1494 = vunpack.c.h.b16 %v555
    %v1495 = vunpack.c.l.b16 %v556
    %v1496 = vunpack.c.h.b16 %v556
    %v1497 = vunpack.c.l.b16 %v557
    %v1498 = vunpack.c.h.b16 %v557
    %v1499 = vunpack.c.l.b16 %v558
    %v1500 = vunpack.c.l.b16 %v559
    %v1501 = vunpack.c.h.b16 %v559
    %v1502 = vunpack.c.l.b16 %v560
    %v1503 = vunpack.c.h.b16 %v560
    %v1504 = vunpack.c.l.b16 %v561
    %v1505 = vunpack.c.h.b16 %v561
    %v1506 = vunpack.c.l.b16 %v562
    %v1507 = vunpack.c.l.b16 %v563
    %v1508 = vunpack.c.h.b16 %v563
    %v1509 = vunpack.c.l.b16 %v564
    %v1510 = vunpack.c.h.b16 %v564
    %v1511 = vunpack.c.l.b16 %v565
    %v1512 = vunpack.c.h.b16 %v565
    %v1513 = vunpack.c.l.b16 %v566
    %v1514 = vunpack.c.l.b16 %v567
    %v1515 = vunpack.c.h.b16 %v567
    %v1516 = vunpack.c.l.b16 %v568
    %v1517 = vunpack.c.h.b16 %v568
    %v1518 = vunpack.c.l.b16 %v569
    %v1519 = vunpack.c.h.b16 %v569
    %v1520 = vunpack.c.l.b16 %v570
    %v1521 = vunpack.c.l.b16 %v571
    %v1522 = vunpack.c.h.b16 %v571
    %v1523 = vunpack.c.l.b16 %v572
    %v1524 = vunpack.c.h.b16 %v572
    %v1525 = vunpack.c.l.b16 %v573
    %v1526 = vunpack.c.h.b16 %v573
    %v1527 = vunpack.c.l.b16 %v574
    %v1528 = vunpack.c.l.b16 %v575
    %v1529 = vunpack.c.h.b16 %v575
    %v1530 = vunpack.c.l.b16 %v576
    %v1531 = vunpack.c.h.b16 %v576
    %v1532 = vunpack.c.l.b16 %v577
    %v1533 = vunpack.c.h.b16 %v577
    %v1534 = vunpack.c.l.b16 %v578
    %v1535 = vunpack.c.l.b16 %v579
    %v1536 = vunpack.c.h.b16 %v579
    %v1537 = vunpack.c.l.b16 %v580
    %v1538 = vunpack.c.h.b16 %v580
    %v1539 = vunpack.c.l.b16 %v581
    %v1540 = vunpack.c.h.b16 %v581
    %v1541 = vunpack.c.l.b16 %v582
    %v1542 = vunpack.c.l.b16 %v583
    %v1543 = vunpack.c.h.b16 %v583
    %v1544 = vunpack.c.l.b16 %v584
    %v1545 = vunpack.c.h.b16 %v584
    %v1546 = vunpack.c.l.b16 %v585
    %v1547 = vunpack.c.h.b16 %v585
    %v1548 = vunpack.c.l.b16 %v586
    %v1549 = vunpack.c.l.b16 %v587
    %v1550 = vunpack.c.h.b16 %v587
    %v1551 = vunpack.c.l.b16 %v588
    %v1552 = vunpack.c.h.b16 %v588
    %v1553 = vunpack.c.l.b16 %v589
    %v1554 = vunpack.c.h.b16 %v589
    %v1555 = vunpack.c.l.b16 %v590
    %v1556 = vunpack.c.l.b16 %v591
    %v1557 = vunpack.c.h.b16 %v591
    %v1558 = vunpack.c.l.b16 %v592
    %v1559 = vunpack.c.h.b16 %v592
    %v1560 = vunpack.c.l.b16 %v593
    %v1561 = vunpack.c.h.b16 %v593
    %v1562 = vunpack.c.l.b16 %v594
    %v1563 = vunpack.c.l.b16 %v595
    %v1564 = vunpack.c.h.b16 %v595
    %v1565 = vunpack.c.l.b16 %v596
    %v1566 = vunpack.c.h.b16 %v596
    %v1567 = vunpack.c.l.b16 %v597
    %v1568 = vunpack.c.h.b16 %v597
    %v1569 = vunpack.c.l.b16 %v598
    %v1570 = vunpack.c.l.b16 %v599
    %v1571 = vunpack.c.h.b16 %v599
    %v1572 = vunpack.c.l.b16 %v600
    %v1573 = vunpack.c.h.b16 %v600
    %v1574 = vunpack.c.l.b16 %v601
    %v1575 = vunpack.c.h.b16 %v601
    %v1576 = vunpack.c.l.b16 %v602
    %v1577 = vunpack.c.l.b16 %v603
    %v1578 = vunpack.c.h.b16 %v603
    %v1579 = vunpack.c.l.b16 %v604
    %v1580 = vunpack.c.h.b16 %v604
    %v1581 = vunpack.c.l.b16 %v605
    %v1582 = vunpack.c.h.b16 %v605
    %v1583 = vunpack.c.l.b16 %v606
    %v1584 = vunpack.c.l.b16 %v607
    %v1585 = vunpack.c.h.b16 %v607
    %v1586 = vunpack.c.l.b16 %v608
    %v1587 = vunpack.c.h.b16 %v608
    %v1588 = vunpack.c.l.b16 %v609
    %v1589 = vunpack.c.h.b16 %v609
    %v1590 = vunpack.c.l.b16 %v610
    %v1591 = vunpack.c.l.b16 %v611
    %v1592 = vunpack.c.h.b16 %v611
    %v1593 = vunpack.c.l.b16 %v612
    %v1594 = vunpack.c.h.b16 %v612
    %v1595 = vunpack.c.l.b16 %v613
    %v1596 = vunpack.c.h.b16 %v613
    %v1597 = vunpack.c.l.b16 %v614
    %v1598 = vunpack.c.l.b16 %v615
    %v1599 = vunpack.c.h.b16 %v615
    %v1600 = vunpack.c.l.b16 %v616
    %v1601 = vunpack.c.h.b16 %v616
    %v1602 = vunpack.c.l.b16 %v617
    %v1603 = vunpack.c.h.b16 %v617
    %v1604 = vunpack.c.l.b16 %v618
    %v1605 = vunpack.c.l.b16 %v619
    %v1606 = vunpack.c.h.b16 %v619
    %v1607 = vunpack.c.l.b16 %v620
    %v1608 = vunpack.c.h.b16 %v620
    %v1609 = vunpack.c.l.b16 %v621
    %v1610 = vunpack.c.h.b16 %v621
    %v1611 = vunpack.c.l.b16 %v622
    %v1612 = vunpack.c.l.b16 %v623
    %v1613 = vunpack.c.h.b16 %v623
    %v1614 = vunpack.c.l.b16 %v624
    %v1615 = vunpack.c.h.b16 %v624
    %v1616 = vunpack.c.l.b16 %v625
    %v1617 = vunpack.c.h.b16 %v625
    %v1618 = vunpack.c.l.b16 %v626
    %v1619 = vunpack.c.l.b16 %v627
    %v1620 = vunpack.c.h.b16 %v627
    %v1621 = vunpack.c.l.b16 %v628
    %v1622 = vunpack.c.h.b16 %v628
    %v1623 = vunpack.c.l.b16 %v629
    %v1624 = vunpack.c.h.b16 %v629
    %v1625 = vunpack.c.l.b16 %v630
    %v1626 = vunpack.c.l.b16 %v631
    %v1627 = vunpack.c.h.b16 %v631
    %v1628 = vunpack.c.l.b16 %v632
    %v1629 = vunpack.c.h.b16 %v632
    %v1630 = vunpack.c.l.b16 %v633
    %v1631 = vunpack.c.h.b16 %v633
    %v1632 = vunpack.c.l.b16 %v634
    %v1633 = vunpack.c.l.b16 %v635
    %v1634 = vunpack.c.h.b16 %v635
    %v1635 = vunpack.c.l.b16 %v636
    %v1636 = vunpack.c.h.b16 %v636
    %v1637 = vunpack.c.l.b16 %v637
    %v1638 = vunpack.c.h.b16 %v637
    %v1639 = vunpack.c.l.b16 %v638
    %v1640 = vunpack.c.l.b16 %v639
    %v1641 = vunpack.c.h.b16 %v639
    %v1642 = vunpack.c.l.b16 %v640
    %v1643 = vunpack.c.h.b16 %v640
    %v1644 = vunpack.c.l.b16 %v641
    %v1645 = vunpack.c.h.b16 %v641
    %v1646 = vunpack.c.l.b16 %v642
    %v1647 = vunpack.c.l.b16 %v643
    %v1648 = vunpack.c.h.b16 %v643
    %v1649 = vunpack.c.l.b16 %v644
    %v1650 = vunpack.c.h.b16 %v644
    %v1651 = vunpack.c.l.b16 %v645
    %v1652 = vunpack.c.h.b16 %v645
    %v1653 = vunpack.c.l.b16 %v646
    %v1654 = vunpack.c.l.b16 %v647
    %v1655 = vunpack.c.h.b16 %v647
    %v1656 = vunpack.c.l.b16 %v648
    %v1657 = vunpack.c.h.b16 %v648
    %v1658 = vunpack.c.l.b16 %v649
    %v1659 = vunpack.c.h.b16 %v649
    %v1660 = vunpack.c.l.b16 %v650
    %v1661 = vunpack.c.l.b16 %v651
    %v1662 = vunpack.c.h.b16 %v651
    %v1663 = vunpack.c.l.b16 %v652
    %v1664 = vunpack.c.h.b16 %v652
    %v1665 = vunpack.c.l.b16 %v653
    %v1666 = vunpack.c.h.b16 %v653
    %v1667 = vunpack.c.l.b16 %v654
    %v1668 = vunpack.c.l.b16 %v655
    %v1669 = vunpack.c.h.b16 %v655
    %v1670 = vunpack.c.l.b16 %v656
    %v1671 = vunpack.c.h.b16 %v656
    %v1672 = vunpack.c.l.b16 %v657
    %v1673 = vunpack.c.h.b16 %v657
    %v1674 = vunpack.c.l.b16 %v658
    %v1675 = vunpack.c.l.b16 %v659
    %v1676 = vunpack.c.h.b16 %v659
    %v1677 = vunpack.c.l.b16 %v660
    %v1678 = vunpack.c.h.b16 %v660
    %v1679 = vunpack.c.l.b16 %v661
    %v1680 = vunpack.c.h.b16 %v661
    %v1681 = vunpack.c.l.b16 %v662
    %v1682 = vunpack.c.l.b16 %v663
    %v1683 = vunpack.c.h.b16 %v663
    %v1684 = vunpack.c.l.b16 %v664
    %v1685 = vunpack.c.h.b16 %v664
    %v1686 = vunpack.c.l.b16 %v665
    %v1687 = vunpack.c.h.b16 %v665
    %v1688 = vunpack.c.l.b16 %v666
    %v1689 = vunpack.c.l.b16 %v667
    %v1690 = vunpack.c.h.b16 %v667
    %v1691 = vunpack.c.l.b16 %v668
    %v1692 = vunpack.c.h.b16 %v668
    %v1693 = vunpack.c.l.b16 %v669
    %v1694 = vunpack.c.h.b16 %v669
    %v1695 = vunpack.c.l.b16 %v670
    %v1696 = vunpack.c.l.b16 %v671
    %v1697 = vunpack.c.h.b16 %v671
    %v1698 = vunpack.c.l.b16 %v672
    %v1699 = vunpack.c.h.b16 %v672
    %v1700 = vunpack.c.l.b16 %v673
    %v1701 = vunpack.c.h.b16 %v673
    %v1702 = vunpack.c.l.b16 %v674
    %v1703 = vunpack.c.l.b16 %v675
    %v1704 = vunpack.c.h.b16 %v675
    %v1705 = vunpack.c.l.b16 %v676
    %v1706 = vunpack.c.h.b16 %v676
    %v1707 = vunpack.c.l.b16 %v677
    %v1708 = vunpack.c.h.b16 %v677
    %v1709 = vunpack.c.l.b16 %v678
    %v1710 = vunpack.c.l.b16 %v679
    %v1711 = vunpack.c.h.b16 %v679
    %v1712 = vunpack.c.l.b16 %v680
    %v1713 = vunpack.c.h.b16 %v680
    %v1714 = vunpack.c.l.b16 %v681
    %v1715 = vunpack.c.h.b16 %v681
    %v1716 = vunpack.c.l.b16 %v682
    %v1717 = vunpack.c.l.b16 %v683
    %v1718 = vunpack.c.h.b16 %v683
    %v1719 = vunpack.c.l.b16 %v684
    %v1720 = vunpack.c.h.b16 %v684
    %v1721 = vunpack.c.l.b16 %v685
    %v1722 = vunpack.c.h.b16 %v685
    %v1723 = vunpack.c.l.b16 %v686
    %v1724 = vunpack.c.l.b16 %v687
    %v1725 = vunpack.c.h.b16 %v687
    %v1726 = vunpack.c.l.b16 %v688
    %v1727 = vunpack.c.h.b16 %v688
    %v1728 = vunpack.c.l.b16 %v689
    %v1729 = vunpack.c.h.b16 %v689
    %v1730 = vunpack.c.l.b16 %v690
    %v1731 = vunpack.c.l.b16 %v691
    %v1732 = vunpack.c.h.b16 %v691
    %v1733 = vunpack.c.l.b16 %v692
    %v1734 = vunpack.c.h.b16 %v692
    %v1735 = vunpack.c.l.b16 %v693
    %v1736 = vunpack.c.h.b16 %v693
    %v1737 = vunpack.c.l.b16 %v694
    %v1738 = vunpack.c.l.b16 %v695
    %v1739 = vunpack.c.h.b16 %v695
    %v1740 = vunpack.c.l.b16 %v696
    %v1741 = vunpack.c.h.b16 %v696
    %v1742 = vunpack.c.l.b16 %v697
    %v1743 = vunpack.c.h.b16 %v697
    %v1744 = vunpack.c.l.b16 %v698
    %v1745 = vunpack.c.l.b16 %v699
    %v1746 = vunpack.c.h.b16 %v699
    %v1747 = vunpack.c.l.b16 %v700
    %v1748 = vunpack.c.h.b16 %v700
    %v1749 = vunpack.c.l.b16 %v701
    %v1750 = vunpack.c.h.b16 %v701
    %v1751 = vunpack.c.l.b16 %v702
    %v1752 = vunpack.c.l.b16 %v703
    %v1753 = vunpack.c.h.b16 %v703
    %v1754 = vunpack.c.l.b16 %v704
    %v1755 = vunpack.c.h.b16 %v704
    %v1756 = vunpack.c.l.b16 %v705
    %v1757 = vunpack.c.h.b16 %v705
    %v1758 = vunpack.c.l.b16 %v706
    %v1759 = vunpack.c.l.b16 %v707
    %v1760 = vunpack.c.h.b16 %v707
    %v1761 = vunpack.c.l.b16 %v708
    %v1762 = vunpack.c.h.b16 %v708
    %v1763 = vunpack.c.l.b16 %v709
    %v1764 = vunpack.c.h.b16 %v709
    %v1765 = vunpack.c.l.b16 %v710
    %v1766 = vunpack.c.l.b16 %v711
    %v1767 = vunpack.c.h.b16 %v711
    %v1768 = vunpack.c.l.b16 %v712
    %v1769 = vunpack.c.h.b16 %v712
    %v1770 = vunpack.c.l.b16 %v713
    %v1771 = vunpack.c.h.b16 %v713
    %v1772 = vunpack.c.l.b16 %v714
    %v1773 = vunpack.c.l.b16 %v715
    %v1774 = vunpack.c.h.b16 %v715
    %v1775 = vunpack.c.l.b16 %v716
    %v1776 = vunpack.c.h.b16 %v716
    %v1777 = vunpack.c.l.b16 %v717
    %v1778 = vunpack.c.h.b16 %v717
    %v1779 = vunpack.c.l.b16 %v718
    %v1780 = vunpack.c.l.b16 %v719
    %v1781 = vunpack.c.h.b16 %v719
    %v1782 = vunpack.c.l.b16 %v720
    %v1783 = vunpack.c.h.b16 %v720
    %v1784 = vunpack.c.l.b16 %v721
    %v1785 = vunpack.c.h.b16 %v721
    %v1786 = vunpack.c.l.b16 %v722
    %v1787 = vunpack.c.l.b16 %v723
    %v1788 = vunpack.c.h.b16 %v723
    %v1789 = vunpack.c.l.b16 %v724
    %v1790 = vunpack.c.h.b16 %v724
    %v1791 = vunpack.c.l.b16 %v725
    %v1792 = vunpack.c.h.b16 %v725
    %v1793 = vunpack.c.l.b16 %v726
    %v1794 = vunpack.c.l.b16 %v727
    %v1795 = vunpack.c.h.b16 %v727
    %v1796 = vunpack.c.l.b16 %v728
    %v1797 = vunpack.c.h.b16 %v728
    %v1798 = vunpack.c.l.b16 %v729
    %v1799 = vunpack.c.h.b16 %v729
    %v1800 = vunpack.c.l.b16 %v730
    %v1801 = vunpack.c.l.b16 %v731
    %v1802 = vunpack.c.h.b16 %v731
    %v1803 = vunpack.c.l.b16 %v732
    %v1804 = vunpack.c.h.b16 %v732
    %v1805 = vunpack.c.l.b16 %v733
    %v1806 = vunpack.c.h.b16 %v733
    %v1807 = vunpack.c.l.b16 %v734
    %v1808 = vunpack.c.l.b16 %v735
    %v1809 = vunpack.c.h.b16 %v735
    %v1810 = vunpack.c.l.b16 %v736
    %v1811 = vunpack.c.h.b16 %v736
    %v1812 = vunpack.c.l.b16 %v737
    %v1813 = vunpack.c.h.b16 %v737
    %v1814 = vunpack.c.l.b16 %v738
    %v1815 = vunpack.c.l.b16 %v739
    %v1816 = vunpack.c.h.b16 %v739
    %v1817 = vunpack.c.l.b16 %v740
    %v1818 = vunpack.c.h.b16 %v740
    %v1819 = vunpack.c.l.b16 %v741
    %v1820 = vunpack.c.h.b16 %v741
    %v1821 = vunpack.c.l.b16 %v742
    %v1822 = vunpack.c.l.b16 %v743
    %v1823 = vunpack.c.h.b16 %v743
    %v1824 = vunpack.c.l.b16 %v744
    %v1825 = vunpack.c.h.b16 %v744
    %v1826 = vunpack.c.l.b16 %v745
    %v1827 = vunpack.c.h.b16 %v745
    %v1828 = vunpack.c.l.b16 %v746
    %v1829 = vunpack.c.l.b16 %v747
    %v1830 = vunpack.c.h.b16 %v747
    %v1831 = vunpack.c.l.b16 %v748
    %v1832 = vunpack.c.h.b16 %v748
    %v1833 = vunpack.c.l.b16 %v749
    %v1834 = vunpack.c.h.b16 %v749
    %v1835 = vunpack.c.l.b16 %v750
    %v1836 = vunpack.c.l.b16 %v751
    %v1837 = vunpack.c.h.b16 %v751
    %v1838 = vunpack.c.l.b16 %v752
    %v1839 = vunpack.c.h.b16 %v752
    %v1840 = vunpack.c.l.b16 %v753
    %v1841 = vunpack.c.h.b16 %v753
    %v1842 = vunpack.c.l.b16 %v754
    %v1843 = vunpack.c.l.b16 %v755
    %v1844 = vunpack.c.h.b16 %v755
    %v1845 = vunpack.c.l.b16 %v756
    %v1846 = vunpack.c.h.b16 %v756
    %v1847 = vunpack.c.l.b16 %v757
    %v1848 = vunpack.c.h.b16 %v757
    %v1849 = vunpack.c.l.b16 %v758
    %v1850 = vunpack.c.l.b16 %v759
    %v1851 = vunpack.c.h.b16 %v759
    %v1852 = vunpack.c.l.b16 %v760
    %v1853 = vunpack.c.h.b16 %v760
    %v1854 = vunpack.c.l.b16 %v761
    %v1855 = vunpack.c.h.b16 %v761
    %v1856 = vunpack.c.l.b16 %v762
    %v1857 = vunpack.c.l.b16 %v763
    %v1858 = vunpack.c.h.b16 %v763
    %v1859 = vunpack.c.l.b16 %v764
    %v1860 = vunpack.c.h.b16 %v764
    %v1861 = vunpack.c.l.b16 %v765
    %v1862 = vunpack.c.h.b16 %v765
    %v1863 = vunpack.c.l.b16 %v766
    %v1864 = vunpack.c.l.b16 %v767
    %v1865 = vunpack.c.h.b16 %v767
    %v1866 = vunpack.c.l.b16 %v768
    %v1867 = vunpack.c.h.b16 %v768
    %v1868 = vunpack.c.l.b16 %v769
    %v1869 = vunpack.c.h.b16 %v769
    %v1870 = vunpack.c.l.b16 %v770
    %v1871 = vunpack.c.l.b16 %v771
    %v1872 = vunpack.c.h.b16 %v771
    %v1873 = vunpack.c.l.b16 %v772
    %v1874 = vunpack.c.h.b16 %v772
    %v1875 = vunpack.c.l.b16 %v773
    %v1876 = vunpack.c.h.b16 %v773
    %v1877 = vunpack.c.l.b16 %v774
    %v1878 = vunpack.c.l.b16 %v775
    %v1879 = vunpack.c.h.b16 %v775
    %v1880 = vunpack.c.l.b16 %v776
    %v1881 = vunpack.c.h.b16 %v776
    %v1882 = vunpack.c.l.b16 %v777
    %v1883 = vunpack.c.h.b16 %v777
    %v1884 = vunpack.c.l.b16 %v778
    %v1885 = vunpack.c.l.b16 %v779
    %v1886 = vunpack.c.h.b16 %v779
    %v1887 = vunpack.c.l.b16 %v780
    %v1888 = vunpack.c.h.b16 %v780
    %v1889 = vunpack.c.l.b16 %v781
    %v1890 = vunpack.c.h.b16 %v781
    %v1891 = vunpack.c.l.b16 %v782
    %v1892 = vunpack.c.l.b16 %v783
    %v1893 = vunpack.c.h.b16 %v783
    %v1894 = vunpack.c.l.b16 %v784
    %v1895 = vunpack.c.h.b16 %v784
    %v1896 = vunpack.c.l.b16 %v785
    %v1897 = vunpack.c.h.b16 %v785
    %v1898 = vunpack.c.l.b16 %v786
    %v1899 = vunpack.c.l.b16 %v787
    %v1900 = vunpack.c.h.b16 %v787
    %v1901 = vunpack.c.l.b16 %v788
    %v1902 = vunpack.c.h.b16 %v788
    %v1903 = vunpack.c.l.b16 %v789
    %v1904 = vunpack.c.h.b16 %v789
    %v1905 = vunpack.c.l.b16 %v790
    %v1906 = vunpack.c.l.b16 %v791
    %v1907 = vunpack.c.h.b16 %v791
    %v1908 = vunpack.c.l.b16 %v792
    %v1909 = vunpack.c.h.b16 %v792
    %v1910 = vunpack.c.l.b16 %v793
    %v1911 = vunpack.c.h.b16 %v793
    %v1912 = vunpack.c.l.b16 %v794
    %v1913 = vunpack.c.l.b16 %v795
    %v1914 = vunpack.c.h.b16 %v795
    %v1915 = vunpack.c.l.b16 %v796
    %v1916 = vunpack.c.h.b16 %v796
    %v1917 = vunpack.c.l.b16 %v797
    %v1918 = vunpack.c.h.b16 %v797
    %v1919 = vunpack.c.l.b16 %v798
    %v1920 = vunpack.c.l.b16 %v799
    %v1921 = vunpack.c.h.b16 %v799
    %v1922 = vunpack.c.l.b16 %v800
    %v1923 = vunpack.c.h.b16 %v800
    %v1924 = vunpack.c.l.b16 %v801
    %v1925 = vunpack.c.h.b16 %v801
    %v1926 = vunpack.c.l.b16 %v802
    %v1927 = vunpack.c.l.b16 %v803
    %v1928 = vunpack.c.h.b16 %v803
    %v1929 = vunpack.c.l.b16 %v804
    %v1930 = vunpack.c.h.b16 %v804
    %v1931 = vunpack.c.l.b16 %v805
    %v1932 = vunpack.c.h.b16 %v805
    %v1933 = vunpack.c.l.b16 %v806
    %v1934 = vunpack.c.l.b16 %v807
    %v1935 = vunpack.c.h.b16 %v807
    %v1936 = vunpack.c.l.b16 %v808
    %v1937 = vunpack.c.h.b16 %v808
    %v1938 = vunpack.c.l.b16 %v809
    %v1939 = vunpack.c.h.b16 %v809
    %v1940 = vunpack.c.l.b16 %v810
    %v1941 = vunpack.c.l.b16 %v811
    %v1942 = vunpack.c.h.b16 %v811
    %v1943 = vunpack.c.l.b16 %v812
    %v1944 = vunpack.c.h.b16 %v812
    %v1945 = vunpack.c.l.b16 %v813
    %v1946 = vunpack.c.h.b16 %v813
    %v1947 = vunpack.c.l.b16 %v814
    %v1948 = vunpack.c.l.b16 %v815
    %v1949 = vunpack.c.h.b16 %v815
    %v1950 = vunpack.c.l.b16 %v816
    %v1951 = vunpack.c.h.b16 %v816
    %v1952 = vunpack.c.l.b16 %v817
    %v1953 = vunpack.c.h.b16 %v817
    %v1954 = vunpack.c.l.b16 %v818
    %v1955 = vpack.c.b16 %v1262, %v1255
    %v1956 = vpack.c.b16 %v1263, %v1256
    %v1957 = vpack.c.b16 %v1264, %v1257
    %v1958 = vpack.c.b16 %v1265, %v1258
    %v1959 = vpack.c.b16 %v1266, %v1259
    %v1960 = vpack.c.b16 %v1267, %v1260
    %v1961 = vpack.c.b16 %v1268, %v1261
    %v1962 = vpack.c.b16 %v1276, %v1269
    %v1963 = vpack.c.b16 %v1277, %v1270
    %v1964 = vpack.c.b16 %v1278, %v1271
    %v1965 = vpack.c.b16 %v1279, %v1272
    %v1966 = vpack.c.b16 %v1280, %v1273
    %v1967 = vpack.c.b16 %v1281, %v1274
    %v1968 = vpack.c.b16 %v1282, %v1275
    %v1969 = vpack.c.b16 %v1290, %v1283
    %v1970 = vpack.c.b16 %v1291, %v1284
    %v1971 = vpack.c.b16 %v1292, %v1285
    %v1972 = vpack.c.b16 %v1293, %v1286
    %v1973 = vpack.c.b16 %v1294, %v1287
    %v1974 = vpack.c.b16 %v1295, %v1288
    %v1975 = vpack.c.b16 %v1296, %v1289
    %v1976 = vpack.c.b16 %v1304, %v1297
    %v1977 = vpack.c.b16 %v1305, %v1298
    %v1978 = vpack.c.b16 %v1306, %v1299
    %v1979 = vpack.c.b16 %v1307, %v1300
    %v1980 = vpack.c.b16 %v1308, %v1301
    %v1981 = vpack.c.b16 %v1309, %v1302
    %v1982 = vpack.c.b16 %v1310, %v1303
    %v1983 = vpack.c.b16 %v1318, %v1311
    %v1984 = vpack.c.b16 %v1319, %v1312
    %v1985 = vpack.c.b16 %v1320, %v1313
    %v1986 = vpack.c.b16 %v1321, %v1314
    %v1987 = vpack.c.b16 %v1322, %v1315
    %v1988 = vpack.c.b16 %v1323, %v1316
    %v1989 = vpack.c.b16 %v1324, %v1317
    %v1990 = vpack.c.b16 %v1332, %v1325
    %v1991 = vpack.c.b16 %v1333, %v1326
    %v1992 = vpack.c.b16 %v1334, %v1327
    %v1993 = vpack.c.b16 %v1335, %v1328
    %v1994 = vpack.c.b16 %v1336, %v1329
    %v1995 = vpack.c.b16 %v1337, %v1330
    %v1996 = vpack.c.b16 %v1338, %v1331
    %v1997 = vpack.c.b16 %v1346, %v1339
    %v1998 = vpack.c.b16 %v1347, %v1340
    %v1999 = vpack.c.b16 %v1348, %v1341
    %v2000 = vpack.c.b16 %v1349, %v1342
    %v2001 = vpack.c.b16 %v1350, %v1343
    %v2002 = vpack.c.b16 %v1351, %v1344
    %v2003 = vpack.c.b16 %v1352, %v1345
    %v2004 = vpack.c.b16 %v1360, %v1353
    %v2005 = vpack.c.b16 %v1361, %v1354
    %v2006 = vpack.c.b16 %v1362, %v1355
    %v2007 = vpack.c.b16 %v1363, %v1356
    %v2008 = vpack.c.b16 %v1364, %v1357
    %v2009 = vpack.c.b16 %v1365, %v1358
    %v2010 = vpack.c.b16 %v1366, %v1359
    %v2011 = vpack.c.b16 %v1374, %v1367
    %v2012 = vpack.c.b16 %v1375, %v1368
    %v2013 = vpack.c.b16 %v1376, %v1369
    %v2014 = vpack.c.b16 %v1377, %v1370
    %v2015 = vpack.c.b16 %v1378, %v1371
    %v2016 = vpack.c.b16 %v1379, %v1372
    %v2017 = vpack.c.b16 %v1380, %v1373
    %v2018 = vpack.c.b16 %v1388, %v1381
    %v2019 = vpack.c.b16 %v1389, %v1382
    %v2020 = vpack.c.b16 %v1390, %v1383
    %v2021 = vpack.c.b16 %v1391, %v1384
    %v2022 = vpack.c.b16 %v1392, %v1385
    %v2023 = vpack.c.b16 %v1393, %v1386
    %v2024 = vpack.c.b16 %v1394, %v1387
    %v2025 = vpack.c.b16 %v1402, %v1395
    %v2026 = vpack.c.b16 %v1403, %v1396
    %v2027 = vpack.c.b16 %v1404, %v1397
    %v2028 = vpack.c.b16 %v1405, %v1398
    %v2029 = vpack.c.b16 %v1406, %v1399
    %v2030 = vpack.c.b16 %v1407, %v1400
    %v2031 = vpack.c.b16 %v1408, %v1401
    %v2032 = vpack.c.b16 %v1416, %v1409
    %v2033 = vpack.c.b16 %v1417, %v1410
    %v2034 = vpack.c.b16 %v1418, %v1411
    %v2035 = vpack.c.b16 %v1419, %v1412
    %v2036 = vpack.c.b16 %v1420, %v1413
    %v2037 = vpack.c.b16 %v1421, %v1414
    %v2038 = vpack.c.b16 %v1422, %v1415
    %v2039 = vpack.c.b16 %v1430, %v1423
    %v2040 = vpack.c.b16 %v1431, %v1424
    %v2041 = vpack.c.b16 %v1432, %v1425
    %v2042 = vpack.c.b16 %v1433, %v1426
    %v2043 = vpack.c.b16 %v1434, %v1427
    %v2044 = vpack.c.b16 %v1435, %v1428
    %v2045 = vpack.c.b16 %v1436, %v1429
    %v2046 = vpack.c.b16 %v1444, %v1437
    %v2047 = vpack.c.b16 %v1445, %v1438
    %v2048 = vpack.c.b16 %v1446, %v1439
    %v2049 = vpack.c.b16 %v1447, %v1440
    %v2050 = vpack.c.b16 %v1448, %v1441
    %v2051 = vpack.c.b16 %v1449, %v1442
    %v2052 = vpack.c.b16 %v1450, %v1443
    %v2053 = vpack.c.b16 %v1458, %v1451
    %v2054 = vpack.c.b16 %v1459, %v1452
    %v2055 = vpack.c.b16 %v1460, %v1453
    %v2056 = vpack.c.b16 %v1461, %v1454
    %v2057 = vpack.c.b16 %v1462, %v1455
    %v2058 = vpack.c.b16 %v1463, %v1456
    %v2059 = vpack.c.b16 %v1464, %v1457
    %v2060 = vpack.c.b16 %v1472, %v1465
    %v2061 = vpack.c.b16 %v1473, %v1466
    %v2062 = vpack.c.b16 %v1474, %v1467
    %v2063 = vpack.c.b16 %v1475, %v1468
    %v2064 = vpack.c.b16 %v1476, %v1469
    %v2065 = vpack.c.b16 %v1477, %v1470
    %v2066 = vpack.c.b16 %v1478, %v1471
    %v2067 = vpack.c.b16 %v1486, %v1479
    %v2068 = vpack.c.b16 %v1487, %v1480
    %v2069 = vpack.c.b16 %v1488, %v1481
    %v2070 = vpack.c.b16 %v1489, %v1482
    %v2071 = vpack.c.b16 %v1490, %v1483
    %v2072 = vpack.c.b16 %v1491, %v1484
    %v2073 = vpack.c.b16 %v1492, %v1485
    %v2074 = vpack.c.b16 %v1500, %v1493
    %v2075 = vpack.c.b16 %v1501, %v1494
    %v2076 = vpack.c.b16 %v1502, %v1495
    %v2077 = vpack.c.b16 %v1503, %v1496
    %v2078 = vpack.c.b16 %v1504, %v1497
    %v2079 = vpack.c.b16 %v1505, %v1498
    %v2080 = vpack.c.b16 %v1506, %v1499
    %v2081 = vpack.c.b16 %v1514, %v1507
    %v2082 = vpack.c.b16 %v1515, %v1508
    %v2083 = vpack.c.b16 %v1516, %v1509
    %v2084 = vpack.c.b16 %v1517, %v1510
    %v2085 = vpack.c.b16 %v1518, %v1511
    %v2086 = vpack.c.b16 %v1519, %v1512
    %v2087 = vpack.c.b16 %v1520, %v1513
    %v2088 = vpack.c.b16 %v1528, %v1521
    %v2089 = vpack.c.b16 %v1529, %v1522
    %v2090 = vpack.c.b16 %v1530, %v1523
    %v2091 = vpack.c.b16 %v1531, %v1524
    %v2092 = vpack.c.b16 %v1532, %v1525
    %v2093 = vpack.c.b16 %v1533, %v1526
    %v2094 = vpack.c.b16 %v1534, %v1527
    %v2095 = vpack.c.b16 %v1542, %v1535
    %v2096 = vpack.c.b16 %v1543, %v1536
    %v2097 = vpack.c.b16 %v1544, %v1537
    %v2098 = vpack.c.b16 %v1545, %v1538
    %v2099 = vpack.c.b16 %v1546, %v1539
    %v2100 = vpack.c.b16 %v1547, %v1540
    %v2101 = vpack.c.b16 %v1548, %v1541
    %v2102 = vpack.c.b16 %v1556, %v1549
    %v2103 = vpack.c.b16 %v1557, %v1550
    %v2104 = vpack.c.b16 %v1558, %v1551
    %v2105 = vpack.c.b16 %v1559, %v1552
    %v2106 = vpack.c.b16 %v1560, %v1553
    %v2107 = vpack.c.b16 %v1561, %v1554
    %v2108 = vpack.c.b16 %v1562, %v1555
    %v2109 = vpack.c.b16 %v1570, %v1563
    %v2110 = vpack.c.b16 %v1571, %v1564
    %v2111 = vpack.c.b16 %v1572, %v1565
    %v2112 = vpack.c.b16 %v1573, %v1566
    %v2113 = vpack.c.b16 %v1574, %v1567
    %v2114 = vpack.c.b16 %v1575, %v1568
    %v2115 = vpack.c.b16 %v1576, %v1569
    %v2116 = vpack.c.b16 %v1584, %v1577
    %v2117 = vpack.c.b16 %v1585, %v1578
    %v2118 = vpack.c.b16 %v1586, %v1579
    %v2119 = vpack.c.b16 %v1587, %v1580
    %v2120 = vpack.c.b16 %v1588, %v1581
    %v2121 = vpack.c.b16 %v1589, %v1582
    %v2122 = vpack.c.b16 %v1590, %v1583
    %v2123 = vpack.c.b16 %v1598, %v1591
    %v2124 = vpack.c.b16 %v1599, %v1592
    %v2125 = vpack.c.b16 %v1600, %v1593
    %v2126 = vpack.c.b16 %v1601, %v1594
    %v2127 = vpack.c.b16 %v1602, %v1595
    %v2128 = vpack.c.b16 %v1603, %v1596
    %v2129 = vpack.c.b16 %v1604, %v1597
    %v2130 = vpack.c.b16 %v1612, %v1605
    %v2131 = vpack.c.b16 %v1613, %v1606
    %v2132 = vpack.c.b16 %v1614, %v1607
    %v2133 = vpack.c.b16 %v1615, %v1608
    %v2134 = vpack.c.b16 %v1616, %v1609
    %v2135 = vpack.c.b16 %v1617, %v1610
    %v2136 = vpack.c.b16 %v1618, %v1611
    %v2137 = vpack.c.b16 %v1626, %v1619
    %v2138 = vpack.c.b16 %v1627, %v1620
    %v2139 = vpack.c.b16 %v1628, %v1621
    %v2140 = vpack.c.b16 %v1629, %v1622
    %v2141 = vpack.c.b16 %v1630, %v1623
    %v2142 = vpack.c.b16 %v1631, %v1624
    %v2143 = vpack.c.b16 %v1632, %v1625
    %v2144 = vpack.c.b16 %v1640, %v1633
    %v2145 = vpack.c.b16 %v1641, %v1634
    %v2146 = vpack.c.b16 %v1642, %v1635
    %v2147 = vpack.c.b16 %v1643, %v1636
    %v2148 = vpack.c.b16 %v1644, %v1637
    %v2149 = vpack.c.b16 %v1645, %v1638
    %v2150 = vpack.c.b16 %v1646, %v1639
    %v2151 = vpack.c.b16 %v1654, %v1647
    %v2152 = vpack.c.b16 %v1655, %v1648
    %v2153 = vpack.c.b16 %v1656, %v1649
    %v2154 = vpack.c.b16 %v1657, %v1650
    %v2155 = vpack.c.b16 %v1658, %v1651
    %v2156 = vpack.c.b16 %v1659, %v1652
    %v2157 = vpack.c.b16 %v1660, %v1653
    %v2158 = vpack.c.b16 %v1668, %v1661
    %v2159 = vpack.c.b16 %v1669, %v1662
    %v2160 = vpack.c.b16 %v1670, %v1663
    %v2161 = vpack.c.b16 %v1671, %v1664
    %v2162 = vpack.c.b16 %v1672, %v1665
    %v2163 = vpack.c.b16 %v1673, %v1666
    %v2164 = vpack.c.b16 %v1674, %v1667
    %v2165 = vpack.c.b16 %v1682, %v1675
    %v2166 = vpack.c.b16 %v1683, %v1676
    %v2167 = vpack.c.b16 %v1684, %v1677
    %v2168 = vpack.c.b16 %v1685, %v1678
    %v2169 = vpack.c.b16 %v1686, %v1679
    %v2170 = vpack.c.b16 %v1687, %v1680
    %v2171 = vpack.c.b16 %v1688, %v1681
    %v2172 = vpack.c.b16 %v1696, %v1689
    %v2173 = vpack.c.b16 %v1697, %v1690
    %v2174 = vpack.c.b16 %v1698, %v1691
    %v2175 = vpack.c.b16 %v1699, %v1692
    %v2176 = vpack.c.b16 %v1700, %v1693
    %v2177 = vpack.c.b16 %v1701, %v1694
    %v2178 = vpack.c.b16 %v1702, %v1695
    %v2179 = vpack.c.b16 %v1710, %v1703
    %v2180 = vpack.c.b16 %v1711, %v1704
    %v2181 = vpack.c.b16 %v1712, %v1705
    %v2182 = vpack.c.b16 %v1713, %v1706
    %v2183 = vpack.c.b16 %v1714, %v1707
    %v2184 = vpack.c.b16 %v1715, %v1708
    %v2185 = vpack.c.b16 %v1716, %v1709
    %v2186 = vpack.c.b16 %v1724, %v1717
    %v2187 = vpack.c.b16 %v1725, %v1718
    %v2188 = vpack.c.b16 %v1726, %v1719
    %v2189 = vpack.c.b16 %v1727, %v1720
    %v2190 = vpack.c.b16 %v1728, %v1721
    %v2191 = vpack.c.b16 %v1729, %v1722
    %v2192 = vpack.c.b16 %v1730, %v1723
    %v2193 = vpack.c.b16 %v1738, %v1731
    %v2194 = vpack.c.b16 %v1739, %v1732
    %v2195 = vpack.c.b16 %v1740, %v1733
    %v2196 = vpack.c.b16 %v1741, %v1734
    %v2197 = vpack.c.b16 %v1742, %v1735
    %v2198 = vpack.c.b16 %v1743, %v1736
    %v2199 = vpack.c.b16 %v1744, %v1737
    %v2200 = vpack.c.b16 %v1752, %v1745
    %v2201 = vpack.c.b16 %v1753, %v1746
    %v2202 = vpack.c.b16 %v1754, %v1747
    %v2203 = vpack.c.b16 %v1755, %v1748
    %v2204 = vpack.c.b16 %v1756, %v1749
    %v2205 = vpack.c.b16 %v1757, %v1750
    %v2206 = vpack.c.b16 %v1758, %v1751
    %v2207 = vpack.c.b16 %v1766, %v1759
    %v2208 = vpack.c.b16 %v1767, %v1760
    %v2209 = vpack.c.b16 %v1768, %v1761
    %v2210 = vpack.c.b16 %v1769, %v1762
    %v2211 = vpack.c.b16 %v1770, %v1763
    %v2212 = vpack.c.b16 %v1771, %v1764
    %v2213 = vpack.c.b16 %v1772, %v1765
    %v2214 = vpack.c.b16 %v1780, %v1773
    %v2215 = vpack.c.b16 %v1781, %v1774
    %v2216 = vpack.c.b16 %v1782, %v1775
    %v2217 = vpack.c.b16 %v1783, %v1776
    %v2218 = vpack.c.b16 %v1784, %v1777
    %v2219 = vpack.c.b16 %v1785, %v1778
    %v2220 = vpack.c.b16 %v1786, %v1779
    %v2221 = vpack.c.b16 %v1794, %v1787
    %v2222 = vpack.c.b16 %v1795, %v1788
    %v2223 = vpack.c.b16 %v1796, %v1789
    %v2224 = vpack.c.b16 %v1797, %v1790
    %v2225 = vpack.c.b16 %v1798, %v1791
    %v2226 = vpack.c.b16 %v1799, %v1792
    %v2227 = vpack.c.b16 %v1800, %v1793
    %v2228 = vpack.c.b16 %v1808, %v1801
    %v2229 = vpack.c.b16 %v1809, %v1802
    %v2230 = vpack.c.b16 %v1810, %v1803
    %v2231 = vpack.c.b16 %v1811, %v1804
    %v2232 = vpack.c.b16 %v1812, %v1805
    %v2233 = vpack.c.b16 %v1813, %v1806
    %v2234 = vpack.c.b16 %v1814, %v1807
    %v2235 = vpack.c.b16 %v1822, %v1815
    %v2236 = vpack.c.b16 %v1823, %v1816
    %v2237 = vpack.c.b16 %v1824, %v1817
    %v2238 = vpack.c.b16 %v1825, %v1818
    %v2239 = vpack.c.b16 %v1826, %v1819
    %v2240 = vpack.c.b16 %v1827, %v1820
    %v2241 = vpack.c.b16 %v1828, %v1821
    %v2242 = vpack.c.b16 %v1836, %v1829
    %v2243 = vpack.c.b16 %v1837, %v1830
    %v2244 = vpack.c.b16 %v1838, %v1831
    %v2245 = vpack.c.b16 %v1839, %v1832
    %v2246 = vpack.c.b16 %v1840, %v1833
    %v2247 = vpack.c.b16 %v1841, %v1834
    %v2248 = vpack.c.b16 %v1842, %v1835
    %v2249 = vpack.c.b16 %v1850, %v1843
    %v2250 = vpack.c.b16 %v1851, %v1844
    %v2251 = vpack.c.b16 %v1852, %v1845
    %v2252 = vpack.c.b16 %v1853, %v1846
    %v2253 = vpack.c.b16 %v1854, %v1847
    %v2254 = vpack.c.b16 %v1855, %v1848
    %v2255 = vpack.c.b16 %v1856, %v1849
    %v2256 = vpack.c.b16 %v1864, %v1857
    %v2257 = vpack.c.b16 %v1865, %v1858
    %v2258 = vpack.c.b16 %v1866, %v1859
    %v2259 = vpack.c.b16 %v1867, %v1860
    %v2260 = vpack.c.b16 %v1868, %v1861
    %v2261 = vpack.c.b16 %v1869, %v1862
    %v2262 = vpack.c.b16 %v1870, %v1863
    %v2263 = vpack.c.b16 %v1878, %v1871
    %v2264 = vpack.c.b16 %v1879, %v1872
    %v2265 = vpack.c.b16 %v1880, %v1873
    %v2266 = vpack.c.b16 %v1881, %v1874
    %v2267 = vpack.c.b16 %v1882, %v1875
    %v2268 = vpack.c.b16 %v1883, %v1876
    %v2269 = vpack.c.b16 %v1884, %v1877
    %v2270 = vpack.c.b16 %v1892, %v1885
    %v2271 = vpack.c.b16 %v1893, %v1886
    %v2272 = vpack.c.b16 %v1894, %v1887
    %v2273 = vpack.c.b16 %v1895, %v1888
    %v2274 = vpack.c.b16 %v1896, %v1889
    %v2275 = vpack.c.b16 %v1897, %v1890
    %v2276 = vpack.c.b16 %v1898, %v1891
    %v2277 = vpack.c.b16 %v1906, %v1899
    %v2278 = vpack.c.b16 %v1907, %v1900
    %v2279 = vpack.c.b16 %v1908, %v1901
    %v2280 = vpack.c.b16 %v1909, %v1902
    %v2281 = vpack.c.b16 %v1910, %v1903
    %v2282 = vpack.c.b16 %v1911, %v1904
    %v2283 = vpack.c.b16 %v1912, %v1905
    %v2284 = vpack.c.b16 %v1920, %v1913
    %v2285 = vpack.c.b16 %v1921, %v1914
    %v2286 = vpack.c.b16 %v1922, %v1915
    %v2287 = vpack.c.b16 %v1923, %v1916
    %v2288 = vpack.c.b16 %v1924, %v1917
    %v2289 = vpack.c.b16 %v1925, %v1918
    %v2290 = vpack.c.b16 %v1926, %v1919
    %v2291 = vpack.c.b16 %v1934, %v1927
    %v2292 = vpack.c.b16 %v1935, %v1928
    %v2293 = vpack.c.b16 %v1936, %v1929
    %v2294 = vpack.c.b16 %v1937, %v1930
    %v2295 = vpack.c.b16 %v1938, %v1931
    %v2296 = vpack.c.b16 %v1939, %v1932
    %v2297 = vpack.c.b16 %v1940, %v1933
    %v2298 = vpack.c.b16 %v1948, %v1941
    %v2299 = vpack.c.b16 %v1949, %v1942
    %v2300 = vpack.c.b16 %v1950, %v1943
    %v2301 = vpack.c.b16 %v1951, %v1944
    %v2302 = vpack.c.b16 %v1952, %v1945
    %v2303 = vpack.c.b16 %v1953, %v1946
    %v2304 = vpack.c.b16 %v1954, %v1947
    %v2656 = vsel %vm238, %v418, 0
    %2658 = vmatprep.subr.bf16.mxu0 %v1956
    %2659 = vmatpush1.bf16.msra.mxu0 %v1955
    %2660 = vmatprep.subr.bf16.mxu0 %v1963
    %2661 = vmatpush1.bf16.msra.mxu0 %v1962
    %2662 = vmatprep.subr.bf16.mxu0 %v1970
    %2663 = vmatpush1.bf16.msra.mxu0 %v1969
    %2664 = vmatprep.subr.bf16.mxu0 %v1977
    %2665 = vmatpush1.bf16.msra.mxu0 %v1976
    %2666 = vmatprep.subr.bf16.mxu0 %v1984
    %2667 = vmatpush1.bf16.msra.mxu0 %v1983
    %2668 = vmatprep.subr.bf16.mxu0 %v1991
    %2669 = vmatpush1.bf16.msra.mxu0 %v1990
    %2670 = vmatprep.subr.bf16.mxu0 %v1998
    %2671 = vmatpush1.bf16.msra.mxu0 %v1997
    %2672 = vmatprep.subr.bf16.mxu0 %v2005
    %2673 = vmatpush1.bf16.msra.mxu0 %v2004
    %2674 = vmatprep.subr.bf16.mxu0 %v2012
    %2675 = vmatpush1.bf16.msra.mxu0 %v2011
    %2676 = vmatprep.subr.bf16.mxu0 %v2019
    %2677 = vmatpush1.bf16.msra.mxu0 %v2018
    %2678 = vmatprep.subr.bf16.mxu0 %v2026
    %2679 = vmatpush1.bf16.msra.mxu0 %v2025
    %2680 = vmatprep.subr.bf16.mxu0 %v2033
    %2681 = vmatpush1.bf16.msra.mxu0 %v2032
    %2682 = vmatprep.subr.bf16.mxu0 %v2040
    %2683 = vmatpush1.bf16.msra.mxu0 %v2039
    %2684 = vmatprep.subr.bf16.mxu0 %v2047
    %2685 = vmatpush1.bf16.msra.mxu0 %v2046
    %2686 = vmatprep.subr.bf16.mxu0 %v2054
    %2687 = vmatpush1.bf16.msra.mxu0 %v2053
    %2688 = vmatprep.subr.bf16.mxu0 %v2061
    %2689 = vmatpush1.bf16.msra.mxu0 %v2060
    %2690 = vmatprep.mubr.bf16.mxu0 %v413
    %2691 = vmatmul.mubr.bf16.gmra.mrb[0].mxu0 %v412
    %v2692 = vpop.f32.mrb[0].mxu0
    %v2693 = vadd.f32 %v823, %v2692
    %v2694 = vpop.f32.mrb[0].mxu0
    %v2695 = vadd.f32 %v827, %v2694
    %v2696 = vpop.f32.mrb[0].mxu0
    %v2697 = vpop.f32.mrb[0].mxu0
    %2698 = vdwg.mxu0
    %2699 = vmatprep.subr.bf16.mxu0 %v2068
    %2700 = vmatpush1.bf16.msra.mxu0 %v2067
    %2701 = vmatprep.subr.bf16.mxu0 %v2075
    %2702 = vmatpush1.bf16.msra.mxu0 %v2074
    %2703 = vmatprep.subr.bf16.mxu0 %v2082
    %2704 = vmatpush1.bf16.msra.mxu0 %v2081
    %2705 = vmatprep.subr.bf16.mxu0 %v2089
    %2706 = vmatpush1.bf16.msra.mxu0 %v2088
    %2707 = vmatprep.subr.bf16.mxu0 %v2096
    %2708 = vmatpush1.bf16.msra.mxu0 %v2095
    %2709 = vmatprep.subr.bf16.mxu0 %v2103
    %2710 = vmatpush1.bf16.msra.mxu0 %v2102
    %2711 = vmatprep.subr.bf16.mxu0 %v2110
    %2712 = vmatpush1.bf16.msra.mxu0 %v2109
    %2713 = vmatprep.subr.bf16.mxu0 %v2117
    %2714 = vmatpush1.bf16.msra.mxu0 %v2116
    %2715 = vmatprep.subr.bf16.mxu0 %v2124
    %2716 = vmatpush1.bf16.msra.mxu0 %v2123
    %2717 = vmatprep.subr.bf16.mxu0 %v2131
    %2718 = vmatpush1.bf16.msra.mxu0 %v2130
    %2719 = vmatprep.subr.bf16.mxu0 %v2138
    %2720 = vmatpush1.bf16.msra.mxu0 %v2137
    %2721 = vmatprep.subr.bf16.mxu0 %v2145
    %2722 = vmatpush1.bf16.msra.mxu0 %v2144
    %2723 = vmatprep.subr.bf16.mxu0 %v2152
    %2724 = vmatpush1.bf16.msra.mxu0 %v2151
    %2725 = vmatprep.subr.bf16.mxu0 %v2159
    %2726 = vmatpush1.bf16.msra.mxu0 %v2158
    %2727 = vmatprep.subr.bf16.mxu0 %v2166
    %2728 = vmatpush1.bf16.msra.mxu0 %v2165
    %2729 = vmatprep.subr.bf16.mxu0 %v2173
    %2730 = vmatpush1.bf16.msra.mxu0 %v2172
    %2731 = vmatprep.mubr.bf16.mxu0 %v415
    %2732 = vmatmul.mubr.bf16.gmra.mrb[0].mxu0 %v414
    %v2733 = vpop.f32.mrb[0].mxu0
    %v2734 = vadd.f32 %v2693, %v2733
    %v2735 = vpop.f32.mrb[0].mxu0
    %v2736 = vadd.f32 %v2695, %v2735
    %v2737 = vpop.f32.mrb[0].mxu0
    %v2738 = vpop.f32.mrb[0].mxu0
    %2739 = vdwg.mxu0
    %2740 = vmatprep.subr.bf16.mxu0 %v2180
    %2741 = vmatpush1.bf16.msra.mxu0 %v2179
    %2742 = vmatprep.subr.bf16.mxu0 %v2187
    %2743 = vmatpush1.bf16.msra.mxu0 %v2186
    %2744 = vmatprep.subr.bf16.mxu0 %v2194
    %2745 = vmatpush1.bf16.msra.mxu0 %v2193
    %2746 = vmatprep.subr.bf16.mxu0 %v2201
    %2747 = vmatpush1.bf16.msra.mxu0 %v2200
    %2748 = vmatprep.subr.bf16.mxu0 %v2208
    %2749 = vmatpush1.bf16.msra.mxu0 %v2207
    %2750 = vmatprep.subr.bf16.mxu0 %v2215
    %2751 = vmatpush1.bf16.msra.mxu0 %v2214
    %2752 = vmatprep.subr.bf16.mxu0 %v2222
    %2753 = vmatpush1.bf16.msra.mxu0 %v2221
    %2754 = vmatprep.subr.bf16.mxu0 %v2229
    %2755 = vmatpush1.bf16.msra.mxu0 %v2228
    %2756 = vmatprep.subr.bf16.mxu0 %v2236
    %2757 = vmatpush1.bf16.msra.mxu0 %v2235
    %2758 = vmatprep.subr.bf16.mxu0 %v2243
    %2759 = vmatpush1.bf16.msra.mxu0 %v2242
    %2760 = vmatprep.subr.bf16.mxu0 %v2250
    %2761 = vmatpush1.bf16.msra.mxu0 %v2249
    %2762 = vmatprep.subr.bf16.mxu0 %v2257
    %2763 = vmatpush1.bf16.msra.mxu0 %v2256
    %2764 = vmatprep.subr.bf16.mxu0 %v2264
    %2765 = vmatpush1.bf16.msra.mxu0 %v2263
    %2766 = vmatprep.subr.bf16.mxu0 %v2271
    %2767 = vmatpush1.bf16.msra.mxu0 %v2270
    %2768 = vmatprep.subr.bf16.mxu0 %v2278
    %2769 = vmatpush1.bf16.msra.mxu0 %v2277
    %2770 = vmatprep.subr.bf16.mxu0 %v2285
    %2771 = vmatpush1.bf16.msra.mxu0 %v2284
    %2772 = vmatprep.mubr.bf16.mxu0 %v417
    %2773 = vmatmul.mubr.bf16.gmra.mrb[0].mxu0 %v416
    %v2774 = vpop.f32.mrb[0].mxu0
    %v2775 = vadd.f32 %v2734, %v2774
    %v2776 = vpop.f32.mrb[0].mxu0
    %v2777 = vadd.f32 %v2736, %v2776
    %v2778 = vpop.f32.mrb[0].mxu0
    %v2779 = vpop.f32.mrb[0].mxu0
    %2780 = vdwg.mxu0
    %2781 = vmatprep.subr.bf16.mxu0 %v2292
    %2782 = vmatpush1.bf16.msra.mxu0 %v2291
    %2783 = vmatprep.subr.bf16.mxu0 %v2299
    %2784 = vmatpush1.bf16.msra.mxu0 %v2298
    %2785 = vmatprep.subr.bf16.mxu0 0
    %2786 = vmatpush1.bf16.msra.mxu0 0
    %2787 = vmatprep.subr.bf16.mxu0 0
    %2788 = vmatpush1.bf16.msra.mxu0 0
    %2789 = vmatprep.subr.bf16.mxu0 0
    %2790 = vmatpush1.bf16.msra.mxu0 0
    %2791 = vmatprep.subr.bf16.mxu0 0
    %2792 = vmatpush1.bf16.msra.mxu0 0
    %2793 = vmatprep.subr.bf16.mxu0 0
    %2794 = vmatpush1.bf16.msra.mxu0 0
    %2795 = vmatprep.subr.bf16.mxu0 0
    %2796 = vmatpush1.bf16.msra.mxu0 0
    %2797 = vmatprep.subr.bf16.mxu0 0
    %2798 = vmatpush1.bf16.msra.mxu0 0
    %2799 = vmatprep.subr.bf16.mxu0 0
    %2800 = vmatpush1.bf16.msra.mxu0 0
    %2801 = vmatprep.subr.bf16.mxu0 0
    %2802 = vmatpush1.bf16.msra.mxu0 0
    %2803 = vmatprep.subr.bf16.mxu0 0
    %2804 = vmatpush1.bf16.msra.mxu0 0
    %2805 = vmatprep.subr.bf16.mxu0 0
    %2806 = vmatpush1.bf16.msra.mxu0 0
    %2807 = vmatprep.subr.bf16.mxu0 0
    %2808 = vmatpush1.bf16.msra.mxu0 0
    %2809 = vmatprep.subr.bf16.mxu0 0
    %2810 = vmatpush1.bf16.msra.mxu0 0
    %2811 = vmatprep.subr.bf16.mxu0 0
    %2812 = vmatpush1.bf16.msra.mxu0 0
    %2813 = vmatprep.mubr.bf16.mxu0 0
    %2814 = vmatmul.mubr.bf16.gmra.mrb[0].mxu0 %v2656
    %v2815 = vpop.f32.mrb[0].mxu0
    %v2816 = vadd.f32 %v2775, %v2815
    %v2817 = vpop.f32.mrb[0].mxu0
    %v2818 = vadd.f32 %v2777, %v2817
    %v2819 = vpop.f32.mrb[0].mxu0
    %v2820 = vpop.f32.mrb[0].mxu0
    %2821 = vdwg.mxu0
    %2822 = vmatprep.subr.bf16.mxu0 %v1958
    %2823 = vmatpush1.bf16.msra.mxu0 %v1957
    %2824 = vmatprep.subr.bf16.mxu0 %v1965
    %2825 = vmatpush1.bf16.msra.mxu0 %v1964
    %2826 = vmatprep.subr.bf16.mxu0 %v1972
    %2827 = vmatpush1.bf16.msra.mxu0 %v1971
    %2828 = vmatprep.subr.bf16.mxu0 %v1979
    %2829 = vmatpush1.bf16.msra.mxu0 %v1978
    %2830 = vmatprep.subr.bf16.mxu0 %v1986
    %2831 = vmatpush1.bf16.msra.mxu0 %v1985
    %2832 = vmatprep.subr.bf16.mxu0 %v1993
    %2833 = vmatpush1.bf16.msra.mxu0 %v1992
    %2834 = vmatprep.subr.bf16.mxu0 %v2000
    %2835 = vmatpush1.bf16.msra.mxu0 %v1999
    %2836 = vmatprep.subr.bf16.mxu0 %v2007
    %2837 = vmatpush1.bf16.msra.mxu0 %v2006
    %2838 = vmatprep.subr.bf16.mxu0 %v2014
    %2839 = vmatpush1.bf16.msra.mxu0 %v2013
    %2840 = vmatprep.subr.bf16.mxu0 %v2021
    %2841 = vmatpush1.bf16.msra.mxu0 %v2020
    %2842 = vmatprep.subr.bf16.mxu0 %v2028
    %2843 = vmatpush1.bf16.msra.mxu0 %v2027
    %2844 = vmatprep.subr.bf16.mxu0 %v2035
    %2845 = vmatpush1.bf16.msra.mxu0 %v2034
    %2846 = vmatprep.subr.bf16.mxu0 %v2042
    %2847 = vmatpush1.bf16.msra.mxu0 %v2041
    %2848 = vmatprep.subr.bf16.mxu0 %v2049
    %2849 = vmatpush1.bf16.msra.mxu0 %v2048
    %2850 = vmatprep.subr.bf16.mxu0 %v2056
    %2851 = vmatpush1.bf16.msra.mxu0 %v2055
    %2852 = vmatprep.subr.bf16.mxu0 %v2063
    %2853 = vmatpush1.bf16.msra.mxu0 %v2062
    %2854 = vmatprep.mubr.bf16.mxu0 %v413
    %2855 = vmatmul.mubr.bf16.gmra.mrb[0].mxu0 %v412
    %v2856 = vpop.f32.mrb[0].mxu0
    %v2857 = vadd.f32 %v831, %v2856
    %v2858 = vpop.f32.mrb[0].mxu0
    %v2859 = vadd.f32 %v835, %v2858
    %v2860 = vpop.f32.mrb[0].mxu0
    %v2861 = vpop.f32.mrb[0].mxu0
    %2862 = vdwg.mxu0
    %2863 = vmatprep.subr.bf16.mxu0 %v2070
    %2864 = vmatpush1.bf16.msra.mxu0 %v2069
    %2865 = vmatprep.subr.bf16.mxu0 %v2077
    %2866 = vmatpush1.bf16.msra.mxu0 %v2076
    %2867 = vmatprep.subr.bf16.mxu0 %v2084
    %2868 = vmatpush1.bf16.msra.mxu0 %v2083
    %2869 = vmatprep.subr.bf16.mxu0 %v2091
    %2870 = vmatpush1.bf16.msra.mxu0 %v2090
    %2871 = vmatprep.subr.bf16.mxu0 %v2098
    %2872 = vmatpush1.bf16.msra.mxu0 %v2097
    %2873 = vmatprep.subr.bf16.mxu0 %v2105
    %2874 = vmatpush1.bf16.msra.mxu0 %v2104
    %2875 = vmatprep.subr.bf16.mxu0 %v2112
    %2876 = vmatpush1.bf16.msra.mxu0 %v2111
    %2877 = vmatprep.subr.bf16.mxu0 %v2119
    %2878 = vmatpush1.bf16.msra.mxu0 %v2118
    %2879 = vmatprep.subr.bf16.mxu0 %v2126
    %2880 = vmatpush1.bf16.msra.mxu0 %v2125
    %2881 = vmatprep.subr.bf16.mxu0 %v2133
    %2882 = vmatpush1.bf16.msra.mxu0 %v2132
    %2883 = vmatprep.subr.bf16.mxu0 %v2140
    %2884 = vmatpush1.bf16.msra.mxu0 %v2139
    %2885 = vmatprep.subr.bf16.mxu0 %v2147
    %2886 = vmatpush1.bf16.msra.mxu0 %v2146
    %2887 = vmatprep.subr.bf16.mxu0 %v2154
    %2888 = vmatpush1.bf16.msra.mxu0 %v2153
    %2889 = vmatprep.subr.bf16.mxu0 %v2161
    %2890 = vmatpush1.bf16.msra.mxu0 %v2160
    %2891 = vmatprep.subr.bf16.mxu0 %v2168
    %2892 = vmatpush1.bf16.msra.mxu0 %v2167
    %2893 = vmatprep.subr.bf16.mxu0 %v2175
    %2894 = vmatpush1.bf16.msra.mxu0 %v2174
    %2895 = vmatprep.mubr.bf16.mxu0 %v415
    %2896 = vmatmul.mubr.bf16.gmra.mrb[0].mxu0 %v414
    %v2897 = vpop.f32.mrb[0].mxu0
    %v2898 = vadd.f32 %v2857, %v2897
    %v2899 = vpop.f32.mrb[0].mxu0
    %v2900 = vadd.f32 %v2859, %v2899
    %v2901 = vpop.f32.mrb[0].mxu0
    %v2902 = vpop.f32.mrb[0].mxu0
    %2903 = vdwg.mxu0
    %2904 = vmatprep.subr.bf16.mxu0 %v2182
    %2905 = vmatpush1.bf16.msra.mxu0 %v2181
    %2906 = vmatprep.subr.bf16.mxu0 %v2189
    %2907 = vmatpush1.bf16.msra.mxu0 %v2188
    %2908 = vmatprep.subr.bf16.mxu0 %v2196
    %2909 = vmatpush1.bf16.msra.mxu0 %v2195
    %2910 = vmatprep.subr.bf16.mxu0 %v2203
    %2911 = vmatpush1.bf16.msra.mxu0 %v2202
    %2912 = vmatprep.subr.bf16.mxu0 %v2210
    %2913 = vmatpush1.bf16.msra.mxu0 %v2209
    %2914 = vmatprep.subr.bf16.mxu0 %v2217
    %2915 = vmatpush1.bf16.msra.mxu0 %v2216
    %2916 = vmatprep.subr.bf16.mxu0 %v2224
    %2917 = vmatpush1.bf16.msra.mxu0 %v2223
    %2918 = vmatprep.subr.bf16.mxu0 %v2231
    %2919 = vmatpush1.bf16.msra.mxu0 %v2230
    %2920 = vmatprep.subr.bf16.mxu0 %v2238
    %2921 = vmatpush1.bf16.msra.mxu0 %v2237
    %2922 = vmatprep.subr.bf16.mxu0 %v2245
    %2923 = vmatpush1.bf16.msra.mxu0 %v2244
    %2924 = vmatprep.subr.bf16.mxu0 %v2252
    %2925 = vmatpush1.bf16.msra.mxu0 %v2251
    %2926 = vmatprep.subr.bf16.mxu0 %v2259
    %2927 = vmatpush1.bf16.msra.mxu0 %v2258
    %2928 = vmatprep.subr.bf16.mxu0 %v2266
    %2929 = vmatpush1.bf16.msra.mxu0 %v2265
    %2930 = vmatprep.subr.bf16.mxu0 %v2273
    %2931 = vmatpush1.bf16.msra.mxu0 %v2272
    %2932 = vmatprep.subr.bf16.mxu0 %v2280
    %2933 = vmatpush1.bf16.msra.mxu0 %v2279
    %2934 = vmatprep.subr.bf16.mxu0 %v2287
    %2935 = vmatpush1.bf16.msra.mxu0 %v2286
    %2936 = vmatprep.mubr.bf16.mxu0 %v417
    %2937 = vmatmul.mubr.bf16.gmra.mrb[0].mxu0 %v416
    %v2938 = vpop.f32.mrb[0].mxu0
    %v2939 = vadd.f32 %v2898, %v2938
    %v2940 = vpop.f32.mrb[0].mxu0
    %v2941 = vadd.f32 %v2900, %v2940
    %v2942 = vpop.f32.mrb[0].mxu0
    %v2943 = vpop.f32.mrb[0].mxu0
    %2944 = vdwg.mxu0
    %2945 = vmatprep.subr.bf16.mxu0 %v2294
    %2946 = vmatpush1.bf16.msra.mxu0 %v2293
    %2947 = vmatprep.subr.bf16.mxu0 %v2301
    %2948 = vmatpush1.bf16.msra.mxu0 %v2300
    %2949 = vmatprep.subr.bf16.mxu0 0
    %2950 = vmatpush1.bf16.msra.mxu0 0
    %2951 = vmatprep.subr.bf16.mxu0 0
    %2952 = vmatpush1.bf16.msra.mxu0 0
    %2953 = vmatprep.subr.bf16.mxu0 0
    %2954 = vmatpush1.bf16.msra.mxu0 0
    %2955 = vmatprep.subr.bf16.mxu0 0
    %2956 = vmatpush1.bf16.msra.mxu0 0
    %2957 = vmatprep.subr.bf16.mxu0 0
    %2958 = vmatpush1.bf16.msra.mxu0 0
    %2959 = vmatprep.subr.bf16.mxu0 0
    %2960 = vmatpush1.bf16.msra.mxu0 0
    %2961 = vmatprep.subr.bf16.mxu0 0
    %2962 = vmatpush1.bf16.msra.mxu0 0
    %2963 = vmatprep.subr.bf16.mxu0 0
    %2964 = vmatpush1.bf16.msra.mxu0 0
    %2965 = vmatprep.subr.bf16.mxu0 0
    %2966 = vmatpush1.bf16.msra.mxu0 0
    %2967 = vmatprep.subr.bf16.mxu0 0
    %2968 = vmatpush1.bf16.msra.mxu0 0
    %2969 = vmatprep.subr.bf16.mxu0 0
    %2970 = vmatpush1.bf16.msra.mxu0 0
    %2971 = vmatprep.subr.bf16.mxu0 0
    %2972 = vmatpush1.bf16.msra.mxu0 0
    %2973 = vmatprep.subr.bf16.mxu0 0
    %2974 = vmatpush1.bf16.msra.mxu0 0
    %2975 = vmatprep.subr.bf16.mxu0 0
    %2976 = vmatpush1.bf16.msra.mxu0 0
    %2977 = vmatprep.mubr.bf16.mxu0 0
    %2978 = vmatmul.mubr.bf16.gmra.mrb[0].mxu0 %v2656
    %v2979 = vpop.f32.mrb[0].mxu0
    %v2980 = vadd.f32 %v2939, %v2979
    %v2981 = vpop.f32.mrb[0].mxu0
    %v2982 = vadd.f32 %v2941, %v2981
    %v2983 = vpop.f32.mrb[0].mxu0
    %v2984 = vpop.f32.mrb[0].mxu0
    %2985 = vdwg.mxu0
    %2986 = vmatprep.subr.bf16.mxu0 %v1960
    %2987 = vmatpush1.bf16.msra.mxu0 %v1959
    %2988 = vmatprep.subr.bf16.mxu0 %v1967
    %2989 = vmatpush1.bf16.msra.mxu0 %v1966
    %2990 = vmatprep.subr.bf16.mxu0 %v1974
    %2991 = vmatpush1.bf16.msra.mxu0 %v1973
    %2992 = vmatprep.subr.bf16.mxu0 %v1981
    %2993 = vmatpush1.bf16.msra.mxu0 %v1980
    %2994 = vmatprep.subr.bf16.mxu0 %v1988
    %2995 = vmatpush1.bf16.msra.mxu0 %v1987
    %2996 = vmatprep.subr.bf16.mxu0 %v1995
    %2997 = vmatpush1.bf16.msra.mxu0 %v1994
    %2998 = vmatprep.subr.bf16.mxu0 %v2002
    %2999 = vmatpush1.bf16.msra.mxu0 %v2001
    %3000 = vmatprep.subr.bf16.mxu0 %v2009
    %3001 = vmatpush1.bf16.msra.mxu0 %v2008
    %3002 = vmatprep.subr.bf16.mxu0 %v2016
    %3003 = vmatpush1.bf16.msra.mxu0 %v2015
    %3004 = vmatprep.subr.bf16.mxu0 %v2023
    %3005 = vmatpush1.bf16.msra.mxu0 %v2022
    %3006 = vmatprep.subr.bf16.mxu0 %v2030
    %3007 = vmatpush1.bf16.msra.mxu0 %v2029
    %3008 = vmatprep.subr.bf16.mxu0 %v2037
    %3009 = vmatpush1.bf16.msra.mxu0 %v2036
    %3010 = vmatprep.subr.bf16.mxu0 %v2044
    %3011 = vmatpush1.bf16.msra.mxu0 %v2043
    %3012 = vmatprep.subr.bf16.mxu0 %v2051
    %3013 = vmatpush1.bf16.msra.mxu0 %v2050
    %3014 = vmatprep.subr.bf16.mxu0 %v2058
    %3015 = vmatpush1.bf16.msra.mxu0 %v2057
    %3016 = vmatprep.subr.bf16.mxu0 %v2065
    %3017 = vmatpush1.bf16.msra.mxu0 %v2064
    %3018 = vmatprep.mubr.bf16.mxu0 %v413
    %3019 = vmatmul.mubr.bf16.gmra.mrb[0].mxu0 %v412
    %v3020 = vpop.f32.mrb[0].mxu0
    %v3021 = vadd.f32 %v839, %v3020
    %v3022 = vpop.f32.mrb[0].mxu0
    %v3023 = vadd.f32 %v843, %v3022
    %v3024 = vpop.f32.mrb[0].mxu0
    %v3025 = vpop.f32.mrb[0].mxu0
    %3026 = vdwg.mxu0
    %3027 = vmatprep.subr.bf16.mxu0 %v2072
    %3028 = vmatpush1.bf16.msra.mxu0 %v2071
    %3029 = vmatprep.subr.bf16.mxu0 %v2079
    %3030 = vmatpush1.bf16.msra.mxu0 %v2078
    %3031 = vmatprep.subr.bf16.mxu0 %v2086
    %3032 = vmatpush1.bf16.msra.mxu0 %v2085
    %3033 = vmatprep.subr.bf16.mxu0 %v2093
    %3034 = vmatpush1.bf16.msra.mxu0 %v2092
    %3035 = vmatprep.subr.bf16.mxu0 %v2100
    %3036 = vmatpush1.bf16.msra.mxu0 %v2099
    %3037 = vmatprep.subr.bf16.mxu0 %v2107
    %3038 = vmatpush1.bf16.msra.mxu0 %v2106
    %3039 = vmatprep.subr.bf16.mxu0 %v2114
    %3040 = vmatpush1.bf16.msra.mxu0 %v2113
    %3041 = vmatprep.subr.bf16.mxu0 %v2121
    %3042 = vmatpush1.bf16.msra.mxu0 %v2120
    %3043 = vmatprep.subr.bf16.mxu0 %v2128
    %3044 = vmatpush1.bf16.msra.mxu0 %v2127
    %3045 = vmatprep.subr.bf16.mxu0 %v2135
    %3046 = vmatpush1.bf16.msra.mxu0 %v2134
    %3047 = vmatprep.subr.bf16.mxu0 %v2142
    %3048 = vmatpush1.bf16.msra.mxu0 %v2141
    %3049 = vmatprep.subr.bf16.mxu0 %v2149
    %3050 = vmatpush1.bf16.msra.mxu0 %v2148
    %3051 = vmatprep.subr.bf16.mxu0 %v2156
    %3052 = vmatpush1.bf16.msra.mxu0 %v2155
    %3053 = vmatprep.subr.bf16.mxu0 %v2163
    %3054 = vmatpush1.bf16.msra.mxu0 %v2162
    %3055 = vmatprep.subr.bf16.mxu0 %v2170
    %3056 = vmatpush1.bf16.msra.mxu0 %v2169
    %3057 = vmatprep.subr.bf16.mxu0 %v2177
    %3058 = vmatpush1.bf16.msra.mxu0 %v2176
    %3059 = vmatprep.mubr.bf16.mxu0 %v415
    %3060 = vmatmul.mubr.bf16.gmra.mrb[0].mxu0 %v414
    %v3061 = vpop.f32.mrb[0].mxu0
    %v3062 = vadd.f32 %v3021, %v3061
    %v3063 = vpop.f32.mrb[0].mxu0
    %v3064 = vadd.f32 %v3023, %v3063
    %v3065 = vpop.f32.mrb[0].mxu0
    %v3066 = vpop.f32.mrb[0].mxu0
    %3067 = vdwg.mxu0
    %3068 = vmatprep.subr.bf16.mxu0 %v2184
    %3069 = vmatpush1.bf16.msra.mxu0 %v2183
    %3070 = vmatprep.subr.bf16.mxu0 %v2191
    %3071 = vmatpush1.bf16.msra.mxu0 %v2190
    %3072 = vmatprep.subr.bf16.mxu0 %v2198
    %3073 = vmatpush1.bf16.msra.mxu0 %v2197
    %3074 = vmatprep.subr.bf16.mxu0 %v2205
    %3075 = vmatpush1.bf16.msra.mxu0 %v2204
    %3076 = vmatprep.subr.bf16.mxu0 %v2212
    %3077 = vmatpush1.bf16.msra.mxu0 %v2211
    %3078 = vmatprep.subr.bf16.mxu0 %v2219
    %3079 = vmatpush1.bf16.msra.mxu0 %v2218
    %3080 = vmatprep.subr.bf16.mxu0 %v2226
    %3081 = vmatpush1.bf16.msra.mxu0 %v2225
    %3082 = vmatprep.subr.bf16.mxu0 %v2233
    %3083 = vmatpush1.bf16.msra.mxu0 %v2232
    %3084 = vmatprep.subr.bf16.mxu0 %v2240
    %3085 = vmatpush1.bf16.msra.mxu0 %v2239
    %3086 = vmatprep.subr.bf16.mxu0 %v2247
    %3087 = vmatpush1.bf16.msra.mxu0 %v2246
    %3088 = vmatprep.subr.bf16.mxu0 %v2254
    %3089 = vmatpush1.bf16.msra.mxu0 %v2253
    %3090 = vmatprep.subr.bf16.mxu0 %v2261
    %3091 = vmatpush1.bf16.msra.mxu0 %v2260
    %3092 = vmatprep.subr.bf16.mxu0 %v2268
    %3093 = vmatpush1.bf16.msra.mxu0 %v2267
    %3094 = vmatprep.subr.bf16.mxu0 %v2275
    %3095 = vmatpush1.bf16.msra.mxu0 %v2274
    %3096 = vmatprep.subr.bf16.mxu0 %v2282
    %3097 = vmatpush1.bf16.msra.mxu0 %v2281
    %3098 = vmatprep.subr.bf16.mxu0 %v2289
    %3099 = vmatpush1.bf16.msra.mxu0 %v2288
    %3100 = vmatprep.mubr.bf16.mxu0 %v417
    %3101 = vmatmul.mubr.bf16.gmra.mrb[0].mxu0 %v416
    %v3102 = vpop.f32.mrb[0].mxu0
    %v3103 = vadd.f32 %v3062, %v3102
    %v3104 = vpop.f32.mrb[0].mxu0
    %v3105 = vadd.f32 %v3064, %v3104
    %v3106 = vpop.f32.mrb[0].mxu0
    %v3107 = vpop.f32.mrb[0].mxu0
    %3108 = vdwg.mxu0
    %3109 = vmatprep.subr.bf16.mxu0 %v2296
    %3110 = vmatpush1.bf16.msra.mxu0 %v2295
    %3111 = vmatprep.subr.bf16.mxu0 %v2303
    %3112 = vmatpush1.bf16.msra.mxu0 %v2302
    %3113 = vmatprep.subr.bf16.mxu0 0
    %3114 = vmatpush1.bf16.msra.mxu0 0
    %3115 = vmatprep.subr.bf16.mxu0 0
    %3116 = vmatpush1.bf16.msra.mxu0 0
    %3117 = vmatprep.subr.bf16.mxu0 0
    %3118 = vmatpush1.bf16.msra.mxu0 0
    %3119 = vmatprep.subr.bf16.mxu0 0
    %3120 = vmatpush1.bf16.msra.mxu0 0
    %3121 = vmatprep.subr.bf16.mxu0 0
    %3122 = vmatpush1.bf16.msra.mxu0 0
    %3123 = vmatprep.subr.bf16.mxu0 0
    %3124 = vmatpush1.bf16.msra.mxu0 0
    %3125 = vmatprep.subr.bf16.mxu0 0
    %3126 = vmatpush1.bf16.msra.mxu0 0
    %3127 = vmatprep.subr.bf16.mxu0 0
    %3128 = vmatpush1.bf16.msra.mxu0 0
    %3129 = vmatprep.subr.bf16.mxu0 0
    %3130 = vmatpush1.bf16.msra.mxu0 0
    %3131 = vmatprep.subr.bf16.mxu0 0
    %3132 = vmatpush1.bf16.msra.mxu0 0
    %3133 = vmatprep.subr.bf16.mxu0 0
    %3134 = vmatpush1.bf16.msra.mxu0 0
    %3135 = vmatprep.subr.bf16.mxu0 0
    %3136 = vmatpush1.bf16.msra.mxu0 0
    %3137 = vmatprep.subr.bf16.mxu0 0
    %3138 = vmatpush1.bf16.msra.mxu0 0
    %3139 = vmatprep.subr.bf16.mxu0 0
    %3140 = vmatpush1.bf16.msra.mxu0 0
    %3141 = vmatprep.mubr.bf16.mxu0 0
    %3142 = vmatmul.mubr.bf16.gmra.mrb[0].mxu0 %v2656
    %v3143 = vpop.f32.mrb[0].mxu0
    %v3144 = vadd.f32 %v3103, %v3143
    %v3145 = vpop.f32.mrb[0].mxu0
    %v3146 = vadd.f32 %v3105, %v3145
    %v3147 = vpop.f32.mrb[0].mxu0
    %v3148 = vpop.f32.mrb[0].mxu0
    %3149 = vdwg.mxu0
    %3150 = vmatprep.subr.bf16.mxu0 0
    %3151 = vmatpush1.bf16.msra.mxu0 %v1961
    %3152 = vmatprep.subr.bf16.mxu0 0
    %3153 = vmatpush1.bf16.msra.mxu0 %v1968
    %3154 = vmatprep.subr.bf16.mxu0 0
    %3155 = vmatpush1.bf16.msra.mxu0 %v1975
    %3156 = vmatprep.subr.bf16.mxu0 0
    %3157 = vmatpush1.bf16.msra.mxu0 %v1982
    %3158 = vmatprep.subr.bf16.mxu0 0
    %3159 = vmatpush1.bf16.msra.mxu0 %v1989
    %3160 = vmatprep.subr.bf16.mxu0 0
    %3161 = vmatpush1.bf16.msra.mxu0 %v1996
    %3162 = vmatprep.subr.bf16.mxu0 0
    %3163 = vmatpush1.bf16.msra.mxu0 %v2003
    %3164 = vmatprep.subr.bf16.mxu0 0
    %3165 = vmatpush1.bf16.msra.mxu0 %v2010
    %3166 = vmatprep.subr.bf16.mxu0 0
    %3167 = vmatpush1.bf16.msra.mxu0 %v2017
    %3168 = vmatprep.subr.bf16.mxu0 0
    %3169 = vmatpush1.bf16.msra.mxu0 %v2024
    %3170 = vmatprep.subr.bf16.mxu0 0
    %3171 = vmatpush1.bf16.msra.mxu0 %v2031
    %3172 = vmatprep.subr.bf16.mxu0 0
    %3173 = vmatpush1.bf16.msra.mxu0 %v2038
    %3174 = vmatprep.subr.bf16.mxu0 0
    %3175 = vmatpush1.bf16.msra.mxu0 %v2045
    %3176 = vmatprep.subr.bf16.mxu0 0
    %3177 = vmatpush1.bf16.msra.mxu0 %v2052
    %3178 = vmatprep.subr.bf16.mxu0 0
    %3179 = vmatpush1.bf16.msra.mxu0 %v2059
    %3180 = vmatprep.subr.bf16.mxu0 0
    %3181 = vmatpush1.bf16.msra.mxu0 %v2066
    %3182 = vmatprep.mubr.bf16.mxu0 %v413
    %3183 = vmatmul.mubr.bf16.gmra.mrb[0].mxu0 %v412
    %v3184 = vpop.f32.mrb[0].mxu0
    %v3185 = vadd.f32 %v847, %v3184
    %v3186 = vpop.f32.mrb[0].mxu0
    %v3187 = vpop.f32.mrb[0].mxu0
    %v3188 = vpop.f32.mrb[0].mxu0
    %3189 = vdwg.mxu0
    %3190 = vmatprep.subr.bf16.mxu0 0
    %3191 = vmatpush1.bf16.msra.mxu0 %v2073
    %3192 = vmatprep.subr.bf16.mxu0 0
    %3193 = vmatpush1.bf16.msra.mxu0 %v2080
    %3194 = vmatprep.subr.bf16.mxu0 0
    %3195 = vmatpush1.bf16.msra.mxu0 %v2087
    %3196 = vmatprep.subr.bf16.mxu0 0
    %3197 = vmatpush1.bf16.msra.mxu0 %v2094
    %3198 = vmatprep.subr.bf16.mxu0 0
    %3199 = vmatpush1.bf16.msra.mxu0 %v2101
    %3200 = vmatprep.subr.bf16.mxu0 0
    %3201 = vmatpush1.bf16.msra.mxu0 %v2108
    %3202 = vmatprep.subr.bf16.mxu0 0
    %3203 = vmatpush1.bf16.msra.mxu0 %v2115
    %3204 = vmatprep.subr.bf16.mxu0 0
    %3205 = vmatpush1.bf16.msra.mxu0 %v2122
    %3206 = vmatprep.subr.bf16.mxu0 0
    %3207 = vmatpush1.bf16.msra.mxu0 %v2129
    %3208 = vmatprep.subr.bf16.mxu0 0
    %3209 = vmatpush1.bf16.msra.mxu0 %v2136
    %3210 = vmatprep.subr.bf16.mxu0 0
    %3211 = vmatpush1.bf16.msra.mxu0 %v2143
    %3212 = vmatprep.subr.bf16.mxu0 0
    %3213 = vmatpush1.bf16.msra.mxu0 %v2150
    %3214 = vmatprep.subr.bf16.mxu0 0
    %3215 = vmatpush1.bf16.msra.mxu0 %v2157
    %3216 = vmatprep.subr.bf16.mxu0 0
    %3217 = vmatpush1.bf16.msra.mxu0 %v2164
    %3218 = vmatprep.subr.bf16.mxu0 0
    %3219 = vmatpush1.bf16.msra.mxu0 %v2171
    %3220 = vmatprep.subr.bf16.mxu0 0
    %3221 = vmatpush1.bf16.msra.mxu0 %v2178
    %3222 = vmatprep.mubr.bf16.mxu0 %v415
    %3223 = vmatmul.mubr.bf16.gmra.mrb[0].mxu0 %v414
    %v3224 = vpop.f32.mrb[0].mxu0
    %v3225 = vadd.f32 %v3185, %v3224
    %v3226 = vpop.f32.mrb[0].mxu0
    %v3227 = vpop.f32.mrb[0].mxu0
    %v3228 = vpop.f32.mrb[0].mxu0
    %3229 = vdwg.mxu0
    %3230 = vmatprep.subr.bf16.mxu0 0
    %3231 = vmatpush1.bf16.msra.mxu0 %v2185
    %3232 = vmatprep.subr.bf16.mxu0 0
    %3233 = vmatpush1.bf16.msra.mxu0 %v2192
    %3234 = vmatprep.subr.bf16.mxu0 0
    %3235 = vmatpush1.bf16.msra.mxu0 %v2199
    %3236 = vmatprep.subr.bf16.mxu0 0
    %3237 = vmatpush1.bf16.msra.mxu0 %v2206
    %3238 = vmatprep.subr.bf16.mxu0 0
    %3239 = vmatpush1.bf16.msra.mxu0 %v2213
    %3240 = vmatprep.subr.bf16.mxu0 0
    %3241 = vmatpush1.bf16.msra.mxu0 %v2220
    %3242 = vmatprep.subr.bf16.mxu0 0
    %3243 = vmatpush1.bf16.msra.mxu0 %v2227
    %3244 = vmatprep.subr.bf16.mxu0 0
    %3245 = vmatpush1.bf16.msra.mxu0 %v2234
    %3246 = vmatprep.subr.bf16.mxu0 0
    %3247 = vmatpush1.bf16.msra.mxu0 %v2241
    %3248 = vmatprep.subr.bf16.mxu0 0
    %3249 = vmatpush1.bf16.msra.mxu0 %v2248
    %3250 = vmatprep.subr.bf16.mxu0 0
    %3251 = vmatpush1.bf16.msra.mxu0 %v2255
    %3252 = vmatprep.subr.bf16.mxu0 0
    %3253 = vmatpush1.bf16.msra.mxu0 %v2262
    %3254 = vmatprep.subr.bf16.mxu0 0
    %3255 = vmatpush1.bf16.msra.mxu0 %v2269
    %3256 = vmatprep.subr.bf16.mxu0 0
    %3257 = vmatpush1.bf16.msra.mxu0 %v2276
    %3258 = vmatprep.subr.bf16.mxu0 0
    %3259 = vmatpush1.bf16.msra.mxu0 %v2283
    %3260 = vmatprep.subr.bf16.mxu0 0
    %3261 = vmatpush1.bf16.msra.mxu0 %v2290
    %3262 = vmatprep.mubr.bf16.mxu0 %v417
    %3263 = vmatmul.mubr.bf16.gmra.mrb[0].mxu0 %v416
    %v3264 = vpop.f32.mrb[0].mxu0
    %v3265 = vadd.f32 %v3225, %v3264
    %v3266 = vpop.f32.mrb[0].mxu0
    %v3267 = vpop.f32.mrb[0].mxu0
    %v3268 = vpop.f32.mrb[0].mxu0
    %3269 = vdwg.mxu0
    %3270 = vmatprep.subr.bf16.mxu0 0
    %3271 = vmatpush1.bf16.msra.mxu0 %v2297
    %3272 = vmatprep.subr.bf16.mxu0 0
    %3273 = vmatpush1.bf16.msra.mxu0 %v2304
    %3274 = vmatprep.subr.bf16.mxu0 0
    %3275 = vmatpush1.bf16.msra.mxu0 0
    %3276 = vmatprep.subr.bf16.mxu0 0
    %3277 = vmatpush1.bf16.msra.mxu0 0
    %3278 = vmatprep.subr.bf16.mxu0 0
    %3279 = vmatpush1.bf16.msra.mxu0 0
    %3280 = vmatprep.subr.bf16.mxu0 0
    %3281 = vmatpush1.bf16.msra.mxu0 0
    %3282 = vmatprep.subr.bf16.mxu0 0
    %3283 = vmatpush1.bf16.msra.mxu0 0
    %3284 = vmatprep.subr.bf16.mxu0 0
    %3285 = vmatpush1.bf16.msra.mxu0 0
    %3286 = vmatprep.subr.bf16.mxu0 0
    %3287 = vmatpush1.bf16.msra.mxu0 0
    %3288 = vmatprep.subr.bf16.mxu0 0
    %3289 = vmatpush1.bf16.msra.mxu0 0
    %3290 = vmatprep.subr.bf16.mxu0 0
    %3291 = vmatpush1.bf16.msra.mxu0 0
    %3292 = vmatprep.subr.bf16.mxu0 0
    %3293 = vmatpush1.bf16.msra.mxu0 0
    %3294 = vmatprep.subr.bf16.mxu0 0
    %3295 = vmatpush1.bf16.msra.mxu0 0
    %3296 = vmatprep.subr.bf16.mxu0 0
    %3297 = vmatpush1.bf16.msra.mxu0 0
    %3298 = vmatprep.subr.bf16.mxu0 0
    %3299 = vmatpush1.bf16.msra.mxu0 0
    %3300 = vmatprep.subr.bf16.mxu0 0
    %3301 = vmatpush1.bf16.msra.mxu0 0
    %3302 = vmatprep.mubr.bf16.mxu0 0
    %3303 = vmatmul.mubr.bf16.gmra.mrb[0].mxu0 %v2656
    %v3304 = vpop.f32.mrb[0].mxu0
    %v3305 = vadd.f32 %v3265, %v3304
    %v3306 = vpop.f32.mrb[0].mxu0
    %v3307 = vpop.f32.mrb[0].mxu0
    %v3308 = vpop.f32.mrb[0].mxu0
    %3309 = vdwg.mxu0
    %v3310 = vmax.f32 %v2816, 0.0
    %v3311 = vmax.f32 %v2818, 0.0
    %v3312 = vmax.f32 %v2980, 0.0
    %v3313 = vmax.f32 %v2982, 0.0
    %v3314 = vmax.f32 %v3144, 0.0
    %v3315 = vmax.f32 %v3146, 0.0
    %v3316 = vmax.f32 %v3305, 0.0
    %v3317 = vpack.c.bf16 %v3310, %v3310
    %v3318 = vpack.c.bf16 %v3311, %v3311
    %v3319 = vpack.c.bf16 %v3312, %v3312
    %v3320 = vpack.c.bf16 %v3313, %v3313
    %v3321 = vpack.c.bf16 %v3314, %v3314
    %v3322 = vpack.c.bf16 %v3315, %v3315
    %v3323 = vpack.c.bf16 %v3316, %v3316
    %v3324 = vld [vmem:[%s3] sm:$0xf]
    %v3325 = vld [vmem:[%s3 + $0x4] sm:$0xf]
    %v3326 = vld [vmem:[%s3 + $0x8] sm:$0xf]
    %v3327 = vld [vmem:[%s3 + $0xc] sm:$0xf]
    %v3328 = vld [vmem:[%s3 + $0x10] sm:$0xf]
    %v3329 = vld [vmem:[%s3 + $0x14] sm:$0xf]
    %v3330 = vld [vmem:[%s3 + $0x18] sm:$0xf]
    %v3331 = vld [vmem:[%s3 + $0x1c] sm:$0xf]
    %v3332 = vld [vmem:[%s3 + $0x20] sm:$0xf]
    %v3333 = vld [vmem:[%s3 + $0x24] sm:$0xf]
    %v3334 = vld [vmem:[%s3 + $0x28] sm:$0xf]
    %v3335 = vld [vmem:[%s3 + $0x2c] sm:$0xf]
    %v3336 = vld [vmem:[%s3 + $0x30] sm:$0xf]
    %v3337 = vld [vmem:[%s3 + $0x34] sm:$0xf]
    %v3338 = vld [vmem:[%s3 + $0x38] sm:$0xf]
    %v3339 = vld [vmem:[%s3 + $0x3c] sm:$0xf]
    %v3340 = vld [vmem:[%s3 + $0x40] sm:$0xf]
    %v3341 = vld [vmem:[%s3 + $0x44] sm:$0xf]
    %v3342 = vld [vmem:[%s3 + $0x48] sm:$0xf]
    %v3343 = vld [vmem:[%s3 + $0x4c] sm:$0xf]
    %v3344 = vld [vmem:[%s3 + $0x50] sm:$0xf]
    %v3345 = vld [vmem:[%s3 + $0x54] sm:$0xf]
    %v3346 = vld [vmem:[%s3 + $0x58] sm:$0xf]
    %v3347 = vld [vmem:[%s3 + $0x5c] sm:$0xf]
    %v3348 = vld [vmem:[%s3 + $0x60] sm:$0xf]
    %v3349 = vld [vmem:[%s3 + $0x64] sm:$0xf]
    %v3350 = vld [vmem:[%s3 + $0x68] sm:$0xf]
    %v3351 = vld [vmem:[%s3 + $0x6c] sm:$0xf]
    %v3352 = vld [vmem:[%s3 + $0x70] sm:$0xf]
    %v3353 = vld [vmem:[%s3 + $0x74] sm:$0xf]
    %v3354 = vld [vmem:[%s3 + $0x78] sm:$0xf]
    %v3355 = vld [vmem:[%s3 + $0x7c] sm:$0xf]
    %v3356 = vld [vmem:[%s3 + $0x80] sm:$0xf]
    %v3357 = vld [vmem:[%s3 + $0x84] sm:$0xf]
    %v3358 = vld [vmem:[%s3 + $0x88] sm:$0xf]
    %v3359 = vld [vmem:[%s3 + $0x8c] sm:$0xf]
    %v3360 = vld [vmem:[%s3 + $0x90] sm:$0xf]
    %v3361 = vld [vmem:[%s3 + $0x94] sm:$0xf]
    %v3362 = vld [vmem:[%s3 + $0x98] sm:$0xf]
    %v3363 = vld [vmem:[%s3 + $0x9c] sm:$0xf]
    %v3364 = vld [vmem:[%s3 + $0xa0] sm:$0xf]
    %v3365 = vld [vmem:[%s3 + $0xa4] sm:$0xf]
    %v3366 = vld [vmem:[%s3 + $0xa8] sm:$0xf]
    %v3367 = vld [vmem:[%s3 + $0xac] sm:$0xf]
    %v3368 = vld [vmem:[%s3 + $0xb0] sm:$0xf]
    %v3369 = vld [vmem:[%s3 + $0xb4] sm:$0xf]
    %v3370 = vld [vmem:[%s3 + $0xb8] sm:$0xf]
    %v3371 = vld [vmem:[%s3 + $0xbc] sm:$0xf]
    %v3372 = vld [vmem:[%s3 + $0xc0] sm:$0xf]
    %v3373 = vld [vmem:[%s3 + $0xc4] sm:$0xf]
    %v3374 = vld [vmem:[%s3 + $0xc8] sm:$0xf]
    %v3375 = vld [vmem:[%s3 + $0xcc] sm:$0xf]
    %v3376 = vld [vmem:[%s3 + $0xd0] sm:$0xf]
    %v3377 = vld [vmem:[%s3 + $0xd4] sm:$0xf]
    %v3378 = vld [vmem:[%s3 + $0xd8] sm:$0xf]
    %v3379 = vld [vmem:[%s3 + $0xdc] sm:$0xf]
    %v3380 = vld [vmem:[%s3 + $0xe0] sm:$0xf]
    %v3381 = vld [vmem:[%s3 + $0xe4] sm:$0xf]
    %v3382 = vld [vmem:[%s3 + $0xe8] sm:$0xf]
    %v3383 = vld [vmem:[%s3 + $0xec] sm:$0xf]
    %v3384 = vld [vmem:[%s3 + $0xf0] sm:$0xf]
    %v3385 = vld [vmem:[%s3 + $0xf4] sm:$0xf]
    %v3386 = vld [vmem:[%s3 + $0xf8] sm:$0xf]
    %v3387 = vld [vmem:[%s3 + $0xfc] sm:$0xf]
    %v3388 = vld [vmem:[%s3 + $0x100] sm:$0xf]
    %v3389 = vld [vmem:[%s3 + $0x104] sm:$0xf]
    %v3390 = vld [vmem:[%s3 + $0x108] sm:$0xf]
    %v3391 = vld [vmem:[%s3 + $0x10c] sm:$0xf]
    %v3392 = vld [vmem:[%s3 + $0x110] sm:$0xf]
    %v3393 = vld [vmem:[%s3 + $0x114] sm:$0xf]
    %v3394 = vld [vmem:[%s3 + $0x118] sm:$0xf]
    %v3395 = vld [vmem:[%s3 + $0x11c] sm:$0xf]
    %v3396 = vld [vmem:[%s3 + $0x120] sm:$0xf]
    %v3397 = vld [vmem:[%s3 + $0x124] sm:$0xf]
    %v3398 = vld [vmem:[%s3 + $0x128] sm:$0xf]
    %v3399 = vld [vmem:[%s3 + $0x12c] sm:$0xf]
    %v3400 = vld [vmem:[%s3 + $0x130] sm:$0xf]
    %v3401 = vld [vmem:[%s3 + $0x134] sm:$0xf]
    %v3402 = vld [vmem:[%s3 + $0x138] sm:$0xf]
    %v3403 = vld [vmem:[%s3 + $0x13c] sm:$0xf]
    %v3404 = vld [vmem:[%s3 + $0x140] sm:$0xf]
    %v3405 = vld [vmem:[%s3 + $0x144] sm:$0xf]
    %v3406 = vld [vmem:[%s3 + $0x148] sm:$0xf]
    %v3407 = vld [vmem:[%s3 + $0x14c] sm:$0xf]
    %v3408 = vld [vmem:[%s3 + $0x150] sm:$0xf]
    %v3409 = vld [vmem:[%s3 + $0x154] sm:$0xf]
    %v3410 = vld [vmem:[%s3 + $0x158] sm:$0xf]
    %v3411 = vld [vmem:[%s3 + $0x15c] sm:$0xf]
    %v3412 = vld [vmem:[%s3 + $0x160] sm:$0xf]
    %v3413 = vld [vmem:[%s3 + $0x164] sm:$0xf]
    %v3414 = vld [vmem:[%s3 + $0x168] sm:$0xf]
    %v3415 = vld [vmem:[%s3 + $0x16c] sm:$0xf]
    %v3416 = vld [vmem:[%s3 + $0x170] sm:$0xf]
    %v3417 = vld [vmem:[%s3 + $0x174] sm:$0xf]
    %v3418 = vld [vmem:[%s3 + $0x178] sm:$0xf]
    %v3419 = vld [vmem:[%s3 + $0x17c] sm:$0xf]
    %v3420 = vld [vmem:[%s3 + $0x180] sm:$0xf]
    %v3421 = vld [vmem:[%s3 + $0x184] sm:$0xf]
    %v3422 = vld [vmem:[%s3 + $0x188] sm:$0xf]
    %v3423 = vld [vmem:[%s3 + $0x18c] sm:$0xf]
    %v3425 = vlaneseq
    %v3426 = vshrl.u32 %v3425, 7
    %v3427 = vsub.s32 0, %v3426
    %v3428 = vrot.slane %v109, %v3427
    %v3530 = vunpack.c.l.b16 %v3324
    %v3531 = vunpack.c.l.b16 %v3325
    %v3532 = vunpack.c.l.b16 %v3326
    %v3533 = vunpack.c.l.b16 %v3327
    %v3534 = vunpack.c.l.b16 %v3328
    %v3535 = vunpack.c.l.b16 %v3329
    %v3536 = vunpack.c.l.b16 %v3330
    %v3537 = vunpack.c.l.b16 %v3331
    %v3538 = vunpack.c.l.b16 %v3332
    %v3539 = vunpack.c.l.b16 %v3333
    %v3540 = vunpack.c.l.b16 %v3334
    %v3541 = vunpack.c.l.b16 %v3335
    %v3542 = vunpack.c.l.b16 %v3336
    %v3543 = vunpack.c.l.b16 %v3337
    %v3544 = vunpack.c.l.b16 %v3338
    %v3545 = vunpack.c.l.b16 %v3339
    %v3546 = vunpack.c.l.b16 %v3340
    %v3547 = vunpack.c.l.b16 %v3341
    %v3548 = vunpack.c.l.b16 %v3342
    %v3549 = vunpack.c.l.b16 %v3343
    %v3550 = vunpack.c.l.b16 %v3344
    %v3551 = vunpack.c.l.b16 %v3345
    %v3552 = vunpack.c.l.b16 %v3346
    %v3553 = vunpack.c.l.b16 %v3347
    %v3554 = vunpack.c.l.b16 %v3348
    %v3555 = vunpack.c.l.b16 %v3349
    %v3556 = vunpack.c.l.b16 %v3350
    %v3557 = vunpack.c.l.b16 %v3351
    %v3558 = vunpack.c.l.b16 %v3352
    %v3559 = vunpack.c.l.b16 %v3353
    %v3560 = vunpack.c.l.b16 %v3354
    %v3561 = vunpack.c.l.b16 %v3355
    %v3562 = vunpack.c.l.b16 %v3356
    %v3563 = vunpack.c.l.b16 %v3357
    %v3564 = vunpack.c.l.b16 %v3358
    %v3565 = vunpack.c.l.b16 %v3359
    %v3566 = vunpack.c.l.b16 %v3360
    %v3567 = vunpack.c.l.b16 %v3361
    %v3568 = vunpack.c.l.b16 %v3362
    %v3569 = vunpack.c.l.b16 %v3363
    %v3570 = vunpack.c.l.b16 %v3364
    %v3571 = vunpack.c.l.b16 %v3365
    %v3572 = vunpack.c.l.b16 %v3366
    %v3573 = vunpack.c.l.b16 %v3367
    %v3574 = vunpack.c.l.b16 %v3368
    %v3575 = vunpack.c.l.b16 %v3369
    %v3576 = vunpack.c.l.b16 %v3370
    %v3577 = vunpack.c.l.b16 %v3371
    %v3578 = vunpack.c.l.b16 %v3372
    %v3579 = vunpack.c.l.b16 %v3373
    %v3580 = vunpack.c.l.b16 %v3374
    %v3581 = vunpack.c.l.b16 %v3375
    %v3582 = vunpack.c.l.b16 %v3376
    %v3583 = vunpack.c.l.b16 %v3377
    %v3584 = vunpack.c.l.b16 %v3378
    %v3585 = vunpack.c.l.b16 %v3379
    %v3586 = vunpack.c.l.b16 %v3380
    %v3587 = vunpack.c.l.b16 %v3381
    %v3588 = vunpack.c.l.b16 %v3382
    %v3589 = vunpack.c.l.b16 %v3383
    %v3590 = vunpack.c.l.b16 %v3384
    %v3591 = vunpack.c.l.b16 %v3385
    %v3592 = vunpack.c.l.b16 %v3386
    %v3593 = vunpack.c.l.b16 %v3387
    %v3594 = vunpack.c.l.b16 %v3388
    %v3595 = vunpack.c.l.b16 %v3389
    %v3596 = vunpack.c.l.b16 %v3390
    %v3597 = vunpack.c.l.b16 %v3391
    %v3598 = vunpack.c.l.b16 %v3392
    %v3599 = vunpack.c.l.b16 %v3393
    %v3600 = vunpack.c.l.b16 %v3394
    %v3601 = vunpack.c.l.b16 %v3395
    %v3602 = vunpack.c.l.b16 %v3396
    %v3603 = vunpack.c.l.b16 %v3397
    %v3604 = vunpack.c.l.b16 %v3398
    %v3605 = vunpack.c.l.b16 %v3399
    %v3606 = vunpack.c.l.b16 %v3400
    %v3607 = vunpack.c.l.b16 %v3401
    %v3608 = vunpack.c.l.b16 %v3402
    %v3609 = vunpack.c.l.b16 %v3403
    %v3610 = vunpack.c.l.b16 %v3404
    %v3611 = vunpack.c.l.b16 %v3405
    %v3612 = vunpack.c.l.b16 %v3406
    %v3613 = vunpack.c.l.b16 %v3407
    %v3614 = vunpack.c.l.b16 %v3408
    %v3615 = vunpack.c.l.b16 %v3409
    %v3616 = vunpack.c.l.b16 %v3410
    %v3617 = vunpack.c.l.b16 %v3411
    %v3618 = vunpack.c.l.b16 %v3412
    %v3619 = vunpack.c.l.b16 %v3413
    %v3620 = vunpack.c.l.b16 %v3414
    %v3621 = vunpack.c.l.b16 %v3415
    %v3622 = vunpack.c.l.b16 %v3416
    %v3623 = vunpack.c.l.b16 %v3417
    %v3624 = vunpack.c.l.b16 %v3418
    %v3625 = vunpack.c.l.b16 %v3419
    %v3626 = vunpack.c.l.b16 %v3420
    %v3627 = vunpack.c.l.b16 %v3421
    %v3628 = vunpack.c.l.b16 %v3422
    %v3629 = vunpack.c.l.b16 %v3423
    %v3630 = vpack.c.b16 %v3531, %v3530
    %v3631 = vpack.c.b16 %v3533, %v3532
    %v3632 = vpack.c.b16 %v3535, %v3534
    %v3633 = vpack.c.b16 %v3537, %v3536
    %v3634 = vpack.c.b16 %v3539, %v3538
    %v3635 = vpack.c.b16 %v3541, %v3540
    %v3636 = vpack.c.b16 %v3543, %v3542
    %v3637 = vpack.c.b16 %v3545, %v3544
    %v3638 = vpack.c.b16 %v3547, %v3546
    %v3639 = vpack.c.b16 %v3549, %v3548
    %v3640 = vpack.c.b16 %v3551, %v3550
    %v3641 = vpack.c.b16 %v3553, %v3552
    %v3642 = vpack.c.b16 %v3555, %v3554
    %v3643 = vpack.c.b16 %v3557, %v3556
    %v3644 = vpack.c.b16 %v3559, %v3558
    %v3645 = vpack.c.b16 %v3561, %v3560
    %v3646 = vpack.c.b16 %v3563, %v3562
    %v3647 = vpack.c.b16 %v3565, %v3564
    %v3648 = vpack.c.b16 %v3567, %v3566
    %v3649 = vpack.c.b16 %v3569, %v3568
    %v3650 = vpack.c.b16 %v3571, %v3570
    %v3651 = vpack.c.b16 %v3573, %v3572
    %v3652 = vpack.c.b16 %v3575, %v3574
    %v3653 = vpack.c.b16 %v3577, %v3576
    %v3654 = vpack.c.b16 %v3579, %v3578
    %v3655 = vpack.c.b16 %v3581, %v3580
    %v3656 = vpack.c.b16 %v3583, %v3582
    %v3657 = vpack.c.b16 %v3585, %v3584
    %v3658 = vpack.c.b16 %v3587, %v3586
    %v3659 = vpack.c.b16 %v3589, %v3588
    %v3660 = vpack.c.b16 %v3591, %v3590
    %v3661 = vpack.c.b16 %v3593, %v3592
    %v3662 = vpack.c.b16 %v3595, %v3594
    %v3663 = vpack.c.b16 %v3597, %v3596
    %v3664 = vpack.c.b16 %v3599, %v3598
    %v3665 = vpack.c.b16 %v3601, %v3600
    %v3666 = vpack.c.b16 %v3603, %v3602
    %v3667 = vpack.c.b16 %v3605, %v3604
    %v3668 = vpack.c.b16 %v3607, %v3606
    %v3669 = vpack.c.b16 %v3609, %v3608
    %v3670 = vpack.c.b16 %v3611, %v3610
    %v3671 = vpack.c.b16 %v3613, %v3612
    %v3672 = vpack.c.b16 %v3615, %v3614
    %v3673 = vpack.c.b16 %v3617, %v3616
    %v3674 = vpack.c.b16 %v3619, %v3618
    %v3675 = vpack.c.b16 %v3621, %v3620
    %v3676 = vpack.c.b16 %v3623, %v3622
    %v3677 = vpack.c.b16 %v3625, %v3624
    %v3678 = vpack.c.b16 %v3627, %v3626
    %v3679 = vpack.c.b16 %v3629, %v3628
    %v3731 = vsel %vm238, %v3323, 0
    %3733 = vmatprep.subr.bf16.mxu0 0
    %3734 = vmatpush1.bf16.msra.mxu0 %v3630
    %3735 = vmatprep.subr.bf16.mxu0 0
    %3736 = vmatpush1.bf16.msra.mxu0 %v3631
    %3737 = vmatprep.subr.bf16.mxu0 0
    %3738 = vmatpush1.bf16.msra.mxu0 %v3632
    %3739 = vmatprep.subr.bf16.mxu0 0
    %3740 = vmatpush1.bf16.msra.mxu0 %v3633
    %3741 = vmatprep.subr.bf16.mxu0 0
    %3742 = vmatpush1.bf16.msra.mxu0 %v3634
    %3743 = vmatprep.subr.bf16.mxu0 0
    %3744 = vmatpush1.bf16.msra.mxu0 %v3635
    %3745 = vmatprep.subr.bf16.mxu0 0
    %3746 = vmatpush1.bf16.msra.mxu0 %v3636
    %3747 = vmatprep.subr.bf16.mxu0 0
    %3748 = vmatpush1.bf16.msra.mxu0 %v3637
    %3749 = vmatprep.subr.bf16.mxu0 0
    %3750 = vmatpush1.bf16.msra.mxu0 %v3638
    %3751 = vmatprep.subr.bf16.mxu0 0
    %3752 = vmatpush1.bf16.msra.mxu0 %v3639
    %3753 = vmatprep.subr.bf16.mxu0 0
    %3754 = vmatpush1.bf16.msra.mxu0 %v3640
    %3755 = vmatprep.subr.bf16.mxu0 0
    %3756 = vmatpush1.bf16.msra.mxu0 %v3641
    %3757 = vmatprep.subr.bf16.mxu0 0
    %3758 = vmatpush1.bf16.msra.mxu0 %v3642
    %3759 = vmatprep.subr.bf16.mxu0 0
    %3760 = vmatpush1.bf16.msra.mxu0 %v3643
    %3761 = vmatprep.subr.bf16.mxu0 0
    %3762 = vmatpush1.bf16.msra.mxu0 %v3644
    %3763 = vmatprep.subr.bf16.mxu0 0
    %3764 = vmatpush1.bf16.msra.mxu0 %v3645
    %3765 = vmatprep.mubr.bf16.mxu0 %v3318
    %3766 = vmatmul.mubr.bf16.gmra.mrb[0].mxu0 %v3317
    %v3767 = vpop.f32.mrb[0].mxu0
    %v3768 = vadd.f32 %v3428, %v3767
    %v3769 = vpop.f32.mrb[0].mxu0
    %v3770 = vpop.f32.mrb[0].mxu0
    %v3771 = vpop.f32.mrb[0].mxu0
    %3772 = vdwg.mxu0
    %3773 = vmatprep.subr.bf16.mxu0 0
    %3774 = vmatpush1.bf16.msra.mxu0 %v3646
    %3775 = vmatprep.subr.bf16.mxu0 0
    %3776 = vmatpush1.bf16.msra.mxu0 %v3647
    %3777 = vmatprep.subr.bf16.mxu0 0
    %3778 = vmatpush1.bf16.msra.mxu0 %v3648
    %3779 = vmatprep.subr.bf16.mxu0 0
    %3780 = vmatpush1.bf16.msra.mxu0 %v3649
    %3781 = vmatprep.subr.bf16.mxu0 0
    %3782 = vmatpush1.bf16.msra.mxu0 %v3650
    %3783 = vmatprep.subr.bf16.mxu0 0
    %3784 = vmatpush1.bf16.msra.mxu0 %v3651
    %3785 = vmatprep.subr.bf16.mxu0 0
    %3786 = vmatpush1.bf16.msra.mxu0 %v3652
    %3787 = vmatprep.subr.bf16.mxu0 0
    %3788 = vmatpush1.bf16.msra.mxu0 %v3653
    %3789 = vmatprep.subr.bf16.mxu0 0
    %3790 = vmatpush1.bf16.msra.mxu0 %v3654
    %3791 = vmatprep.subr.bf16.mxu0 0
    %3792 = vmatpush1.bf16.msra.mxu0 %v3655
    %3793 = vmatprep.subr.bf16.mxu0 0
    %3794 = vmatpush1.bf16.msra.mxu0 %v3656
    %3795 = vmatprep.subr.bf16.mxu0 0
    %3796 = vmatpush1.bf16.msra.mxu0 %v3657
    %3797 = vmatprep.subr.bf16.mxu0 0
    %3798 = vmatpush1.bf16.msra.mxu0 %v3658
    %3799 = vmatprep.subr.bf16.mxu0 0
    %3800 = vmatpush1.bf16.msra.mxu0 %v3659
    %3801 = vmatprep.subr.bf16.mxu0 0
    %3802 = vmatpush1.bf16.msra.mxu0 %v3660
    %3803 = vmatprep.subr.bf16.mxu0 0
    %3804 = vmatpush1.bf16.msra.mxu0 %v3661
    %3805 = vmatprep.mubr.bf16.mxu0 %v3320
    %3806 = vmatmul.mubr.bf16.gmra.mrb[0].mxu0 %v3319
    %v3807 = vpop.f32.mrb[0].mxu0
    %v3808 = vadd.f32 %v3768, %v3807
    %v3809 = vpop.f32.mrb[0].mxu0
    %v3810 = vpop.f32.mrb[0].mxu0
    %v3811 = vpop.f32.mrb[0].mxu0
    %3812 = vdwg.mxu0
    %3813 = vmatprep.subr.bf16.mxu0 0
    %3814 = vmatpush1.bf16.msra.mxu0 %v3662
    %3815 = vmatprep.subr.bf16.mxu0 0
    %3816 = vmatpush1.bf16.msra.mxu0 %v3663
    %3817 = vmatprep.subr.bf16.mxu0 0
    %3818 = vmatpush1.bf16.msra.mxu0 %v3664
    %3819 = vmatprep.subr.bf16.mxu0 0
    %3820 = vmatpush1.bf16.msra.mxu0 %v3665
    %3821 = vmatprep.subr.bf16.mxu0 0
    %3822 = vmatpush1.bf16.msra.mxu0 %v3666
    %3823 = vmatprep.subr.bf16.mxu0 0
    %3824 = vmatpush1.bf16.msra.mxu0 %v3667
    %3825 = vmatprep.subr.bf16.mxu0 0
    %3826 = vmatpush1.bf16.msra.mxu0 %v3668
    %3827 = vmatprep.subr.bf16.mxu0 0
    %3828 = vmatpush1.bf16.msra.mxu0 %v3669
    %3829 = vmatprep.subr.bf16.mxu0 0
    %3830 = vmatpush1.bf16.msra.mxu0 %v3670
    %3831 = vmatprep.subr.bf16.mxu0 0
    %3832 = vmatpush1.bf16.msra.mxu0 %v3671
    %3833 = vmatprep.subr.bf16.mxu0 0
    %3834 = vmatpush1.bf16.msra.mxu0 %v3672
    %3835 = vmatprep.subr.bf16.mxu0 0
    %3836 = vmatpush1.bf16.msra.mxu0 %v3673
    %3837 = vmatprep.subr.bf16.mxu0 0
    %3838 = vmatpush1.bf16.msra.mxu0 %v3674
    %3839 = vmatprep.subr.bf16.mxu0 0
    %3840 = vmatpush1.bf16.msra.mxu0 %v3675
    %3841 = vmatprep.subr.bf16.mxu0 0
    %3842 = vmatpush1.bf16.msra.mxu0 %v3676
    %3843 = vmatprep.subr.bf16.mxu0 0
    %3844 = vmatpush1.bf16.msra.mxu0 %v3677
    %3845 = vmatprep.mubr.bf16.mxu0 %v3322
    %3846 = vmatmul.mubr.bf16.gmra.mrb[0].mxu0 %v3321
    %v3847 = vpop.f32.mrb[0].mxu0
    %v3848 = vadd.f32 %v3808, %v3847
    %v3849 = vpop.f32.mrb[0].mxu0
    %v3850 = vpop.f32.mrb[0].mxu0
    %v3851 = vpop.f32.mrb[0].mxu0
    %3852 = vdwg.mxu0
    %3853 = vmatprep.subr.bf16.mxu0 0
    %3854 = vmatpush1.bf16.msra.mxu0 %v3678
    %3855 = vmatprep.subr.bf16.mxu0 0
    %3856 = vmatpush1.bf16.msra.mxu0 %v3679
    %3857 = vmatprep.subr.bf16.mxu0 0
    %3858 = vmatpush1.bf16.msra.mxu0 0
    %3859 = vmatprep.subr.bf16.mxu0 0
    %3860 = vmatpush1.bf16.msra.mxu0 0
    %3861 = vmatprep.subr.bf16.mxu0 0
    %3862 = vmatpush1.bf16.msra.mxu0 0
    %3863 = vmatprep.subr.bf16.mxu0 0
    %3864 = vmatpush1.bf16.msra.mxu0 0
    %3865 = vmatprep.subr.bf16.mxu0 0
    %3866 = vmatpush1.bf16.msra.mxu0 0
    %3867 = vmatprep.subr.bf16.mxu0 0
    %3868 = vmatpush1.bf16.msra.mxu0 0
    %3869 = vmatprep.subr.bf16.mxu0 0
    %3870 = vmatpush1.bf16.msra.mxu0 0
    %3871 = vmatprep.subr.bf16.mxu0 0
    %3872 = vmatpush1.bf16.msra.mxu0 0
    %3873 = vmatprep.subr.bf16.mxu0 0
    %3874 = vmatpush1.bf16.msra.mxu0 0
    %3875 = vmatprep.subr.bf16.mxu0 0
    %3876 = vmatpush1.bf16.msra.mxu0 0
    %3877 = vmatprep.subr.bf16.mxu0 0
    %3878 = vmatpush1.bf16.msra.mxu0 0
    %3879 = vmatprep.subr.bf16.mxu0 0
    %3880 = vmatpush1.bf16.msra.mxu0 0
    %3881 = vmatprep.subr.bf16.mxu0 0
    %3882 = vmatpush1.bf16.msra.mxu0 0
    %3883 = vmatprep.subr.bf16.mxu0 0
    %3884 = vmatpush1.bf16.msra.mxu0 0
    %3885 = vmatprep.mubr.bf16.mxu0 0
    %3886 = vmatmul.mubr.bf16.gmra.mrb[0].mxu0 %v3731
    %v3887 = vpop.f32.mrb[0].mxu0
    %v3888 = vadd.f32 %v3848, %v3887
    %v3889 = vpop.f32.mrb[0].mxu0
    %v3890 = vpop.f32.mrb[0].mxu0
    %v3891 = vpop.f32.mrb[0].mxu0
    %3892 = vdwg.mxu0
    %v3893 = vmax.f32 %v3888, 0.0
    %v3894 = vand.u32 2147483647, %v3888
    %v3895 = vsub.f32 0.0, %v3894
    %v3896 = vmul.f32 %v3895, 1.442695
    %v3897 = vpow.pop %v3896
    %v3898 = vadd.f32 %v3897, 1.0
    %v3899 = vlog2.pop %v3898
    %v3900 = vmul.f32 %v3899, 0.6931472
    %v3901 = vmul.f32 -0.5, %v3897
    %v3902 = vadd.f32 %v3901, 1.0
    %v3903 = vmul.f32 %v3902, %v3897
    %v3904 = vand.u32 2147483647, %v3897
    %vm3905 = vcmp.lt.f32.partialorder %v3904, 0.0004427343
    %v3906 = vsel %vm3905, %v3903, %v3900
    %v3907 = vadd.f32 %v3893, %v3906
    %v3908 = vlaneseq
    %v3909 = vshrl.u32 %v3908, 7
    %v3910 = vadd.s32 %v3909, 8
    %v3911 = vadd.s32 %v3909, 16
    %v3912 = vlaneseq
    %v3913 = vand.u32 %v3912, 127
    %vm3914 = vcmp.lt.s32.totalorder %v3909, 0
    %v3915 = vsub.s32 0, %v3909
    %v3916 = vsel %vm3914, %v3915, %v3909
    %v3917 = vshrl.u32 %v3916, 1
    %v3918 = vand.u32 %v3916, 1
    %v3919 = vsub.s32 0, %v3918
    %v3920 = vsel %vm3914, %v3919, %v3918
    %vm3921 = vcmp.lt.s32.totalorder %v3910, 0
    %v3922 = vsub.s32 0, %v3910
    %v3923 = vsel %vm3921, %v3922, %v3910
    %v3924 = vshrl.u32 %v3923, 1
    %v3925 = vand.u32 %v3923, 1
    %v3926 = vsub.s32 0, %v3925
    %v3927 = vsel %vm3921, %v3926, %v3925
    %vm3928 = vcmp.lt.s32.totalorder %v3911, 0
    %v3929 = vsub.s32 0, %v3911
    %v3930 = vsel %vm3928, %v3929, %v3911
    %v3931 = vshrl.u32 %v3930, 1
    %v3932 = vand.u32 %v3930, 1
    %v3933 = vsub.s32 0, %v3932
    %v3934 = vsel %vm3928, %v3933, %v3932
    %vm3935 = vcmp.ne.s32.totalorder %v3920, 0
    %vm3936 = vcmp.ne.s32.totalorder %v3927, 0
    %vm3937 = vcmp.ne.s32.totalorder %v3934, 0
    %vm3938 = vcmp.lt.s32.totalorder %v3920, 0
    %vm3939 = vcmp.lt.s32.totalorder %v3927, 0
    %vm3940 = vcmp.lt.s32.totalorder %v3934, 0
    %vm3941 = vmand %vm3938, %vm3935
    %vm3942 = vmand %vm3939, %vm3936
    %vm3943 = vmand %vm3940, %vm3937
    %v3944 = vadd.s32 %v3920, 2
    %v3945 = vadd.s32 %v3927, 2
    %v3946 = vadd.s32 %v3934, 2
    %v3947 = vsel %vm3941, %v3944, %v3920
    %v3948 = vsel %vm3942, %v3945, %v3927
    %v3949 = vsel %vm3943, %v3946, %v3934
    %vm3950 = vcmp.eq.s32.totalorder %v3947, %v3913
    %vm3951 = vcmp.eq.s32.totalorder %v3948, %v3913
    %vm3952 = vcmp.eq.s32.totalorder %v3949, %v3913
    %v3953 = vsel %vm3950, 1, 0
    %v3954 = vsel %vm3951, 1, 0
    %v3955 = vsel %vm3952, 1, 0
    %v3956 = vcvt.s32.f32 %v3953
    %v3957 = vcvt.s32.f32 %v3954
    %v3958 = vcvt.s32.f32 %v3955
    %3960 = vrot.lane.b32.xlu0 %v3907, 120
    %v3961 = vpop.permute.xlu0 %3960
    %vm3962 = vcmask 15360
    %v3964 = vsel %vm3962, %v3956, 0
    %v3967 = vsel %vm3962, %v3957, 0
    %v3970 = vsel %vm3962, %v3958, 0
    %vm3972 = vcmask 1041408
    %v3973 = vsel %vm3972, %v3961, 0
    %3975 = vmatprep.subr.mxu0 0.0
    %3976 = vmatpush1.msra.mxu0 %v3973
    %3977 = vmatprep.subr.mxu0 0.0
    %3978 = vmatpush1.msra.mxu0 0.0
    %3979 = vmatprep.subr.mxu0 0.0
    %3980 = vmatpush1.msra.mxu0 0.0
    %3981 = vmatprep.subr.mxu0 0.0
    %3982 = vmatpush1.msra.mxu0 0.0
    %3983 = vmatprep.subr.mxu0 0.0
    %3984 = vmatpush1.msra.mxu0 0.0
    %3985 = vmatprep.subr.mxu0 0.0
    %3986 = vmatpush1.msra.mxu0 0.0
    %3987 = vmatprep.subr.mxu0 0.0
    %3988 = vmatpush1.msra.mxu0 0.0
    %3989 = vmatprep.subr.mxu0 0.0
    %3990 = vmatpush1.msra.mxu0 0.0
    %3991 = vmatprep.subr.mxu0 0.0
    %3992 = vmatpush1.msra.mxu0 0.0
    %3993 = vmatprep.subr.mxu0 0.0
    %3994 = vmatpush1.msra.mxu0 0.0
    %3995 = vmatprep.subr.mxu0 0.0
    %3996 = vmatpush1.msra.mxu0 0.0
    %3997 = vmatprep.subr.mxu0 0.0
    %3998 = vmatpush1.msra.mxu0 0.0
    %3999 = vmatprep.subr.mxu0 0.0
    %4000 = vmatpush1.msra.mxu0 0.0
    %4001 = vmatprep.subr.mxu0 0.0
    %4002 = vmatpush1.msra.mxu0 0.0
    %4003 = vmatprep.subr.mxu0 0.0
    %4004 = vmatpush1.msra.mxu0 0.0
    %4005 = vmatprep.subr.mxu0 0.0
    %4006 = vmatpush1.msra.mxu0 0.0
    %4007 = vmatprep.subr.mxu0 0.0
    %4008 = vmatpush1.msra.mxu0 0.0
    %4009 = vmatprep.subr.mxu0 0.0
    %4010 = vmatpush1.msra.mxu0 0.0
    %4011 = vmatprep.subr.mxu0 0.0
    %4012 = vmatpush1.msra.mxu0 0.0
    %4013 = vmatprep.subr.mxu0 0.0
    %4014 = vmatpush1.msra.mxu0 0.0
    %4015 = vmatprep.subr.mxu0 0.0
    %4016 = vmatpush1.msra.mxu0 0.0
    %4017 = vmatprep.subr.mxu0 0.0
    %4018 = vmatpush1.msra.mxu0 0.0
    %4019 = vmatprep.subr.mxu0 0.0
    %4020 = vmatpush1.msra.mxu0 0.0
    %4021 = vmatprep.subr.mxu0 0.0
    %4022 = vmatpush1.msra.mxu0 0.0
    %4023 = vmatprep.subr.mxu0 0.0
    %4024 = vmatpush1.msra.mxu0 0.0
    %4025 = vmatprep.subr.mxu0 0.0
    %4026 = vmatpush1.msra.mxu0 0.0
    %4027 = vmatprep.subr.mxu0 0.0
    %4028 = vmatpush1.msra.mxu0 0.0
    %4029 = vmatprep.subr.mxu0 0.0
    %4030 = vmatpush1.msra.mxu0 0.0
    %4031 = vmatprep.subr.mxu0 0.0
    %4032 = vmatpush1.msra.mxu0 0.0
    %4033 = vmatprep.subr.mxu0 0.0
    %4034 = vmatpush1.msra.mxu0 0.0
    %4035 = vmatprep.subr.mxu0 0.0
    %4036 = vmatpush1.msra.mxu0 0.0
    %4037 = vmatprep.subr.mxu0 0.0
    %4038 = vmatpush1.msra.mxu0 0.0
    %4039 = vmatprep.mubr.f32.mxu0 0.0
    %4040 = vmatmul.mubr.f32.gmra.mrb[0].mxu0 %v3964
    %v4041 = vpop.f32.mrb[0].mxu0
    %v4042 = vadd.f32 0.0, %v4041
    %v4043 = vpop.f32.mrb[0].mxu0
    %4044 = vmatprep.mubr.f32.mxu0 0.0
    %4045 = vmatmul.mubr.f32.gmra.mrb[0].mxu0 %v3967
    %v4046 = vpop.f32.mrb[0].mxu0
    %v4047 = vadd.f32 0.0, %v4046
    %v4048 = vpop.f32.mrb[0].mxu0
    %4049 = vmatprep.mubr.f32.mxu0 0.0
    %4050 = vmatmul.mubr.f32.gmra.mrb[0].mxu0 %v3970
    %v4051 = vpop.f32.mrb[0].mxu0
    %v4052 = vadd.f32 0.0, %v4051
    %v4053 = vpop.f32.mrb[0].mxu0
    %4054 = vdwg.mxu0
    %v4055 = vld [vmem:[%s7] sm:$0xff]
    %v4056 = vld [vmem:[%s7 + $0x8] sm:$0xff]
    %v4057 = vld [vmem:[%s7 + $0x10] sm:$0xf]
    %v4058 = vmul.f32 %v4042, %v4055
    %v4059 = vmul.f32 %v4047, %v4056
    %v4060 = vmul.f32 %v4052, %v4057
    %v4062 = vsel %vm3972, %v3888, 0
    %4064 = vmatprep.subr.mxu0 0.0
    %4065 = vmatpush1.msra.mxu0 %v4062
    %4066 = vmatprep.subr.mxu0 0.0
    %4067 = vmatpush1.msra.mxu0 0.0
    %4068 = vmatprep.subr.mxu0 0.0
    %4069 = vmatpush1.msra.mxu0 0.0
    %4070 = vmatprep.subr.mxu0 0.0
    %4071 = vmatpush1.msra.mxu0 0.0
    %4072 = vmatprep.subr.mxu0 0.0
    %4073 = vmatpush1.msra.mxu0 0.0
    %4074 = vmatprep.subr.mxu0 0.0
    %4075 = vmatpush1.msra.mxu0 0.0
    %4076 = vmatprep.subr.mxu0 0.0
    %4077 = vmatpush1.msra.mxu0 0.0
    %4078 = vmatprep.subr.mxu0 0.0
    %4079 = vmatpush1.msra.mxu0 0.0
    %4080 = vmatprep.subr.mxu0 0.0
    %4081 = vmatpush1.msra.mxu0 0.0
    %4082 = vmatprep.subr.mxu0 0.0
    %4083 = vmatpush1.msra.mxu0 0.0
    %4084 = vmatprep.subr.mxu0 0.0
    %4085 = vmatpush1.msra.mxu0 0.0
    %4086 = vmatprep.subr.mxu0 0.0
    %4087 = vmatpush1.msra.mxu0 0.0
    %4088 = vmatprep.subr.mxu0 0.0
    %4089 = vmatpush1.msra.mxu0 0.0
    %4090 = vmatprep.subr.mxu0 0.0
    %4091 = vmatpush1.msra.mxu0 0.0
    %4092 = vmatprep.subr.mxu0 0.0
    %4093 = vmatpush1.msra.mxu0 0.0
    %4094 = vmatprep.subr.mxu0 0.0
    %4095 = vmatpush1.msra.mxu0 0.0
    %4096 = vmatprep.subr.mxu0 0.0
    %4097 = vmatpush1.msra.mxu0 0.0
    %4098 = vmatprep.subr.mxu0 0.0
    %4099 = vmatpush1.msra.mxu0 0.0
    %4100 = vmatprep.subr.mxu0 0.0
    %4101 = vmatpush1.msra.mxu0 0.0
    %4102 = vmatprep.subr.mxu0 0.0
    %4103 = vmatpush1.msra.mxu0 0.0
    %4104 = vmatprep.subr.mxu0 0.0
    %4105 = vmatpush1.msra.mxu0 0.0
    %4106 = vmatprep.subr.mxu0 0.0
    %4107 = vmatpush1.msra.mxu0 0.0
    %4108 = vmatprep.subr.mxu0 0.0
    %4109 = vmatpush1.msra.mxu0 0.0
    %4110 = vmatprep.subr.mxu0 0.0
    %4111 = vmatpush1.msra.mxu0 0.0
    %4112 = vmatprep.subr.mxu0 0.0
    %4113 = vmatpush1.msra.mxu0 0.0
    %4114 = vmatprep.subr.mxu0 0.0
    %4115 = vmatpush1.msra.mxu0 0.0
    %4116 = vmatprep.subr.mxu0 0.0
    %4117 = vmatpush1.msra.mxu0 0.0
    %4118 = vmatprep.subr.mxu0 0.0
    %4119 = vmatpush1.msra.mxu0 0.0
    %4120 = vmatprep.subr.mxu0 0.0
    %4121 = vmatpush1.msra.mxu0 0.0
    %4122 = vmatprep.subr.mxu0 0.0
    %4123 = vmatpush1.msra.mxu0 0.0
    %4124 = vmatprep.subr.mxu0 0.0
    %4125 = vmatpush1.msra.mxu0 0.0
    %4126 = vmatprep.subr.mxu0 0.0
    %4127 = vmatpush1.msra.mxu0 0.0
    %4128 = vmatprep.mubr.f32.mxu0 0.0
    %4129 = vmatmul.mubr.f32.gmra.mrb[0].mxu0 %v3964
    %v4130 = vpop.f32.mrb[0].mxu0
    %v4131 = vadd.f32 %v4058, %v4130
    %v4132 = vpop.f32.mrb[0].mxu0
    %4133 = vmatprep.mubr.f32.mxu0 0.0
    %4134 = vmatmul.mubr.f32.gmra.mrb[0].mxu0 %v3967
    %v4135 = vpop.f32.mrb[0].mxu0
    %v4136 = vadd.f32 %v4059, %v4135
    %v4137 = vpop.f32.mrb[0].mxu0
    %4138 = vmatprep.mubr.f32.mxu0 0.0
    %4139 = vmatmul.mubr.f32.gmra.mrb[0].mxu0 %v3970
    %v4140 = vpop.f32.mrb[0].mxu0
    %v4141 = vadd.f32 %v4060, %v4140
    %v4142 = vpop.f32.mrb[0].mxu0
    %4143 = vdwg.mxu0
    %v4144 = vpack.c.bf16 %v4136, %v4131
    %v4145 = vpack.c.bf16 %v4141, %v4141
    %v4146 = vld [vmem:[#allocation8] sm:$0xff]
    %v4147 = vld [vmem:[#allocation8 + $0x8] sm:$0xff]
    %v4148 = vld [vmem:[#allocation8 + $0x10] sm:$0xff]
    %v4149 = vld [vmem:[#allocation8 + $0x18] sm:$0xf]
    %v4151 = vlaneseq
    %v4152 = vshrl.u32 %v4151, 7
    %v4153 = vsub.s32 0, %v4152
    %v4154 = vrot.slane %v110, %v4153
    %v4155 = vlaneseq
    %v4156 = vshrl.u32 %v4155, 7
    %v4157 = vsub.s32 1, %v4156
    %v4158 = vrot.slane %v110, %v4157
    %v4159 = vlaneseq
    %v4160 = vshrl.u32 %v4159, 7
    %v4161 = vsub.s32 2, %v4160
    %v4162 = vrot.slane %v110, %v4161
    %v4163 = vlaneseq
    %v4164 = vshrl.u32 %v4163, 7
    %v4165 = vsub.s32 3, %v4164
    %v4166 = vrot.slane %v110, %v4165
    %v4167 = vlaneseq
    %v4168 = vshrl.u32 %v4167, 7
    %v4169 = vsub.s32 4, %v4168
    %v4170 = vrot.slane %v110, %v4169
    %v4171 = vlaneseq
    %v4172 = vshrl.u32 %v4171, 7
    %v4173 = vsub.s32 5, %v4172
    %v4174 = vrot.slane %v110, %v4173
    %v4175 = vlaneseq
    %v4176 = vshrl.u32 %v4175, 7
    %v4177 = vsub.s32 6, %v4176
    %v4178 = vrot.slane %v110, %v4177
    %v4190 = vunpack.c.l.b16 %v4146
    %v4191 = vunpack.c.h.b16 %v4146
    %v4192 = vunpack.c.l.b16 %v4147
    %v4193 = vunpack.c.h.b16 %v4147
    %v4194 = vunpack.c.l.b16 %v4148
    %v4195 = vunpack.c.h.b16 %v4148
    %v4196 = vunpack.c.l.b16 %v4149
    %v4197 = vpack.c.b16 %v4190, %v4190
    %v4198 = vpack.c.b16 %v4191, %v4191
    %v4199 = vpack.c.b16 %v4192, %v4192
    %v4200 = vpack.c.b16 %v4193, %v4193
    %v4201 = vpack.c.b16 %v4194, %v4194
    %v4202 = vpack.c.b16 %v4195, %v4195
    %v4203 = vpack.c.b16 %v4196, %v4196
    %vm4204 = vcmask 64512
    %v4206 = vsel %vm4204, %v4144, 0
    %v4209 = vsel %vm4204, %v4145, 0
    %vm4211 = vcmask 1043456
    %v4213 = vsel %vm4211, %v4197, 0
    %v4216 = vsel %vm4211, %v4198, 0
    %v4219 = vsel %vm4211, %v4199, 0
    %v4222 = vsel %vm4211, %v4200, 0
    %v4225 = vsel %vm4211, %v4201, 0
    %v4228 = vsel %vm4211, %v4202, 0
    %v4231 = vsel %vm4211, %v4203, 0
    %4233 = vmatprep.subr.bf16.mxu0 %v4216
    %4234 = vmatpush1.bf16.msra.mxu0 %v4213
    %4235 = vmatprep.subr.bf16.mxu0 0
    %4236 = vmatpush1.bf16.msra.mxu0 0
    %4237 = vmatprep.subr.bf16.mxu0 0
    %4238 = vmatpush1.bf16.msra.mxu0 0
    %4239 = vmatprep.subr.bf16.mxu0 0
    %4240 = vmatpush1.bf16.msra.mxu0 0
    %4241 = vmatprep.subr.bf16.mxu0 0
    %4242 = vmatpush1.bf16.msra.mxu0 0
    %4243 = vmatprep.subr.bf16.mxu0 0
    %4244 = vmatpush1.bf16.msra.mxu0 0
    %4245 = vmatprep.subr.bf16.mxu0 0
    %4246 = vmatpush1.bf16.msra.mxu0 0
    %4247 = vmatprep.subr.bf16.mxu0 0
    %4248 = vmatpush1.bf16.msra.mxu0 0
    %4249 = vmatprep.subr.bf16.mxu0 0
    %4250 = vmatpush1.bf16.msra.mxu0 0
    %4251 = vmatprep.subr.bf16.mxu0 0
    %4252 = vmatpush1.bf16.msra.mxu0 0
    %4253 = vmatprep.subr.bf16.mxu0 0
    %4254 = vmatpush1.bf16.msra.mxu0 0
    %4255 = vmatprep.subr.bf16.mxu0 0
    %4256 = vmatpush1.bf16.msra.mxu0 0
    %4257 = vmatprep.subr.bf16.mxu0 0
    %4258 = vmatpush1.bf16.msra.mxu0 0
    %4259 = vmatprep.subr.bf16.mxu0 0
    %4260 = vmatpush1.bf16.msra.mxu0 0
    %4261 = vmatprep.subr.bf16.mxu0 0
    %4262 = vmatpush1.bf16.msra.mxu0 0
    %4263 = vmatprep.subr.bf16.mxu0 0
    %4264 = vmatpush1.bf16.msra.mxu0 0
    %4265 = vmatprep.mubr.bf16.mxu0 0
    %4266 = vmatmul.mubr.bf16.gmra.mrb[0].mxu0 %v4206
    %v4267 = vpop.f32.mrb[0].mxu0
    %v4268 = vadd.f32 %v4154, %v4267
    %v4269 = vpop.f32.mrb[0].mxu0
    %v4270 = vadd.f32 %v4158, %v4269
    %v4271 = vpop.f32.mrb[0].mxu0
    %v4272 = vadd.f32 %v4154, %v4271
    %v4273 = vpop.f32.mrb[0].mxu0
    %v4274 = vadd.f32 %v4158, %v4273
    %4275 = vmatprep.mubr.bf16.mxu0 0
    %4276 = vmatmul.mubr.bf16.gmra.mrb[0].mxu0 %v4209
    %v4277 = vpop.f32.mrb[0].mxu0
    %v4278 = vadd.f32 %v4154, %v4277
    %v4279 = vpop.f32.mrb[0].mxu0
    %v4280 = vadd.f32 %v4158, %v4279
    %v4281 = vpop.f32.mrb[0].mxu0
    %v4282 = vpop.f32.mrb[0].mxu0
    %4283 = vdwg.mxu0
    %4284 = vmatprep.subr.bf16.mxu0 %v4222
    %4285 = vmatpush1.bf16.msra.mxu0 %v4219
    %4286 = vmatprep.subr.bf16.mxu0 0
    %4287 = vmatpush1.bf16.msra.mxu0 0
    %4288 = vmatprep.subr.bf16.mxu0 0
    %4289 = vmatpush1.bf16.msra.mxu0 0
    %4290 = vmatprep.subr.bf16.mxu0 0
    %4291 = vmatpush1.bf16.msra.mxu0 0
    %4292 = vmatprep.subr.bf16.mxu0 0
    %4293 = vmatpush1.bf16.msra.mxu0 0
    %4294 = vmatprep.subr.bf16.mxu0 0
    %4295 = vmatpush1.bf16.msra.mxu0 0
    %4296 = vmatprep.subr.bf16.mxu0 0
    %4297 = vmatpush1.bf16.msra.mxu0 0
    %4298 = vmatprep.subr.bf16.mxu0 0
    %4299 = vmatpush1.bf16.msra.mxu0 0
    %4300 = vmatprep.subr.bf16.mxu0 0
    %4301 = vmatpush1.bf16.msra.mxu0 0
    %4302 = vmatprep.subr.bf16.mxu0 0
    %4303 = vmatpush1.bf16.msra.mxu0 0
    %4304 = vmatprep.subr.bf16.mxu0 0
    %4305 = vmatpush1.bf16.msra.mxu0 0
    %4306 = vmatprep.subr.bf16.mxu0 0
    %4307 = vmatpush1.bf16.msra.mxu0 0
    %4308 = vmatprep.subr.bf16.mxu0 0
    %4309 = vmatpush1.bf16.msra.mxu0 0
    %4310 = vmatprep.subr.bf16.mxu0 0
    %4311 = vmatpush1.bf16.msra.mxu0 0
    %4312 = vmatprep.subr.bf16.mxu0 0
    %4313 = vmatpush1.bf16.msra.mxu0 0
    %4314 = vmatprep.subr.bf16.mxu0 0
    %4315 = vmatpush1.bf16.msra.mxu0 0
    %4316 = vmatprep.mubr.bf16.mxu0 0
    %4317 = vmatmul.mubr.bf16.gmra.mrb[0].mxu0 %v4206
    %v4318 = vpop.f32.mrb[0].mxu0
    %v4319 = vadd.f32 %v4162, %v4318
    %v4320 = vpop.f32.mrb[0].mxu0
    %v4321 = vadd.f32 %v4166, %v4320
    %v4322 = vpop.f32.mrb[0].mxu0
    %v4323 = vadd.f32 %v4162, %v4322
    %v4324 = vpop.f32.mrb[0].mxu0
    %v4325 = vadd.f32 %v4166, %v4324
    %4326 = vmatprep.mubr.bf16.mxu0 0
    %4327 = vmatmul.mubr.bf16.gmra.mrb[0].mxu0 %v4209
    %v4328 = vpop.f32.mrb[0].mxu0
    %v4329 = vadd.f32 %v4162, %v4328
    %v4330 = vpop.f32.mrb[0].mxu0
    %v4331 = vadd.f32 %v4166, %v4330
    %v4332 = vpop.f32.mrb[0].mxu0
    %v4333 = vpop.f32.mrb[0].mxu0
    %4334 = vdwg.mxu0
    %4335 = vmatprep.subr.bf16.mxu0 %v4228
    %4336 = vmatpush1.bf16.msra.mxu0 %v4225
    %4337 = vmatprep.subr.bf16.mxu0 0
    %4338 = vmatpush1.bf16.msra.mxu0 0
    %4339 = vmatprep.subr.bf16.mxu0 0
    %4340 = vmatpush1.bf16.msra.mxu0 0
    %4341 = vmatprep.subr.bf16.mxu0 0
    %4342 = vmatpush1.bf16.msra.mxu0 0
    %4343 = vmatprep.subr.bf16.mxu0 0
    %4344 = vmatpush1.bf16.msra.mxu0 0
    %4345 = vmatprep.subr.bf16.mxu0 0
    %4346 = vmatpush1.bf16.msra.mxu0 0
    %4347 = vmatprep.subr.bf16.mxu0 0
    %4348 = vmatpush1.bf16.msra.mxu0 0
    %4349 = vmatprep.subr.bf16.mxu0 0
    %4350 = vmatpush1.bf16.msra.mxu0 0
    %4351 = vmatprep.subr.bf16.mxu0 0
    %4352 = vmatpush1.bf16.msra.mxu0 0
    %4353 = vmatprep.subr.bf16.mxu0 0
    %4354 = vmatpush1.bf16.msra.mxu0 0
    %4355 = vmatprep.subr.bf16.mxu0 0
    %4356 = vmatpush1.bf16.msra.mxu0 0
    %4357 = vmatprep.subr.bf16.mxu0 0
    %4358 = vmatpush1.bf16.msra.mxu0 0
    %4359 = vmatprep.subr.bf16.mxu0 0
    %4360 = vmatpush1.bf16.msra.mxu0 0
    %4361 = vmatprep.subr.bf16.mxu0 0
    %4362 = vmatpush1.bf16.msra.mxu0 0
    %4363 = vmatprep.subr.bf16.mxu0 0
    %4364 = vmatpush1.bf16.msra.mxu0 0
    %4365 = vmatprep.subr.bf16.mxu0 0
    %4366 = vmatpush1.bf16.msra.mxu0 0
    %4367 = vmatprep.mubr.bf16.mxu0 0
    %4368 = vmatmul.mubr.bf16.gmra.mrb[0].mxu0 %v4206
    %v4369 = vpop.f32.mrb[0].mxu0
    %v4370 = vadd.f32 %v4170, %v4369
    %v4371 = vpop.f32.mrb[0].mxu0
    %v4372 = vadd.f32 %v4174, %v4371
    %v4373 = vpop.f32.mrb[0].mxu0
    %v4374 = vadd.f32 %v4170, %v4373
    %v4375 = vpop.f32.mrb[0].mxu0
    %v4376 = vadd.f32 %v4174, %v4375
    %4377 = vmatprep.mubr.bf16.mxu0 0
    %4378 = vmatmul.mubr.bf16.gmra.mrb[0].mxu0 %v4209
    %v4379 = vpop.f32.mrb[0].mxu0
    %v4380 = vadd.f32 %v4170, %v4379
    %v4381 = vpop.f32.mrb[0].mxu0
    %v4382 = vadd.f32 %v4174, %v4381
    %v4383 = vpop.f32.mrb[0].mxu0
    %v4384 = vpop.f32.mrb[0].mxu0
    %4385 = vdwg.mxu0
    %4386 = vmatprep.subr.bf16.mxu0 0
    %4387 = vmatpush1.bf16.msra.mxu0 %v4231
    %4388 = vmatprep.subr.bf16.mxu0 0
    %4389 = vmatpush1.bf16.msra.mxu0 0
    %4390 = vmatprep.subr.bf16.mxu0 0
    %4391 = vmatpush1.bf16.msra.mxu0 0
    %4392 = vmatprep.subr.bf16.mxu0 0
    %4393 = vmatpush1.bf16.msra.mxu0 0
    %4394 = vmatprep.subr.bf16.mxu0 0
    %4395 = vmatpush1.bf16.msra.mxu0 0
    %4396 = vmatprep.subr.bf16.mxu0 0
    %4397 = vmatpush1.bf16.msra.mxu0 0
    %4398 = vmatprep.subr.bf16.mxu0 0
    %4399 = vmatpush1.bf16.msra.mxu0 0
    %4400 = vmatprep.subr.bf16.mxu0 0
    %4401 = vmatpush1.bf16.msra.mxu0 0
    %4402 = vmatprep.subr.bf16.mxu0 0
    %4403 = vmatpush1.bf16.msra.mxu0 0
    %4404 = vmatprep.subr.bf16.mxu0 0
    %4405 = vmatpush1.bf16.msra.mxu0 0
    %4406 = vmatprep.subr.bf16.mxu0 0
    %4407 = vmatpush1.bf16.msra.mxu0 0
    %4408 = vmatprep.subr.bf16.mxu0 0
    %4409 = vmatpush1.bf16.msra.mxu0 0
    %4410 = vmatprep.subr.bf16.mxu0 0
    %4411 = vmatpush1.bf16.msra.mxu0 0
    %4412 = vmatprep.subr.bf16.mxu0 0
    %4413 = vmatpush1.bf16.msra.mxu0 0
    %4414 = vmatprep.subr.bf16.mxu0 0
    %4415 = vmatpush1.bf16.msra.mxu0 0
    %4416 = vmatprep.subr.bf16.mxu0 0
    %4417 = vmatpush1.bf16.msra.mxu0 0
    %4418 = vmatprep.mubr.bf16.mxu0 0
    %4419 = vmatmul.mubr.bf16.gmra.mrb[0].mxu0 %v4206
    %v4420 = vpop.f32.mrb[0].mxu0
    %v4421 = vadd.f32 %v4178, %v4420
    %v4422 = vpop.f32.mrb[0].mxu0
    %v4423 = vpop.f32.mrb[0].mxu0
    %v4424 = vadd.f32 %v4178, %v4423
    %v4425 = vpop.f32.mrb[0].mxu0
    %4426 = vmatprep.mubr.bf16.mxu0 0
    %4427 = vmatmul.mubr.bf16.gmra.mrb[0].mxu0 %v4209
    %v4428 = vpop.f32.mrb[0].mxu0
    %v4429 = vadd.f32 %v4178, %v4428
    %v4430 = vpop.f32.mrb[0].mxu0
    %v4431 = vpop.f32.mrb[0].mxu0
    %v4432 = vpop.f32.mrb[0].mxu0
    %4433 = vdwg.mxu0
    %v4434 = vmax.f32 %v4268, 0.0
    %v4435 = vmax.f32 %v4270, 0.0
    %v4436 = vmax.f32 %v4319, 0.0
    %v4437 = vmax.f32 %v4321, 0.0
    %v4438 = vmax.f32 %v4370, 0.0
    %v4439 = vmax.f32 %v4372, 0.0
    %v4440 = vmax.f32 %v4421, 0.0
    %v4441 = vmax.f32 %v4272, 0.0
    %v4442 = vmax.f32 %v4274, 0.0
    %v4443 = vmax.f32 %v4323, 0.0
    %v4444 = vmax.f32 %v4325, 0.0
    %v4445 = vmax.f32 %v4374, 0.0
    %v4446 = vmax.f32 %v4376, 0.0
    %v4447 = vmax.f32 %v4424, 0.0
    %v4448 = vmax.f32 %v4278, 0.0
    %v4449 = vmax.f32 %v4280, 0.0
    %v4450 = vmax.f32 %v4329, 0.0
    %v4451 = vmax.f32 %v4331, 0.0
    %v4452 = vmax.f32 %v4380, 0.0
    %v4453 = vmax.f32 %v4382, 0.0
    %v4454 = vmax.f32 %v4429, 0.0
    %v4455 = vpack.c.bf16 %v4441, %v4434
    %v4456 = vpack.c.bf16 %v4442, %v4435
    %v4457 = vpack.c.bf16 %v4443, %v4436
    %v4458 = vpack.c.bf16 %v4444, %v4437
    %v4459 = vpack.c.bf16 %v4445, %v4438
    %v4460 = vpack.c.bf16 %v4446, %v4439
    %v4461 = vpack.c.bf16 %v4447, %v4440
    %v4462 = vpack.c.bf16 %v4448, %v4448
    %v4463 = vpack.c.bf16 %v4449, %v4449
    %v4464 = vpack.c.bf16 %v4450, %v4450
    %v4465 = vpack.c.bf16 %v4451, %v4451
    %v4466 = vpack.c.bf16 %v4452, %v4452
    %v4467 = vpack.c.bf16 %v4453, %v4453
    %v4468 = vpack.c.bf16 %v4454, %v4454
    %v4469 = vld [vmem:[#allocation10] sm:$0xf]
    %v4470 = vld [vmem:[#allocation10 + $0x4] sm:$0xf]
    %v4471 = vld [vmem:[#allocation10 + $0x8] sm:$0xf]
    %v4472 = vld [vmem:[#allocation10 + $0xc] sm:$0xf]
    %v4473 = vld [vmem:[#allocation10 + $0x10] sm:$0xf]
    %v4474 = vld [vmem:[#allocation10 + $0x14] sm:$0xf]
    %v4475 = vld [vmem:[#allocation10 + $0x18] sm:$0xf]
    %v4476 = vld [vmem:[#allocation10 + $0x1c] sm:$0xf]
    %v4477 = vld [vmem:[#allocation10 + $0x20] sm:$0xf]
    %v4478 = vld [vmem:[#allocation10 + $0x24] sm:$0xf]
    %v4479 = vld [vmem:[#allocation10 + $0x28] sm:$0xf]
    %v4480 = vld [vmem:[#allocation10 + $0x2c] sm:$0xf]
    %v4481 = vld [vmem:[#allocation10 + $0x30] sm:$0xf]
    %v4482 = vld [vmem:[#allocation10 + $0x34] sm:$0xf]
    %v4483 = vld [vmem:[#allocation10 + $0x38] sm:$0xf]
    %v4484 = vld [vmem:[#allocation10 + $0x3c] sm:$0xf]
    %v4485 = vld [vmem:[#allocation10 + $0x40] sm:$0xf]
    %v4486 = vld [vmem:[#allocation10 + $0x44] sm:$0xf]
    %v4487 = vld [vmem:[#allocation10 + $0x48] sm:$0xf]
    %v4488 = vld [vmem:[#allocation10 + $0x4c] sm:$0xf]
    %v4489 = vld [vmem:[#allocation10 + $0x50] sm:$0xf]
    %v4490 = vld [vmem:[#allocation10 + $0x54] sm:$0xf]
    %v4491 = vld [vmem:[#allocation10 + $0x58] sm:$0xf]
    %v4492 = vld [vmem:[#allocation10 + $0x5c] sm:$0xf]
    %v4493 = vld [vmem:[#allocation10 + $0x60] sm:$0xf]
    %v4494 = vld [vmem:[#allocation10 + $0x64] sm:$0xf]
    %v4495 = vld [vmem:[#allocation10 + $0x68] sm:$0xf]
    %v4496 = vld [vmem:[#allocation10 + $0x6c] sm:$0xf]
    %v4497 = vld [vmem:[#allocation10 + $0x70] sm:$0xf]
    %v4498 = vld [vmem:[#allocation10 + $0x74] sm:$0xf]
    %v4499 = vld [vmem:[#allocation10 + $0x78] sm:$0xf]
    %v4500 = vld [vmem:[#allocation10 + $0x7c] sm:$0xf]
    %v4501 = vld [vmem:[#allocation10 + $0x80] sm:$0xf]
    %v4502 = vld [vmem:[#allocation10 + $0x84] sm:$0xf]
    %v4503 = vld [vmem:[#allocation10 + $0x88] sm:$0xf]
    %v4504 = vld [vmem:[#allocation10 + $0x8c] sm:$0xf]
    %v4505 = vld [vmem:[#allocation10 + $0x90] sm:$0xf]
    %v4506 = vld [vmem:[#allocation10 + $0x94] sm:$0xf]
    %v4507 = vld [vmem:[#allocation10 + $0x98] sm:$0xf]
    %v4508 = vld [vmem:[#allocation10 + $0x9c] sm:$0xf]
    %v4509 = vld [vmem:[#allocation10 + $0xa0] sm:$0xf]
    %v4510 = vld [vmem:[#allocation10 + $0xa4] sm:$0xf]
    %v4511 = vld [vmem:[#allocation10 + $0xa8] sm:$0xf]
    %v4512 = vld [vmem:[#allocation10 + $0xac] sm:$0xf]
    %v4513 = vld [vmem:[#allocation10 + $0xb0] sm:$0xf]
    %v4514 = vld [vmem:[#allocation10 + $0xb4] sm:$0xf]
    %v4515 = vld [vmem:[#allocation10 + $0xb8] sm:$0xf]
    %v4516 = vld [vmem:[#allocation10 + $0xbc] sm:$0xf]
    %v4517 = vld [vmem:[#allocation10 + $0xc0] sm:$0xf]
    %v4518 = vld [vmem:[#allocation10 + $0xc4] sm:$0xf]
    %v4519 = vld [vmem:[#allocation10 + $0xc8] sm:$0xf]
    %v4520 = vld [vmem:[#allocation10 + $0xcc] sm:$0xf]
    %v4521 = vld [vmem:[#allocation10 + $0xd0] sm:$0xf]
    %v4522 = vld [vmem:[#allocation10 + $0xd4] sm:$0xf]
    %v4523 = vld [vmem:[#allocation10 + $0xd8] sm:$0xf]
    %v4524 = vld [vmem:[#allocation10 + $0xdc] sm:$0xf]
    %v4525 = vld [vmem:[#allocation10 + $0xe0] sm:$0xf]
    %v4526 = vld [vmem:[#allocation10 + $0xe4] sm:$0xf]
    %v4527 = vld [vmem:[#allocation10 + $0xe8] sm:$0xf]
    %v4528 = vld [vmem:[#allocation10 + $0xec] sm:$0xf]
    %v4529 = vld [vmem:[#allocation10 + $0xf0] sm:$0xf]
    %v4530 = vld [vmem:[#allocation10 + $0xf4] sm:$0xf]
    %v4531 = vld [vmem:[#allocation10 + $0xf8] sm:$0xf]
    %v4532 = vld [vmem:[#allocation10 + $0xfc] sm:$0xf]
    %v4533 = vld [vmem:[#allocation10 + $0x100] sm:$0xf]
    %v4534 = vld [vmem:[#allocation10 + $0x104] sm:$0xf]
    %v4535 = vld [vmem:[#allocation10 + $0x108] sm:$0xf]
    %v4536 = vld [vmem:[#allocation10 + $0x10c] sm:$0xf]
    %v4537 = vld [vmem:[#allocation10 + $0x110] sm:$0xf]
    %v4538 = vld [vmem:[#allocation10 + $0x114] sm:$0xf]
    %v4539 = vld [vmem:[#allocation10 + $0x118] sm:$0xf]
    %v4540 = vld [vmem:[#allocation10 + $0x11c] sm:$0xf]
    %v4541 = vld [vmem:[#allocation10 + $0x120] sm:$0xf]
    %v4542 = vld [vmem:[#allocation10 + $0x124] sm:$0xf]
    %v4543 = vld [vmem:[#allocation10 + $0x128] sm:$0xf]
    %v4544 = vld [vmem:[#allocation10 + $0x12c] sm:$0xf]
    %v4545 = vld [vmem:[#allocation10 + $0x130] sm:$0xf]
    %v4546 = vld [vmem:[#allocation10 + $0x134] sm:$0xf]
    %v4547 = vld [vmem:[#allocation10 + $0x138] sm:$0xf]
    %v4548 = vld [vmem:[#allocation10 + $0x13c] sm:$0xf]
    %v4549 = vld [vmem:[#allocation10 + $0x140] sm:$0xf]
    %v4550 = vld [vmem:[#allocation10 + $0x144] sm:$0xf]
    %v4551 = vld [vmem:[#allocation10 + $0x148] sm:$0xf]
    %v4552 = vld [vmem:[#allocation10 + $0x14c] sm:$0xf]
    %v4553 = vld [vmem:[#allocation10 + $0x150] sm:$0xf]
    %v4554 = vld [vmem:[#allocation10 + $0x154] sm:$0xf]
    %v4555 = vld [vmem:[#allocation10 + $0x158] sm:$0xf]
    %v4556 = vld [vmem:[#allocation10 + $0x15c] sm:$0xf]
    %v4557 = vld [vmem:[#allocation10 + $0x160] sm:$0xf]
    %v4558 = vld [vmem:[#allocation10 + $0x164] sm:$0xf]
    %v4559 = vld [vmem:[#allocation10 + $0x168] sm:$0xf]
    %v4560 = vld [vmem:[#allocation10 + $0x16c] sm:$0xf]
    %v4561 = vld [vmem:[#allocation10 + $0x170] sm:$0xf]
    %v4562 = vld [vmem:[#allocation10 + $0x174] sm:$0xf]
    %v4563 = vld [vmem:[#allocation10 + $0x178] sm:$0xf]
    %v4564 = vld [vmem:[#allocation10 + $0x17c] sm:$0xf]
    %v4565 = vld [vmem:[#allocation10 + $0x180] sm:$0xf]
    %v4566 = vld [vmem:[#allocation10 + $0x184] sm:$0xf]
    %v4567 = vld [vmem:[#allocation10 + $0x188] sm:$0xf]
    %v4568 = vld [vmem:[#allocation10 + $0x18c] sm:$0xf]
    %v4570 = vlaneseq
    %v4571 = vshrl.u32 %v4570, 7
    %v4572 = vsub.s32 0, %v4571
    %v4573 = vrot.slane %v111, %v4572
    %v4675 = vunpack.c.l.b16 %v4469
    %v4676 = vunpack.c.l.b16 %v4470
    %v4677 = vunpack.c.l.b16 %v4471
    %v4678 = vunpack.c.l.b16 %v4472
    %v4679 = vunpack.c.l.b16 %v4473
    %v4680 = vunpack.c.l.b16 %v4474
    %v4681 = vunpack.c.l.b16 %v4475
    %v4682 = vunpack.c.l.b16 %v4476
    %v4683 = vunpack.c.l.b16 %v4477
    %v4684 = vunpack.c.l.b16 %v4478
    %v4685 = vunpack.c.l.b16 %v4479
    %v4686 = vunpack.c.l.b16 %v4480
    %v4687 = vunpack.c.l.b16 %v4481
    %v4688 = vunpack.c.l.b16 %v4482
    %v4689 = vunpack.c.l.b16 %v4483
    %v4690 = vunpack.c.l.b16 %v4484
    %v4691 = vunpack.c.l.b16 %v4485
    %v4692 = vunpack.c.l.b16 %v4486
    %v4693 = vunpack.c.l.b16 %v4487
    %v4694 = vunpack.c.l.b16 %v4488
    %v4695 = vunpack.c.l.b16 %v4489
    %v4696 = vunpack.c.l.b16 %v4490
    %v4697 = vunpack.c.l.b16 %v4491
    %v4698 = vunpack.c.l.b16 %v4492
    %v4699 = vunpack.c.l.b16 %v4493
    %v4700 = vunpack.c.l.b16 %v4494
    %v4701 = vunpack.c.l.b16 %v4495
    %v4702 = vunpack.c.l.b16 %v4496
    %v4703 = vunpack.c.l.b16 %v4497
    %v4704 = vunpack.c.l.b16 %v4498
    %v4705 = vunpack.c.l.b16 %v4499
    %v4706 = vunpack.c.l.b16 %v4500
    %v4707 = vunpack.c.l.b16 %v4501
    %v4708 = vunpack.c.l.b16 %v4502
    %v4709 = vunpack.c.l.b16 %v4503
    %v4710 = vunpack.c.l.b16 %v4504
    %v4711 = vunpack.c.l.b16 %v4505
    %v4712 = vunpack.c.l.b16 %v4506
    %v4713 = vunpack.c.l.b16 %v4507
    %v4714 = vunpack.c.l.b16 %v4508
    %v4715 = vunpack.c.l.b16 %v4509
    %v4716 = vunpack.c.l.b16 %v4510
    %v4717 = vunpack.c.l.b16 %v4511
    %v4718 = vunpack.c.l.b16 %v4512
    %v4719 = vunpack.c.l.b16 %v4513
    %v4720 = vunpack.c.l.b16 %v4514
    %v4721 = vunpack.c.l.b16 %v4515
    %v4722 = vunpack.c.l.b16 %v4516
    %v4723 = vunpack.c.l.b16 %v4517
    %v4724 = vunpack.c.l.b16 %v4518
    %v4725 = vunpack.c.l.b16 %v4519
    %v4726 = vunpack.c.l.b16 %v4520
    %v4727 = vunpack.c.l.b16 %v4521
    %v4728 = vunpack.c.l.b16 %v4522
    %v4729 = vunpack.c.l.b16 %v4523
    %v4730 = vunpack.c.l.b16 %v4524
    %v4731 = vunpack.c.l.b16 %v4525
    %v4732 = vunpack.c.l.b16 %v4526
    %v4733 = vunpack.c.l.b16 %v4527
    %v4734 = vunpack.c.l.b16 %v4528
    %v4735 = vunpack.c.l.b16 %v4529
    %v4736 = vunpack.c.l.b16 %v4530
    %v4737 = vunpack.c.l.b16 %v4531
    %v4738 = vunpack.c.l.b16 %v4532
    %v4739 = vunpack.c.l.b16 %v4533
    %v4740 = vunpack.c.l.b16 %v4534
    %v4741 = vunpack.c.l.b16 %v4535
    %v4742 = vunpack.c.l.b16 %v4536
    %v4743 = vunpack.c.l.b16 %v4537
    %v4744 = vunpack.c.l.b16 %v4538
    %v4745 = vunpack.c.l.b16 %v4539
    %v4746 = vunpack.c.l.b16 %v4540
    %v4747 = vunpack.c.l.b16 %v4541
    %v4748 = vunpack.c.l.b16 %v4542
    %v4749 = vunpack.c.l.b16 %v4543
    %v4750 = vunpack.c.l.b16 %v4544
    %v4751 = vunpack.c.l.b16 %v4545
    %v4752 = vunpack.c.l.b16 %v4546
    %v4753 = vunpack.c.l.b16 %v4547
    %v4754 = vunpack.c.l.b16 %v4548
    %v4755 = vunpack.c.l.b16 %v4549
    %v4756 = vunpack.c.l.b16 %v4550
    %v4757 = vunpack.c.l.b16 %v4551
    %v4758 = vunpack.c.l.b16 %v4552
    %v4759 = vunpack.c.l.b16 %v4553
    %v4760 = vunpack.c.l.b16 %v4554
    %v4761 = vunpack.c.l.b16 %v4555
    %v4762 = vunpack.c.l.b16 %v4556
    %v4763 = vunpack.c.l.b16 %v4557
    %v4764 = vunpack.c.l.b16 %v4558
    %v4765 = vunpack.c.l.b16 %v4559
    %v4766 = vunpack.c.l.b16 %v4560
    %v4767 = vunpack.c.l.b16 %v4561
    %v4768 = vunpack.c.l.b16 %v4562
    %v4769 = vunpack.c.l.b16 %v4563
    %v4770 = vunpack.c.l.b16 %v4564
    %v4771 = vunpack.c.l.b16 %v4565
    %v4772 = vunpack.c.l.b16 %v4566
    %v4773 = vunpack.c.l.b16 %v4567
    %v4774 = vunpack.c.l.b16 %v4568
    %v4775 = vpack.c.b16 %v4676, %v4675
    %v4776 = vpack.c.b16 %v4678, %v4677
    %v4777 = vpack.c.b16 %v4680, %v4679
    %v4778 = vpack.c.b16 %v4682, %v4681
    %v4779 = vpack.c.b16 %v4684, %v4683
    %v4780 = vpack.c.b16 %v4686, %v4685
    %v4781 = vpack.c.b16 %v4688, %v4687
    %v4782 = vpack.c.b16 %v4690, %v4689
    %v4783 = vpack.c.b16 %v4692, %v4691
    %v4784 = vpack.c.b16 %v4694, %v4693
    %v4785 = vpack.c.b16 %v4696, %v4695
    %v4786 = vpack.c.b16 %v4698, %v4697
    %v4787 = vpack.c.b16 %v4700, %v4699
    %v4788 = vpack.c.b16 %v4702, %v4701
    %v4789 = vpack.c.b16 %v4704, %v4703
    %v4790 = vpack.c.b16 %v4706, %v4705
    %v4791 = vpack.c.b16 %v4708, %v4707
    %v4792 = vpack.c.b16 %v4710, %v4709
    %v4793 = vpack.c.b16 %v4712, %v4711
    %v4794 = vpack.c.b16 %v4714, %v4713
    %v4795 = vpack.c.b16 %v4716, %v4715
    %v4796 = vpack.c.b16 %v4718, %v4717
    %v4797 = vpack.c.b16 %v4720, %v4719
    %v4798 = vpack.c.b16 %v4722, %v4721
    %v4799 = vpack.c.b16 %v4724, %v4723
    %v4800 = vpack.c.b16 %v4726, %v4725
    %v4801 = vpack.c.b16 %v4728, %v4727
    %v4802 = vpack.c.b16 %v4730, %v4729
    %v4803 = vpack.c.b16 %v4732, %v4731
    %v4804 = vpack.c.b16 %v4734, %v4733
    %v4805 = vpack.c.b16 %v4736, %v4735
    %v4806 = vpack.c.b16 %v4738, %v4737
    %v4807 = vpack.c.b16 %v4740, %v4739
    %v4808 = vpack.c.b16 %v4742, %v4741
    %v4809 = vpack.c.b16 %v4744, %v4743
    %v4810 = vpack.c.b16 %v4746, %v4745
    %v4811 = vpack.c.b16 %v4748, %v4747
    %v4812 = vpack.c.b16 %v4750, %v4749
    %v4813 = vpack.c.b16 %v4752, %v4751
    %v4814 = vpack.c.b16 %v4754, %v4753
    %v4815 = vpack.c.b16 %v4756, %v4755
    %v4816 = vpack.c.b16 %v4758, %v4757
    %v4817 = vpack.c.b16 %v4760, %v4759
    %v4818 = vpack.c.b16 %v4762, %v4761
    %v4819 = vpack.c.b16 %v4764, %v4763
    %v4820 = vpack.c.b16 %v4766, %v4765
    %v4821 = vpack.c.b16 %v4768, %v4767
    %v4822 = vpack.c.b16 %v4770, %v4769
    %v4823 = vpack.c.b16 %v4772, %v4771
    %v4824 = vpack.c.b16 %v4774, %v4773
    %v4876 = vsel %vm238, %v4461, 0
    %v4879 = vsel %vm238, %v4468, 0
    %4881 = vmatprep.subr.bf16.mxu0 0
    %4882 = vmatpush1.bf16.msra.mxu0 %v4775
    %4883 = vmatprep.subr.bf16.mxu0 0
    %4884 = vmatpush1.bf16.msra.mxu0 %v4776
    %4885 = vmatprep.subr.bf16.mxu0 0
    %4886 = vmatpush1.bf16.msra.mxu0 %v4777
    %4887 = vmatprep.subr.bf16.mxu0 0
    %4888 = vmatpush1.bf16.msra.mxu0 %v4778
    %4889 = vmatprep.subr.bf16.mxu0 0
    %4890 = vmatpush1.bf16.msra.mxu0 %v4779
    %4891 = vmatprep.subr.bf16.mxu0 0
    %4892 = vmatpush1.bf16.msra.mxu0 %v4780
    %4893 = vmatprep.subr.bf16.mxu0 0
    %4894 = vmatpush1.bf16.msra.mxu0 %v4781
    %4895 = vmatprep.subr.bf16.mxu0 0
    %4896 = vmatpush1.bf16.msra.mxu0 %v4782
    %4897 = vmatprep.subr.bf16.mxu0 0
    %4898 = vmatpush1.bf16.msra.mxu0 %v4783
    %4899 = vmatprep.subr.bf16.mxu0 0
    %4900 = vmatpush1.bf16.msra.mxu0 %v4784
    %4901 = vmatprep.subr.bf16.mxu0 0
    %4902 = vmatpush1.bf16.msra.mxu0 %v4785
    %4903 = vmatprep.subr.bf16.mxu0 0
    %4904 = vmatpush1.bf16.msra.mxu0 %v4786
    %4905 = vmatprep.subr.bf16.mxu0 0
    %4906 = vmatpush1.bf16.msra.mxu0 %v4787
    %4907 = vmatprep.subr.bf16.mxu0 0
    %4908 = vmatpush1.bf16.msra.mxu0 %v4788
    %4909 = vmatprep.subr.bf16.mxu0 0
    %4910 = vmatpush1.bf16.msra.mxu0 %v4789
    %4911 = vmatprep.subr.bf16.mxu0 0
    %4912 = vmatpush1.bf16.msra.mxu0 %v4790
    %4913 = vmatprep.mubr.bf16.mxu0 %v4456
    %4914 = vmatmul.mubr.bf16.gmra.mrb[0].mxu0 %v4455
    %v4915 = vpop.f32.mrb[0].mxu0
    %v4916 = vadd.f32 %v4573, %v4915
    %v4917 = vpop.f32.mrb[0].mxu0
    %v4918 = vpop.f32.mrb[0].mxu0
    %v4919 = vadd.f32 %v4573, %v4918
    %v4920 = vpop.f32.mrb[0].mxu0
    %4921 = vmatprep.mubr.bf16.mxu0 %v4463
    %4922 = vmatmul.mubr.bf16.gmra.mrb[0].mxu0 %v4462
    %v4923 = vpop.f32.mrb[0].mxu0
    %v4924 = vadd.f32 %v4573, %v4923
    %v4925 = vpop.f32.mrb[0].mxu0
    %v4926 = vpop.f32.mrb[0].mxu0
    %v4927 = vpop.f32.mrb[0].mxu0
    %4928 = vdwg.mxu0
    %4929 = vmatprep.subr.bf16.mxu0 0
    %4930 = vmatpush1.bf16.msra.mxu0 %v4791
    %4931 = vmatprep.subr.bf16.mxu0 0
    %4932 = vmatpush1.bf16.msra.mxu0 %v4792
    %4933 = vmatprep.subr.bf16.mxu0 0
    %4934 = vmatpush1.bf16.msra.mxu0 %v4793
    %4935 = vmatprep.subr.bf16.mxu0 0
    %4936 = vmatpush1.bf16.msra.mxu0 %v4794
    %4937 = vmatprep.subr.bf16.mxu0 0
    %4938 = vmatpush1.bf16.msra.mxu0 %v4795
    %4939 = vmatprep.subr.bf16.mxu0 0
    %4940 = vmatpush1.bf16.msra.mxu0 %v4796
    %4941 = vmatprep.subr.bf16.mxu0 0
    %4942 = vmatpush1.bf16.msra.mxu0 %v4797
    %4943 = vmatprep.subr.bf16.mxu0 0
    %4944 = vmatpush1.bf16.msra.mxu0 %v4798
    %4945 = vmatprep.subr.bf16.mxu0 0
    %4946 = vmatpush1.bf16.msra.mxu0 %v4799
    %4947 = vmatprep.subr.bf16.mxu0 0
    %4948 = vmatpush1.bf16.msra.mxu0 %v4800
    %4949 = vmatprep.subr.bf16.mxu0 0
    %4950 = vmatpush1.bf16.msra.mxu0 %v4801
    %4951 = vmatprep.subr.bf16.mxu0 0
    %4952 = vmatpush1.bf16.msra.mxu0 %v4802
    %4953 = vmatprep.subr.bf16.mxu0 0
    %4954 = vmatpush1.bf16.msra.mxu0 %v4803
    %4955 = vmatprep.subr.bf16.mxu0 0
    %4956 = vmatpush1.bf16.msra.mxu0 %v4804
    %4957 = vmatprep.subr.bf16.mxu0 0
    %4958 = vmatpush1.bf16.msra.mxu0 %v4805
    %4959 = vmatprep.subr.bf16.mxu0 0
    %4960 = vmatpush1.bf16.msra.mxu0 %v4806
    %4961 = vmatprep.mubr.bf16.mxu0 %v4458
    %4962 = vmatmul.mubr.bf16.gmra.mrb[0].mxu0 %v4457
    %v4963 = vpop.f32.mrb[0].mxu0
    %v4964 = vadd.f32 %v4916, %v4963
    %v4965 = vpop.f32.mrb[0].mxu0
    %v4966 = vpop.f32.mrb[0].mxu0
    %v4967 = vadd.f32 %v4919, %v4966
    %v4968 = vpop.f32.mrb[0].mxu0
    %4969 = vmatprep.mubr.bf16.mxu0 %v4465
    %4970 = vmatmul.mubr.bf16.gmra.mrb[0].mxu0 %v4464
    %v4971 = vpop.f32.mrb[0].mxu0
    %v4972 = vadd.f32 %v4924, %v4971
    %v4973 = vpop.f32.mrb[0].mxu0
    %v4974 = vpop.f32.mrb[0].mxu0
    %v4975 = vpop.f32.mrb[0].mxu0
    %4976 = vdwg.mxu0
    %4977 = vmatprep.subr.bf16.mxu0 0
    %4978 = vmatpush1.bf16.msra.mxu0 %v4807
    %4979 = vmatprep.subr.bf16.mxu0 0
    %4980 = vmatpush1.bf16.msra.mxu0 %v4808
    %4981 = vmatprep.subr.bf16.mxu0 0
    %4982 = vmatpush1.bf16.msra.mxu0 %v4809
    %4983 = vmatprep.subr.bf16.mxu0 0
    %4984 = vmatpush1.bf16.msra.mxu0 %v4810
    %4985 = vmatprep.subr.bf16.mxu0 0
    %4986 = vmatpush1.bf16.msra.mxu0 %v4811
    %4987 = vmatprep.subr.bf16.mxu0 0
    %4988 = vmatpush1.bf16.msra.mxu0 %v4812
    %4989 = vmatprep.subr.bf16.mxu0 0
    %4990 = vmatpush1.bf16.msra.mxu0 %v4813
    %4991 = vmatprep.subr.bf16.mxu0 0
    %4992 = vmatpush1.bf16.msra.mxu0 %v4814
    %4993 = vmatprep.subr.bf16.mxu0 0
    %4994 = vmatpush1.bf16.msra.mxu0 %v4815
    %4995 = vmatprep.subr.bf16.mxu0 0
    %4996 = vmatpush1.bf16.msra.mxu0 %v4816
    %4997 = vmatprep.subr.bf16.mxu0 0
    %4998 = vmatpush1.bf16.msra.mxu0 %v4817
    %4999 = vmatprep.subr.bf16.mxu0 0
    %5000 = vmatpush1.bf16.msra.mxu0 %v4818
    %5001 = vmatprep.subr.bf16.mxu0 0
    %5002 = vmatpush1.bf16.msra.mxu0 %v4819
    %5003 = vmatprep.subr.bf16.mxu0 0
    %5004 = vmatpush1.bf16.msra.mxu0 %v4820
    %5005 = vmatprep.subr.bf16.mxu0 0
    %5006 = vmatpush1.bf16.msra.mxu0 %v4821
    %5007 = vmatprep.subr.bf16.mxu0 0
    %5008 = vmatpush1.bf16.msra.mxu0 %v4822
    %5009 = vmatprep.mubr.bf16.mxu0 %v4460
    %5010 = vmatmul.mubr.bf16.gmra.mrb[0].mxu0 %v4459
    %v5011 = vpop.f32.mrb[0].mxu0
    %v5012 = vadd.f32 %v4964, %v5011
    %v5013 = vpop.f32.mrb[0].mxu0
    %v5014 = vpop.f32.mrb[0].mxu0
    %v5015 = vadd.f32 %v4967, %v5014
    %v5016 = vpop.f32.mrb[0].mxu0
    %5017 = vmatprep.mubr.bf16.mxu0 %v4467
    %5018 = vmatmul.mubr.bf16.gmra.mrb[0].mxu0 %v4466
    %v5019 = vpop.f32.mrb[0].mxu0
    %v5020 = vadd.f32 %v4972, %v5019
    %v5021 = vpop.f32.mrb[0].mxu0
    %v5022 = vpop.f32.mrb[0].mxu0
    %v5023 = vpop.f32.mrb[0].mxu0
    %5024 = vdwg.mxu0
    %5025 = vmatprep.subr.bf16.mxu0 0
    %5026 = vmatpush1.bf16.msra.mxu0 %v4823
    %5027 = vmatprep.subr.bf16.mxu0 0
    %5028 = vmatpush1.bf16.msra.mxu0 %v4824
    %5029 = vmatprep.subr.bf16.mxu0 0
    %5030 = vmatpush1.bf16.msra.mxu0 0
    %5031 = vmatprep.subr.bf16.mxu0 0
    %5032 = vmatpush1.bf16.msra.mxu0 0
    %5033 = vmatprep.subr.bf16.mxu0 0
    %5034 = vmatpush1.bf16.msra.mxu0 0
    %5035 = vmatprep.subr.bf16.mxu0 0
    %5036 = vmatpush1.bf16.msra.mxu0 0
    %5037 = vmatprep.subr.bf16.mxu0 0
    %5038 = vmatpush1.bf16.msra.mxu0 0
    %5039 = vmatprep.subr.bf16.mxu0 0
    %5040 = vmatpush1.bf16.msra.mxu0 0
    %5041 = vmatprep.subr.bf16.mxu0 0
    %5042 = vmatpush1.bf16.msra.mxu0 0
    %5043 = vmatprep.subr.bf16.mxu0 0
    %5044 = vmatpush1.bf16.msra.mxu0 0
    %5045 = vmatprep.subr.bf16.mxu0 0
    %5046 = vmatpush1.bf16.msra.mxu0 0
    %5047 = vmatprep.subr.bf16.mxu0 0
    %5048 = vmatpush1.bf16.msra.mxu0 0
    %5049 = vmatprep.subr.bf16.mxu0 0
    %5050 = vmatpush1.bf16.msra.mxu0 0
    %5051 = vmatprep.subr.bf16.mxu0 0
    %5052 = vmatpush1.bf16.msra.mxu0 0
    %5053 = vmatprep.subr.bf16.mxu0 0
    %5054 = vmatpush1.bf16.msra.mxu0 0
    %5055 = vmatprep.subr.bf16.mxu0 0
    %5056 = vmatpush1.bf16.msra.mxu0 0
    %5057 = vmatprep.mubr.bf16.mxu0 0
    %5058 = vmatmul.mubr.bf16.gmra.mrb[0].mxu0 %v4876
    %v5059 = vpop.f32.mrb[0].mxu0
    %v5060 = vadd.f32 %v5012, %v5059
    %v5061 = vpop.f32.mrb[0].mxu0
    %v5062 = vpop.f32.mrb[0].mxu0
    %v5063 = vadd.f32 %v5015, %v5062
    %v5064 = vpop.f32.mrb[0].mxu0
    %5065 = vmatprep.mubr.bf16.mxu0 0
    %5066 = vmatmul.mubr.bf16.gmra.mrb[0].mxu0 %v4879
    %v5067 = vpop.f32.mrb[0].mxu0
    %v5068 = vadd.f32 %v5020, %v5067
    %v5069 = vpop.f32.mrb[0].mxu0
    %v5070 = vpop.f32.mrb[0].mxu0
    %v5071 = vpop.f32.mrb[0].mxu0
    %5072 = vdwg.mxu0
    %5073 = vst [vmem:[#allocation13] sm:$0xff] %v5060
    %5074 = vst [vmem:[#allocation13 + $0x8] sm:$0xff] %v5063
    %5075 = vst [vmem:[#allocation13 + $0x10] sm:$0xf] %v5068
    // Predicated region
    $region58: #{tpu_custom_call.1} parent=1 // pred_check
      _
    $region59: #{tpu_custom_call.1} parent=1 // pred_check_branch
      %5077 = sbr.rel (0) target = $region61
    $region60: #{tpu_custom_call.1} parent=1 // pred_region
      %s5079 = ssub.s32 384, 384
      %5080 = vsyncadd [#allocation4], %s5079
      %s5081 = sshll.u32 [#allocation13], 4
      %s5082 = int_to_ptr.vmem [resolvable:$true] %s5081
      %5087 = dma.vmem_to_hbm [thread:$0]  %s5082, 384, %s8, [#allocation4], 128, 128, 8
    $region61: #{tpu_custom_call.1} parent=1 // pred_fallthru
      _
    // Predicated region
    $region62: #{tpu_custom_call.1} parent=1 // pred_check
      _
    $region63: #{tpu_custom_call.1} parent=1 // pred_check_branch
      %5089 = sbr.rel (0) target = $region65
    $region64: #{tpu_custom_call.1} parent=1 // pred_region
      %5090 = dma.done [#allocation4], 384
    $region65: #{tpu_custom_call.1} parent=1 // pred_fallthru
      _
    %5091 = vsyncpa [#allocation3], 1
    %5092 = vsyncpa [#allocation6], 1
    %5093 = vsyncpa [#allocation9], 1
    %5094 = vsyncpa [#allocation12], 1
    %5095 = vsyncpa [#allocation4], 1

</llo_original>
